<compile_context>
chip_gen: v5e
topology: v5e:2x2
jax: 0.10.0
libtpu: 0.0.40
codegen_flags: <defaults>
</compile_context>

<pallas_src>
import math
import functools

import jax
import jax.numpy as jnp
from jax.experimental import pallas as pl
from jax.experimental.pallas import tpu as pltpu

_LN_EPS = 1e-12   # ESPnet LayerNorm eps (torch.nn.LayerNorm default would be 1e-5)

# Rows of the packed per-feature parameter table (each row padded to L lanes).
(G_FFM, B_FFM, B1M, B2M,
 G_MHA, B_MHA, B_QKV, B_O,
 G_CV, B_CV, B_PW1, B_DW, BN_S, BN_B, B_PW2,
 G_FF, B_FF, B1, B2,
 G_FIN, B_FIN, N_VEC) = range(22)


def _encoder_layer_kernel(BB, T, D, FF, H, K,
                          x_ref, mask_ref, tpos_ref, vec_ref,
                          w1m_ref, w2m_ref, wqkv_ref, wo_ref,
                          wpw1_ref, wpw2_ref, wdw_ref, w1_ref, w2_ref,
                          o_ref, att_sc):
    """Fused Conformer encoder layer for one batch tile of BB sequences (M = BB*T tokens)."""
    f32, bf16 = jnp.float32, jnp.bfloat16
    M = BB * T
    dk = D // H
    pad = (K - 1) // 2
    inv_sqrt_dk = 1.0 / math.sqrt(dk)

    def vrow(row, n):                       # packed per-feature vector -> (1, n) f32
        return vec_ref[row:row + 1, :n]

    def ln(x, g_row, b_row):                # LayerNorm over features, f32 on the VPU
        m = jnp.mean(x, axis=-1, keepdims=True)
        v = jnp.mean(jnp.square(x - m), axis=-1, keepdims=True)
        return (x - m) * jax.lax.rsqrt(v + _LN_EPS) * vrow(g_row, D) + vrow(b_row, D)

    def swish(x):
        return x * jax.nn.sigmoid(x)

    def mm(a, w_ref):                       # bf16 operands, f32 accumulation (MXU)
        return jnp.dot(a.astype(bf16), w_ref[...], preferred_element_type=f32)

    x = x_ref[...]                          # (M, D) f32 tokens of this batch tile

    # ---------------- macaron feed-forward: x = x + 0.5 * FF(LN(x)) ----------------
    res = x
    xn = ln(x, G_FFM, B_FFM)
    h = swish(mm(xn, w1m_ref) + vrow(B1M, FF))
    x = res + 0.5 * (mm(h, w2m_ref) + vrow(B2M, D))

    # ---------------- multi-headed self-attention: x = x + MHA(LN(x)) --------------
    res = x
    xn = ln(x, G_MHA, B_MHA)
    qkv = (mm(xn, wqkv_ref) + vrow(B_QKV, 3 * D)).astype(bf16)    # fused QKV, (M, 3D)
    neg = jnp.finfo(f32).min
    for b in range(BB):                     # scores / weighted-sum stay per-sequence
        r0 = b * T
        key_mask = mask_ref[b] > 0.0        # (1, T): True = valid key frame
        for hh in range(H):                 # H is small -> static unroll
            lo = hh * dk
            qh = qkv[r0:r0 + T, lo:lo + dk]
            kh = qkv[r0:r0 + T, D + lo:D + lo + dk]
            vh = qkv[r0:r0 + T, 2 * D + lo:2 * D + lo + dk]
            s = jax.lax.dot_general(qh, kh, (((1,), (1,)), ((), ())),
                                    preferred_element_type=f32) * inv_sqrt_dk
            s = jnp.where(key_mask, s, neg)
            s = s - jnp.max(s, axis=-1, keepdims=True)
            p = jnp.exp(s)
            p = p * pl.reciprocal(jnp.sum(p, axis=-1, keepdims=True), approx=True)
            p = jnp.where(key_mask, p, 0.0)
            ctx = jnp.dot(p.astype(bf16), vh, preferred_element_type=f32)
            att_sc[r0:r0 + T, lo:lo + dk] = ctx      # head outputs land in place
    x = res + mm(att_sc[...], wo_ref) + vrow(B_O, D)

    # ---------------- convolution module: x = x + Conv(LN(x)) ----------------------
    res = x
    xn = ln(x, G_CV, B_CV)
    u = mm(xn, wpw1_ref) + vrow(B_PW1, 2 * D)                # pointwise conv 1 -> (M, 2D)
    glu = u[:, 0:D] * jax.nn.sigmoid(u[:, D:2 * D])          # GLU over channels
    tpos = tpos_ref[...]                                     # (M, 1) local time index
    dw = wdw_ref[...]                                        # (K, D) depthwise taps
    acc = jnp.zeros((M, D), f32)
    for kk in range(K):                                      # depthwise conv over time
        sft = pad - kk                                       # tap reads glu[t - sft]
        if sft == 0:
            tap = glu
        else:
            rolled = pltpu.roll(glu, shift=sft % M, axis=0)  # circular sublane roll (XLU)
            valid = (tpos >= sft) & (tpos < T + sft)         # zero padding at seq edges
            tap = jnp.where(valid, rolled, 0.0)
        acc = acc + tap * dw[kk:kk + 1, :]
    dc = acc + vrow(B_DW, D)
    dc = dc * vrow(BN_S, D) + vrow(BN_B, D)                  # BatchNorm1d (eval), folded
    dc = swish(dc)
    x = res + mm(dc, wpw2_ref) + vrow(B_PW2, D)              # pointwise conv 2

    # ---------------- feed-forward: x = x + 0.5 * FF(LN(x)) ------------------------
    res = x
    xn = ln(x, G_FF, B_FF)
    h = swish(mm(xn, w1_ref) + vrow(B1, FF))
    x = res + 0.5 * (mm(h, w2_ref) + vrow(B2, D))

    # ---------------- final layer norm ---------------------------------------------
    o_ref[...] = ln(x, G_FIN, B_FIN)
    # TODO(synk): dropout / stochastic-depth RNG paths are training-only (eval semantics here).


def encoder_layer_add(x, mask, params, *, n_head, batch_tile=None):
    """x: (B, T, D) f32; mask: (B, 1, T) f32 in {0,1}.  Returns (B, T, D) f32."""
    B, T, D = x.shape
    FF = params["W1"].shape[1]
    K = params["Wdw"].shape[0]
    assert D % n_head == 0 and T % 8 == 0

    if batch_tile is None:
        # Enough sequences per grid step to give the token-wise matmuls >=128 rows
        # (MXU fill) while keeping the per-step VMEM footprint bounded.
        target = min(B, max(1, -(-128 // T)))
        batch_tile = max(bb for bb in range(1, target + 1) if B % bb == 0)
    BB = batch_tile
    assert B % BB == 0

    kernel = functools.partial(_encoder_layer_kernel, BB, T, D, FF, n_head, K)

    x2 = x.reshape(B * T, D)                          # lane-dense token matrix
    tpos = jnp.tile(jnp.arange(T, dtype=jnp.float32), B).reshape(B * T, 1)
    bf = lambda w: w.astype(jnp.bfloat16)             # MXU operands in bf16
    inputs = (x2, mask, tpos, params["vecs"],
              bf(params["W1m"]), bf(params["W2m"]), bf(params["Wqkv"]), bf(params["Wo"]),
              bf(params["Wpw1"]), bf(params["Wpw2"]), params["Wdw"],
              bf(params["W1"]), bf(params["W2"]))

    const2 = lambda i: (0, 0)
    in_specs = [
        pl.BlockSpec((BB * T, D), lambda i: (i, 0)),      # tokens of batch tile i
        pl.BlockSpec((BB, 1, T), lambda i: (i, 0, 0)),    # key mask
        pl.BlockSpec((BB * T, 1), lambda i: (i, 0)),      # local time index
    ] + [pl.BlockSpec(a.shape, const2) for a in inputs[3:]]   # packed vecs + weights

    out2 = pl.pallas_call(
        kernel,
        out_shape=jax.ShapeDtypeStruct((B * T, D), jnp.float32),
        grid=(B // BB,),
        in_specs=in_specs,
        out_specs=pl.BlockSpec((BB * T, D), lambda i: (i, 0)),
        scratch_shapes=[pltpu.VMEM((BB * T, D), jnp.float32)],   # per-head attn outputs
        compiler_params=pltpu.CompilerParams(
            dimension_semantics=("parallel",),
            vmem_limit_bytes=32 * 1024 * 1024),
    )(*inputs)
    return out2.reshape(B, T, D)


def make_params(key, D, FF, H, K):
    """Deterministic synthetic parameters.  Matmul weights are stored pre-transposed
    (in, out) vs PyTorch's (out, in); Wq/Wk/Wv are fused into one (D, 3D) weight; all
    per-feature vectors live in one packed (N_VEC, L) table."""
    ks = iter(jax.random.split(key, 32))

    def w(shape, scale=0.05):
        return (scale * jax.random.normal(next(ks), shape)).astype(jnp.float32)

    def v(n, scale=0.02):
        return (scale * jax.random.normal(next(ks), (n,))).astype(jnp.float32)

    ones = jnp.ones((D,), jnp.float32)
    zeros = jnp.zeros((D,), jnp.float32)

    # BatchNorm1d (eval): fold gamma/beta/running stats into a scale and a bias.
    bn_scale = ones / jnp.sqrt(ones + 1e-5)      # gamma=1, running_var=1
    bn_bias = zeros - zeros * bn_scale           # beta=0, running_mean=0

    L = max(D, FF, 2 * D, 3 * D)
    rows = {
        G_FFM: ones, B_FFM: zeros, B1M: v(FF), B2M: v(D),
        G_MHA: ones, B_MHA: zeros, B_QKV: v(3 * D), B_O: v(D),
        G_CV: ones, B_CV: zeros, B_PW1: v(2 * D), B_DW: v(D),
        BN_S: bn_scale, BN_B: bn_bias, B_PW2: v(D),
        G_FF: ones, B_FF: zeros, B1: v(FF), B2: v(D),
        G_FIN: ones, B_FIN: zeros,
    }
    vecs = jnp.zeros((N_VEC, L), jnp.float32)
    for r, val in rows.items():
        vecs = vecs.at[r, :val.shape[0]].set(val)

    return dict(
        vecs=vecs,
        W1m=w((D, FF)), W2m=w((FF, D)),
        Wqkv=w((D, 3 * D)), Wo=w((D, D)),
        Wpw1=w((D, 2 * D)), Wpw2=w((D, D)),
        Wdw=w((K, D), scale=0.2),
        W1=w((D, FF)), W2=w((FF, D)),
    )


if __name__ == "__main__":
    B, T, D = 2, 16, 128        # lane-dense feature dim; T multiple of 8
    H, FF, K = 4, 256, 7

    key = jax.random.PRNGKey(0)
    kx, kp = jax.random.split(key)
    x = jax.random.normal(kx, (B, T, D), dtype=jnp.float32)
    # mask: (B, 1, T) with 1 = valid frame; pad out the last 3 frames of element 1.
    mask = jnp.ones((B, 1, T), jnp.float32).at[1, 0, T - 3:].set(0.0)

    params = make_params(kp, D, FF, H, K)
    out = encoder_layer_add(x, mask, params, n_head=H)
    out = jax.block_until_ready(out)
    assert out.shape == (B, T, D) and out.dtype == jnp.float32
    assert bool(jnp.isfinite(out).all())
    print("KERNEL_OK")
</pallas_src>

<mosaic_0001>
module attributes {stable_mosaic.version = 11 : i64} {
  func.func @_encoder_layer_kernel(%arg0: i32, %arg1: memref<32x128xf32, #tpu.memory_space<vmem>>, %arg2: memref<2x1x16xf32, #tpu.memory_space<vmem>>, %arg3: memref<32x1xf32, #tpu.memory_space<vmem>>, %arg4: memref<21x384xf32, #tpu.memory_space<vmem>>, %arg5: memref<128x256xbf16, #tpu.memory_space<vmem>>, %arg6: memref<256x128xbf16, #tpu.memory_space<vmem>>, %arg7: memref<128x384xbf16, #tpu.memory_space<vmem>>, %arg8: memref<128x128xbf16, #tpu.memory_space<vmem>>, %arg9: memref<128x256xbf16, #tpu.memory_space<vmem>>, %arg10: memref<128x128xbf16, #tpu.memory_space<vmem>>, %arg11: memref<7x128xf32, #tpu.memory_space<vmem>>, %arg12: memref<128x256xbf16, #tpu.memory_space<vmem>>, %arg13: memref<256x128xbf16, #tpu.memory_space<vmem>>, %arg14: memref<32x128xf32, #tpu.memory_space<vmem>>, %arg15: memref<32x128xf32, #tpu.memory_space<vmem>>) attributes {dimension_semantics = [#tpu.dimension_semantics<parallel>], iteration_bounds = array<i64: 1>, scalar_prefetch = 0 : i64, scratch_operands = 1 : i64, tpu.core_type = #tpu.core_type<tc>, window_params = [{transform_indices = @transform_0, window_bounds = array<i64: 32, 128>}, {transform_indices = @transform_1, window_bounds = array<i64: 2, 1, 16>}, {transform_indices = @transform_2, window_bounds = array<i64: 32, 1>}, {pipeline_mode = #tpu.pipeline_mode<synchronous>, transform_indices = @transform_3, window_bounds = array<i64: 21, 384>}, {pipeline_mode = #tpu.pipeline_mode<synchronous>, transform_indices = @transform_4, window_bounds = array<i64: 128, 256>}, {pipeline_mode = #tpu.pipeline_mode<synchronous>, transform_indices = @transform_5, window_bounds = array<i64: 256, 128>}, {pipeline_mode = #tpu.pipeline_mode<synchronous>, transform_indices = @transform_6, window_bounds = array<i64: 128, 384>}, {pipeline_mode = #tpu.pipeline_mode<synchronous>, transform_indices = @transform_7, window_bounds = array<i64: 128, 128>}, {pipeline_mode = #tpu.pipeline_mode<synchronous>, transform_indices = @transform_8, window_bounds = array<i64: 128, 256>}, {pipeline_mode = #tpu.pipeline_mode<synchronous>, transform_indices = @transform_9, window_bounds = array<i64: 128, 128>}, {pipeline_mode = #tpu.pipeline_mode<synchronous>, transform_indices = @transform_10, window_bounds = array<i64: 7, 128>}, {pipeline_mode = #tpu.pipeline_mode<synchronous>, transform_indices = @transform_11, window_bounds = array<i64: 128, 256>}, {pipeline_mode = #tpu.pipeline_mode<synchronous>, transform_indices = @transform_12, window_bounds = array<i64: 256, 128>}, {transform_indices = @transform_13, window_bounds = array<i64: 32, 128>}]} {
    %c0 = arith.constant 0 : index
    %c0_0 = arith.constant 0 : index
    %0 = vector.load %arg1[%c0, %c0_0] : memref<32x128xf32, #tpu.memory_space<vmem>>, vector<32x128xf32>
    %cst = arith.constant dense<0.000000e+00> : vector<32xf32>
    %1 = vector.multi_reduction <add>, %0, %cst [1] : vector<32x128xf32> to vector<32xf32>
    %2 = vector.shape_cast %1 : vector<32xf32> to vector<32x1xf32>
    %cst_1 = arith.constant 1.280000e+02 : f32
    %3 = vector.broadcast %cst_1 : f32 to vector<32x1xf32>
    %4 = arith.divf %2, %3 : vector<32x1xf32>
    %5 = vector.broadcast %4 : vector<32x1xf32> to vector<32x128xf32>
    %6 = arith.subf %0, %5 : vector<32x128xf32>
    %7 = arith.mulf %6, %6 : vector<32x128xf32>
    %cst_2 = arith.constant dense<0.000000e+00> : vector<32xf32>
    %8 = vector.multi_reduction <add>, %7, %cst_2 [1] : vector<32x128xf32> to vector<32xf32>
    %9 = vector.shape_cast %8 : vector<32xf32> to vector<32x1xf32>
    %cst_3 = arith.constant 1.280000e+02 : f32
    %10 = vector.broadcast %cst_3 : f32 to vector<32x1xf32>
    %11 = arith.divf %9, %10 : vector<32x1xf32>
    %12 = vector.broadcast %4 : vector<32x1xf32> to vector<32x128xf32>
    %13 = arith.subf %0, %12 : vector<32x128xf32>
    %cst_4 = arith.constant 9.99999996E-13 : f32
    %14 = vector.broadcast %cst_4 : f32 to vector<32x1xf32>
    %15 = arith.addf %11, %14 : vector<32x1xf32>
    %16 = math.rsqrt %15 : vector<32x1xf32>
    %17 = vector.broadcast %16 : vector<32x1xf32> to vector<32x128xf32>
    %18 = arith.mulf %13, %17 : vector<32x128xf32>
    %c0_5 = arith.constant 0 : index
    %c0_6 = arith.constant 0 : index
    %19 = vector.load %arg4[%c0_5, %c0_6] : memref<21x384xf32, #tpu.memory_space<vmem>>, vector<1x128xf32>
    %20 = vector.broadcast %19 : vector<1x128xf32> to vector<32x128xf32>
    %21 = arith.mulf %18, %20 : vector<32x128xf32>
    %c1 = arith.constant 1 : index
    %c0_7 = arith.constant 0 : index
    %22 = vector.load %arg4[%c1, %c0_7] : memref<21x384xf32, #tpu.memory_space<vmem>>, vector<1x128xf32>
    %23 = vector.broadcast %22 : vector<1x128xf32> to vector<32x128xf32>
    %24 = arith.addf %21, %23 : vector<32x128xf32>
    %25 = arith.truncf %24 : vector<32x128xf32> to vector<32x128xbf16>
    %c0_8 = arith.constant 0 : index
    %c0_9 = arith.constant 0 : index
    %26 = vector.load %arg5[%c0_8, %c0_9] : memref<128x256xbf16, #tpu.memory_space<vmem>>, vector<128x256xbf16>
    %cst_10 = arith.constant dense<0.000000e+00> : vector<32x256xf32>
    %27 = tpu.matmul %25, %26, %cst_10 {dimension_numbers = #tpu.dot_dimension_numbers<[1], [0], [0], [1], [0, 0, 1, 1], [], []>} : vector<32x128xbf16>, vector<128x256xbf16>, vector<32x256xf32> -> vector<32x256xf32>
    %c2 = arith.constant 2 : index
    %c0_11 = arith.constant 0 : index
    %28 = vector.load %arg4[%c2, %c0_11] : memref<21x384xf32, #tpu.memory_space<vmem>>, vector<1x256xf32>
    %29 = vector.broadcast %28 : vector<1x256xf32> to vector<32x256xf32>
    %30 = arith.addf %27, %29 : vector<32x256xf32>
    %31 = arith.negf %30 : vector<32x256xf32>
    %32 = math.exp %31 : vector<32x256xf32>
    %cst_12 = arith.constant 1.000000e+00 : f32
    %33 = vector.broadcast %cst_12 : f32 to vector<32x256xf32>
    %34 = arith.addf %33, %32 : vector<32x256xf32>
    %35 = arith.divf %33, %34 : vector<32x256xf32>
    %36 = arith.mulf %30, %35 : vector<32x256xf32>
    %37 = arith.truncf %36 : vector<32x256xf32> to vector<32x256xbf16>
    %c0_13 = arith.constant 0 : index
    %c0_14 = arith.constant 0 : index
    %38 = vector.load %arg6[%c0_13, %c0_14] : memref<256x128xbf16, #tpu.memory_space<vmem>>, vector<256x128xbf16>
    %cst_15 = arith.constant dense<0.000000e+00> : vector<32x128xf32>
    %39 = tpu.matmul %37, %38, %cst_15 {dimension_numbers = #tpu.dot_dimension_numbers<[1], [0], [0], [1], [0, 0, 1, 1], [], []>} : vector<32x256xbf16>, vector<256x128xbf16>, vector<32x128xf32> -> vector<32x128xf32>
    %c3 = arith.constant 3 : index
    %c0_16 = arith.constant 0 : index
    %40 = vector.load %arg4[%c3, %c0_16] : memref<21x384xf32, #tpu.memory_space<vmem>>, vector<1x128xf32>
    %41 = vector.broadcast %40 : vector<1x128xf32> to vector<32x128xf32>
    %42 = arith.addf %39, %41 : vector<32x128xf32>
    %cst_17 = arith.constant 5.000000e-01 : f32
    %43 = vector.broadcast %cst_17 : f32 to vector<32x128xf32>
    %44 = arith.mulf %43, %42 : vector<32x128xf32>
    %45 = arith.addf %0, %44 : vector<32x128xf32>
    %cst_18 = arith.constant dense<0.000000e+00> : vector<32xf32>
    %46 = vector.multi_reduction <add>, %45, %cst_18 [1] : vector<32x128xf32> to vector<32xf32>
    %47 = vector.shape_cast %46 : vector<32xf32> to vector<32x1xf32>
    %cst_19 = arith.constant 1.280000e+02 : f32
    %48 = vector.broadcast %cst_19 : f32 to vector<32x1xf32>
    %49 = arith.divf %47, %48 : vector<32x1xf32>
    %50 = vector.broadcast %49 : vector<32x1xf32> to vector<32x128xf32>
    %51 = arith.subf %45, %50 : vector<32x128xf32>
    %52 = arith.mulf %51, %51 : vector<32x128xf32>
    %cst_20 = arith.constant dense<0.000000e+00> : vector<32xf32>
    %53 = vector.multi_reduction <add>, %52, %cst_20 [1] : vector<32x128xf32> to vector<32xf32>
    %54 = vector.shape_cast %53 : vector<32xf32> to vector<32x1xf32>
    %cst_21 = arith.constant 1.280000e+02 : f32
    %55 = vector.broadcast %cst_21 : f32 to vector<32x1xf32>
    %56 = arith.divf %54, %55 : vector<32x1xf32>
    %57 = vector.broadcast %49 : vector<32x1xf32> to vector<32x128xf32>
    %58 = arith.subf %45, %57 : vector<32x128xf32>
    %cst_22 = arith.constant 9.99999996E-13 : f32
    %59 = vector.broadcast %cst_22 : f32 to vector<32x1xf32>
    %60 = arith.addf %56, %59 : vector<32x1xf32>
    %61 = math.rsqrt %60 : vector<32x1xf32>
    %62 = vector.broadcast %61 : vector<32x1xf32> to vector<32x128xf32>
    %63 = arith.mulf %58, %62 : vector<32x128xf32>
    %c4 = arith.constant 4 : index
    %c0_23 = arith.constant 0 : index
    %64 = vector.load %arg4[%c4, %c0_23] : memref<21x384xf32, #tpu.memory_space<vmem>>, vector<1x128xf32>
    %65 = vector.broadcast %64 : vector<1x128xf32> to vector<32x128xf32>
    %66 = arith.mulf %63, %65 : vector<32x128xf32>
    %c5 = arith.constant 5 : index
    %c0_24 = arith.constant 0 : index
    %67 = vector.load %arg4[%c5, %c0_24] : memref<21x384xf32, #tpu.memory_space<vmem>>, vector<1x128xf32>
    %68 = vector.broadcast %67 : vector<1x128xf32> to vector<32x128xf32>
    %69 = arith.addf %66, %68 : vector<32x128xf32>
    %70 = arith.truncf %69 : vector<32x128xf32> to vector<32x128xbf16>
    %c0_25 = arith.constant 0 : index
    %c0_26 = arith.constant 0 : index
    %71 = vector.load %arg7[%c0_25, %c0_26] : memref<128x384xbf16, #tpu.memory_space<vmem>>, vector<128x384xbf16>
    %cst_27 = arith.constant dense<0.000000e+00> : vector<32x384xf32>
    %72 = tpu.matmul %70, %71, %cst_27 {dimension_numbers = #tpu.dot_dimension_numbers<[1], [0], [0], [1], [0, 0, 1, 1], [], []>} : vector<32x128xbf16>, vector<128x384xbf16>, vector<32x384xf32> -> vector<32x384xf32>
    %c6 = arith.constant 6 : index
    %c0_28 = arith.constant 0 : index
    %73 = vector.load %arg4[%c6, %c0_28] : memref<21x384xf32, #tpu.memory_space<vmem>>, vector<1x384xf32>
    %74 = vector.broadcast %73 : vector<1x384xf32> to vector<32x384xf32>
    %75 = arith.addf %72, %74 : vector<32x384xf32>
    %76 = arith.truncf %75 : vector<32x384xf32> to vector<32x384xbf16>
    %c0_29 = arith.constant 0 : index
    %c0_30 = arith.constant 0 : index
    %c0_31 = arith.constant 0 : index
    %77 = vector.load %arg2[%c0_29, %c0_30, %c0_31] : memref<2x1x16xf32, #tpu.memory_space<vmem>>, vector<1x1x16xf32>
    %78 = vector.shape_cast %77 : vector<1x1x16xf32> to vector<1x16xf32>
    %cst_32 = arith.constant 0.000000e+00 : f32
    %79 = vector.broadcast %cst_32 : f32 to vector<1x16xf32>
    %80 = arith.cmpf ogt, %78, %79 : vector<1x16xf32>
    %81 = vector.extract_strided_slice %76 {offsets = [0, 0], sizes = [16, 32], strides = [1, 1]} : vector<32x384xbf16> to vector<16x32xbf16>
    %82 = vector.extract_strided_slice %76 {offsets = [0, 128], sizes = [16, 32], strides = [1, 1]} : vector<32x384xbf16> to vector<16x32xbf16>
    %83 = vector.extract_strided_slice %76 {offsets = [0, 256], sizes = [16, 32], strides = [1, 1]} : vector<32x384xbf16> to vector<16x32xbf16>
    %cst_33 = arith.constant dense<0.000000e+00> : vector<16x16xf32>
    %84 = tpu.matmul %81, %82, %cst_33 {dimension_numbers = #tpu.dot_dimension_numbers<[1], [1], [0], [0], [0, 0, 1, 0], [], []>} : vector<16x32xbf16>, vector<16x32xbf16>, vector<16x16xf32> -> vector<16x16xf32>
    %cst_34 = arith.constant 0.176776692 : f32
    %85 = vector.broadcast %cst_34 : f32 to vector<16x16xf32>
    %86 = arith.mulf %84, %85 : vector<16x16xf32>
    %cst_35 = arith.constant -3.40282347E+38 : f32
    %87 = vector.shape_cast %80 : vector<1x16xi1> to vector<1x16xi1>
    %88 = vector.broadcast %87 : vector<1x16xi1> to vector<16x16xi1>
    %89 = vector.broadcast %cst_35 : f32 to vector<16x16xf32>
    %90 = arith.select %88, %86, %89 : vector<16x16xi1>, vector<16x16xf32>
    %cst_36 = arith.constant dense<0xFF800000> : vector<16xf32>
    %91 = vector.multi_reduction <maximumf>, %90, %cst_36 [1] : vector<16x16xf32> to vector<16xf32>
    %92 = vector.shape_cast %91 : vector<16xf32> to vector<16x1xf32>
    %93 = vector.broadcast %92 : vector<16x1xf32> to vector<16x16xf32>
    %94 = arith.subf %90, %93 : vector<16x16xf32>
    %95 = math.exp %94 : vector<16x16xf32>
    %cst_37 = arith.constant dense<0.000000e+00> : vector<16xf32>
    %96 = vector.multi_reduction <add>, %95, %cst_37 [1] : vector<16x16xf32> to vector<16xf32>
    %97 = vector.shape_cast %96 : vector<16xf32> to vector<16x1xf32>
    %98 = tpu.reciprocal %97 {approx = true} : vector<16x1xf32> -> vector<16x1xf32>
    %99 = vector.broadcast %98 : vector<16x1xf32> to vector<16x16xf32>
    %100 = arith.mulf %95, %99 : vector<16x16xf32>
    %cst_38 = arith.constant 0.000000e+00 : f32
    %101 = vector.shape_cast %80 : vector<1x16xi1> to vector<1x16xi1>
    %102 = vector.broadcast %101 : vector<1x16xi1> to vector<16x16xi1>
    %103 = vector.broadcast %cst_38 : f32 to vector<16x16xf32>
    %104 = arith.select %102, %100, %103 : vector<16x16xi1>, vector<16x16xf32>
    %105 = arith.truncf %104 : vector<16x16xf32> to vector<16x16xbf16>
    %cst_39 = arith.constant dense<0.000000e+00> : vector<16x32xf32>
    %106 = tpu.matmul %105, %83, %cst_39 {dimension_numbers = #tpu.dot_dimension_numbers<[1], [0], [0], [1], [0, 0, 1, 1], [], []>} : vector<16x16xbf16>, vector<16x32xbf16>, vector<16x32xf32> -> vector<16x32xf32>
    %c0_40 = arith.constant 0 : index
    %c0_41 = arith.constant 0 : index
    %107 = vector.load %arg15[%c0_40, %c0_41] : memref<32x128xf32, #tpu.memory_space<vmem>>, vector<16x32xf32>
    tpu.vector_store %arg15[%c0_40, %c0_41], %106 {strides = array<i32>} : memref<32x128xf32, #tpu.memory_space<vmem>>, vector<16x32xf32>,
    %108 = vector.extract_strided_slice %76 {offsets = [0, 32], sizes = [16, 32], strides = [1, 1]} : vector<32x384xbf16> to vector<16x32xbf16>
    %109 = vector.extract_strided_slice %76 {offsets = [0, 160], sizes = [16, 32], strides = [1, 1]} : vector<32x384xbf16> to vector<16x32xbf16>
    %110 = vector.extract_strided_slice %76 {offsets = [0, 288], sizes = [16, 32], strides = [1, 1]} : vector<32x384xbf16> to vector<16x32xbf16>
    %cst_42 = arith.constant dense<0.000000e+00> : vector<16x16xf32>
    %111 = tpu.matmul %108, %109, %cst_42 {dimension_numbers = #tpu.dot_dimension_numbers<[1], [1], [0], [0], [0, 0, 1, 0], [], []>} : vector<16x32xbf16>, vector<16x32xbf16>, vector<16x16xf32> -> vector<16x16xf32>
    %cst_43 = arith.constant 0.176776692 : f32
    %112 = vector.broadcast %cst_43 : f32 to vector<16x16xf32>
    %113 = arith.mulf %111, %112 : vector<16x16xf32>
    %cst_44 = arith.constant -3.40282347E+38 : f32
    %114 = vector.shape_cast %80 : vector<1x16xi1> to vector<1x16xi1>
    %115 = vector.broadcast %114 : vector<1x16xi1> to vector<16x16xi1>
    %116 = vector.broadcast %cst_44 : f32 to vector<16x16xf32>
    %117 = arith.select %115, %113, %116 : vector<16x16xi1>, vector<16x16xf32>
    %cst_45 = arith.constant dense<0xFF800000> : vector<16xf32>
    %118 = vector.multi_reduction <maximumf>, %117, %cst_45 [1] : vector<16x16xf32> to vector<16xf32>
    %119 = vector.shape_cast %118 : vector<16xf32> to vector<16x1xf32>
    %120 = vector.broadcast %119 : vector<16x1xf32> to vector<16x16xf32>
    %121 = arith.subf %117, %120 : vector<16x16xf32>
    %122 = math.exp %121 : vector<16x16xf32>
    %cst_46 = arith.constant dense<0.000000e+00> : vector<16xf32>
    %123 = vector.multi_reduction <add>, %122, %cst_46 [1] : vector<16x16xf32> to vector<16xf32>
    %124 = vector.shape_cast %123 : vector<16xf32> to vector<16x1xf32>
    %125 = tpu.reciprocal %124 {approx = true} : vector<16x1xf32> -> vector<16x1xf32>
    %126 = vector.broadcast %125 : vector<16x1xf32> to vector<16x16xf32>
    %127 = arith.mulf %122, %126 : vector<16x16xf32>
    %cst_47 = arith.constant 0.000000e+00 : f32
    %128 = vector.shape_cast %80 : vector<1x16xi1> to vector<1x16xi1>
    %129 = vector.broadcast %128 : vector<1x16xi1> to vector<16x16xi1>
    %130 = vector.broadcast %cst_47 : f32 to vector<16x16xf32>
    %131 = arith.select %129, %127, %130 : vector<16x16xi1>, vector<16x16xf32>
    %132 = arith.truncf %131 : vector<16x16xf32> to vector<16x16xbf16>
    %cst_48 = arith.constant dense<0.000000e+00> : vector<16x32xf32>
    %133 = tpu.matmul %132, %110, %cst_48 {dimension_numbers = #tpu.dot_dimension_numbers<[1], [0], [0], [1], [0, 0, 1, 1], [], []>} : vector<16x16xbf16>, vector<16x32xbf16>, vector<16x32xf32> -> vector<16x32xf32>
    %c0_49 = arith.constant 0 : index
    %c32 = arith.constant 32 : index
    %134 = vector.load %arg15[%c0_49, %c32] : memref<32x128xf32, #tpu.memory_space<vmem>>, vector<16x32xf32>
    tpu.vector_store %arg15[%c0_49, %c32], %133 {strides = array<i32>} : memref<32x128xf32, #tpu.memory_space<vmem>>, vector<16x32xf32>,
    %135 = vector.extract_strided_slice %76 {offsets = [0, 64], sizes = [16, 32], strides = [1, 1]} : vector<32x384xbf16> to vector<16x32xbf16>
    %136 = vector.extract_strided_slice %76 {offsets = [0, 192], sizes = [16, 32], strides = [1, 1]} : vector<32x384xbf16> to vector<16x32xbf16>
    %137 = vector.extract_strided_slice %76 {offsets = [0, 320], sizes = [16, 32], strides = [1, 1]} : vector<32x384xbf16> to vector<16x32xbf16>
    %cst_50 = arith.constant dense<0.000000e+00> : vector<16x16xf32>
    %138 = tpu.matmul %135, %136, %cst_50 {dimension_numbers = #tpu.dot_dimension_numbers<[1], [1], [0], [0], [0, 0, 1, 0], [], []>} : vector<16x32xbf16>, vector<16x32xbf16>, vector<16x16xf32> -> vector<16x16xf32>
    %cst_51 = arith.constant 0.176776692 : f32
    %139 = vector.broadcast %cst_51 : f32 to vector<16x16xf32>
    %140 = arith.mulf %138, %139 : vector<16x16xf32>
    %cst_52 = arith.constant -3.40282347E+38 : f32
    %141 = vector.shape_cast %80 : vector<1x16xi1> to vector<1x16xi1>
    %142 = vector.broadcast %141 : vector<1x16xi1> to vector<16x16xi1>
    %143 = vector.broadcast %cst_52 : f32 to vector<16x16xf32>
    %144 = arith.select %142, %140, %143 : vector<16x16xi1>, vector<16x16xf32>
    %cst_53 = arith.constant dense<0xFF800000> : vector<16xf32>
    %145 = vector.multi_reduction <maximumf>, %144, %cst_53 [1] : vector<16x16xf32> to vector<16xf32>
    %146 = vector.shape_cast %145 : vector<16xf32> to vector<16x1xf32>
    %147 = vector.broadcast %146 : vector<16x1xf32> to vector<16x16xf32>
    %148 = arith.subf %144, %147 : vector<16x16xf32>
    %149 = math.exp %148 : vector<16x16xf32>
    %cst_54 = arith.constant dense<0.000000e+00> : vector<16xf32>
    %150 = vector.multi_reduction <add>, %149, %cst_54 [1] : vector<16x16xf32> to vector<16xf32>
    %151 = vector.shape_cast %150 : vector<16xf32> to vector<16x1xf32>
    %152 = tpu.reciprocal %151 {approx = true} : vector<16x1xf32> -> vector<16x1xf32>
    %153 = vector.broadcast %152 : vector<16x1xf32> to vector<16x16xf32>
    %154 = arith.mulf %149, %153 : vector<16x16xf32>
    %cst_55 = arith.constant 0.000000e+00 : f32
    %155 = vector.shape_cast %80 : vector<1x16xi1> to vector<1x16xi1>
    %156 = vector.broadcast %155 : vector<1x16xi1> to vector<16x16xi1>
    %157 = vector.broadcast %cst_55 : f32 to vector<16x16xf32>
    %158 = arith.select %156, %154, %157 : vector<16x16xi1>, vector<16x16xf32>
    %159 = arith.truncf %158 : vector<16x16xf32> to vector<16x16xbf16>
    %cst_56 = arith.constant dense<0.000000e+00> : vector<16x32xf32>
    %160 = tpu.matmul %159, %137, %cst_56 {dimension_numbers = #tpu.dot_dimension_numbers<[1], [0], [0], [1], [0, 0, 1, 1], [], []>} : vector<16x16xbf16>, vector<16x32xbf16>, vector<16x32xf32> -> vector<16x32xf32>
    %c0_57 = arith.constant 0 : index
    %c64 = arith.constant 64 : index
    %161 = vector.load %arg15[%c0_57, %c64] : memref<32x128xf32, #tpu.memory_space<vmem>>, vector<16x32xf32>
    tpu.vector_store %arg15[%c0_57, %c64], %160 {strides = array<i32>} : memref<32x128xf32, #tpu.memory_space<vmem>>, vector<16x32xf32>,
    %162 = vector.extract_strided_slice %76 {offsets = [0, 96], sizes = [16, 32], strides = [1, 1]} : vector<32x384xbf16> to vector<16x32xbf16>
    %163 = vector.extract_strided_slice %76 {offsets = [0, 224], sizes = [16, 32], strides = [1, 1]} : vector<32x384xbf16> to vector<16x32xbf16>
    %164 = vector.extract_strided_slice %76 {offsets = [0, 352], sizes = [16, 32], strides = [1, 1]} : vector<32x384xbf16> to vector<16x32xbf16>
    %cst_58 = arith.constant dense<0.000000e+00> : vector<16x16xf32>
    %165 = tpu.matmul %162, %163, %cst_58 {dimension_numbers = #tpu.dot_dimension_numbers<[1], [1], [0], [0], [0, 0, 1, 0], [], []>} : vector<16x32xbf16>, vector<16x32xbf16>, vector<16x16xf32> -> vector<16x16xf32>
    %cst_59 = arith.constant 0.176776692 : f32
    %166 = vector.broadcast %cst_59 : f32 to vector<16x16xf32>
    %167 = arith.mulf %165, %166 : vector<16x16xf32>
    %cst_60 = arith.constant -3.40282347E+38 : f32
    %168 = vector.shape_cast %80 : vector<1x16xi1> to vector<1x16xi1>
    %169 = vector.broadcast %168 : vector<1x16xi1> to vector<16x16xi1>
    %170 = vector.broadcast %cst_60 : f32 to vector<16x16xf32>
    %171 = arith.select %169, %167, %170 : vector<16x16xi1>, vector<16x16xf32>
    %cst_61 = arith.constant dense<0xFF800000> : vector<16xf32>
    %172 = vector.multi_reduction <maximumf>, %171, %cst_61 [1] : vector<16x16xf32> to vector<16xf32>
    %173 = vector.shape_cast %172 : vector<16xf32> to vector<16x1xf32>
    %174 = vector.broadcast %173 : vector<16x1xf32> to vector<16x16xf32>
    %175 = arith.subf %171, %174 : vector<16x16xf32>
    %176 = math.exp %175 : vector<16x16xf32>
    %cst_62 = arith.constant dense<0.000000e+00> : vector<16xf32>
    %177 = vector.multi_reduction <add>, %176, %cst_62 [1] : vector<16x16xf32> to vector<16xf32>
    %178 = vector.shape_cast %177 : vector<16xf32> to vector<16x1xf32>
    %179 = tpu.reciprocal %178 {approx = true} : vector<16x1xf32> -> vector<16x1xf32>
    %180 = vector.broadcast %179 : vector<16x1xf32> to vector<16x16xf32>
    %181 = arith.mulf %176, %180 : vector<16x16xf32>
    %cst_63 = arith.constant 0.000000e+00 : f32
    %182 = vector.shape_cast %80 : vector<1x16xi1> to vector<1x16xi1>
    %183 = vector.broadcast %182 : vector<1x16xi1> to vector<16x16xi1>
    %184 = vector.broadcast %cst_63 : f32 to vector<16x16xf32>
    %185 = arith.select %183, %181, %184 : vector<16x16xi1>, vector<16x16xf32>
    %186 = arith.truncf %185 : vector<16x16xf32> to vector<16x16xbf16>
    %cst_64 = arith.constant dense<0.000000e+00> : vector<16x32xf32>
    %187 = tpu.matmul %186, %164, %cst_64 {dimension_numbers = #tpu.dot_dimension_numbers<[1], [0], [0], [1], [0, 0, 1, 1], [], []>} : vector<16x16xbf16>, vector<16x32xbf16>, vector<16x32xf32> -> vector<16x32xf32>
    %c0_65 = arith.constant 0 : index
    %c96 = arith.constant 96 : index
    %188 = vector.load %arg15[%c0_65, %c96] : memref<32x128xf32, #tpu.memory_space<vmem>>, vector<16x32xf32>
    tpu.vector_store %arg15[%c0_65, %c96], %187 {strides = array<i32>} : memref<32x128xf32, #tpu.memory_space<vmem>>, vector<16x32xf32>,
    %c1_66 = arith.constant 1 : index
    %c0_67 = arith.constant 0 : index
    %c0_68 = arith.constant 0 : index
    %189 = vector.load %arg2[%c1_66, %c0_67, %c0_68] : memref<2x1x16xf32, #tpu.memory_space<vmem>>, vector<1x1x16xf32>
    %190 = vector.shape_cast %189 : vector<1x1x16xf32> to vector<1x16xf32>
    %cst_69 = arith.constant 0.000000e+00 : f32
    %191 = vector.broadcast %cst_69 : f32 to vector<1x16xf32>
    %192 = arith.cmpf ogt, %190, %191 : vector<1x16xf32>
    %193 = vector.extract_strided_slice %76 {offsets = [16, 0], sizes = [16, 32], strides = [1, 1]} : vector<32x384xbf16> to vector<16x32xbf16>
    %194 = vector.extract_strided_slice %76 {offsets = [16, 128], sizes = [16, 32], strides = [1, 1]} : vector<32x384xbf16> to vector<16x32xbf16>
    %195 = vector.extract_strided_slice %76 {offsets = [16, 256], sizes = [16, 32], strides = [1, 1]} : vector<32x384xbf16> to vector<16x32xbf16>
    %cst_70 = arith.constant dense<0.000000e+00> : vector<16x16xf32>
    %196 = tpu.matmul %193, %194, %cst_70 {dimension_numbers = #tpu.dot_dimension_numbers<[1], [1], [0], [0], [0, 0, 1, 0], [], []>} : vector<16x32xbf16>, vector<16x32xbf16>, vector<16x16xf32> -> vector<16x16xf32>
    %cst_71 = arith.constant 0.176776692 : f32
    %197 = vector.broadcast %cst_71 : f32 to vector<16x16xf32>
    %198 = arith.mulf %196, %197 : vector<16x16xf32>
    %cst_72 = arith.constant -3.40282347E+38 : f32
    %199 = vector.shape_cast %192 : vector<1x16xi1> to vector<1x16xi1>
    %200 = vector.broadcast %199 : vector<1x16xi1> to vector<16x16xi1>
    %201 = vector.broadcast %cst_72 : f32 to vector<16x16xf32>
    %202 = arith.select %200, %198, %201 : vector<16x16xi1>, vector<16x16xf32>
    %cst_73 = arith.constant dense<0xFF800000> : vector<16xf32>
    %203 = vector.multi_reduction <maximumf>, %202, %cst_73 [1] : vector<16x16xf32> to vector<16xf32>
    %204 = vector.shape_cast %203 : vector<16xf32> to vector<16x1xf32>
    %205 = vector.broadcast %204 : vector<16x1xf32> to vector<16x16xf32>
    %206 = arith.subf %202, %205 : vector<16x16xf32>
    %207 = math.exp %206 : vector<16x16xf32>
    %cst_74 = arith.constant dense<0.000000e+00> : vector<16xf32>
    %208 = vector.multi_reduction <add>, %207, %cst_74 [1] : vector<16x16xf32> to vector<16xf32>
    %209 = vector.shape_cast %208 : vector<16xf32> to vector<16x1xf32>
    %210 = tpu.reciprocal %209 {approx = true} : vector<16x1xf32> -> vector<16x1xf32>
    %211 = vector.broadcast %210 : vector<16x1xf32> to vector<16x16xf32>
    %212 = arith.mulf %207, %211 : vector<16x16xf32>
    %cst_75 = arith.constant 0.000000e+00 : f32
    %213 = vector.shape_cast %192 : vector<1x16xi1> to vector<1x16xi1>
    %214 = vector.broadcast %213 : vector<1x16xi1> to vector<16x16xi1>
    %215 = vector.broadcast %cst_75 : f32 to vector<16x16xf32>
    %216 = arith.select %214, %212, %215 : vector<16x16xi1>, vector<16x16xf32>
    %217 = arith.truncf %216 : vector<16x16xf32> to vector<16x16xbf16>
    %cst_76 = arith.constant dense<0.000000e+00> : vector<16x32xf32>
    %218 = tpu.matmul %217, %195, %cst_76 {dimension_numbers = #tpu.dot_dimension_numbers<[1], [0], [0], [1], [0, 0, 1, 1], [], []>} : vector<16x16xbf16>, vector<16x32xbf16>, vector<16x32xf32> -> vector<16x32xf32>
    %c16 = arith.constant 16 : index
    %c0_77 = arith.constant 0 : index
    %219 = vector.load %arg15[%c16, %c0_77] : memref<32x128xf32, #tpu.memory_space<vmem>>, vector<16x32xf32>
    tpu.vector_store %arg15[%c16, %c0_77], %218 {strides = array<i32>} : memref<32x128xf32, #tpu.memory_space<vmem>>, vector<16x32xf32>,
    %220 = vector.extract_strided_slice %76 {offsets = [16, 32], sizes = [16, 32], strides = [1, 1]} : vector<32x384xbf16> to vector<16x32xbf16>
    %221 = vector.extract_strided_slice %76 {offsets = [16, 160], sizes = [16, 32], strides = [1, 1]} : vector<32x384xbf16> to vector<16x32xbf16>
    %222 = vector.extract_strided_slice %76 {offsets = [16, 288], sizes = [16, 32], strides = [1, 1]} : vector<32x384xbf16> to vector<16x32xbf16>
    %cst_78 = arith.constant dense<0.000000e+00> : vector<16x16xf32>
    %223 = tpu.matmul %220, %221, %cst_78 {dimension_numbers = #tpu.dot_dimension_numbers<[1], [1], [0], [0], [0, 0, 1, 0], [], []>} : vector<16x32xbf16>, vector<16x32xbf16>, vector<16x16xf32> -> vector<16x16xf32>
    %cst_79 = arith.constant 0.176776692 : f32
    %224 = vector.broadcast %cst_79 : f32 to vector<16x16xf32>
    %225 = arith.mulf %223, %224 : vector<16x16xf32>
    %cst_80 = arith.constant -3.40282347E+38 : f32
    %226 = vector.shape_cast %192 : vector<1x16xi1> to vector<1x16xi1>
    %227 = vector.broadcast %226 : vector<1x16xi1> to vector<16x16xi1>
    %228 = vector.broadcast %cst_80 : f32 to vector<16x16xf32>
    %229 = arith.select %227, %225, %228 : vector<16x16xi1>, vector<16x16xf32>
    %cst_81 = arith.constant dense<0xFF800000> : vector<16xf32>
    %230 = vector.multi_reduction <maximumf>, %229, %cst_81 [1] : vector<16x16xf32> to vector<16xf32>
    %231 = vector.shape_cast %230 : vector<16xf32> to vector<16x1xf32>
    %232 = vector.broadcast %231 : vector<16x1xf32> to vector<16x16xf32>
    %233 = arith.subf %229, %232 : vector<16x16xf32>
    %234 = math.exp %233 : vector<16x16xf32>
    %cst_82 = arith.constant dense<0.000000e+00> : vector<16xf32>
    %235 = vector.multi_reduction <add>, %234, %cst_82 [1] : vector<16x16xf32> to vector<16xf32>
    %236 = vector.shape_cast %235 : vector<16xf32> to vector<16x1xf32>
    %237 = tpu.reciprocal %236 {approx = true} : vector<16x1xf32> -> vector<16x1xf32>
    %238 = vector.broadcast %237 : vector<16x1xf32> to vector<16x16xf32>
    %239 = arith.mulf %234, %238 : vector<16x16xf32>
    %cst_83 = arith.constant 0.000000e+00 : f32
    %240 = vector.shape_cast %192 : vector<1x16xi1> to vector<1x16xi1>
    %241 = vector.broadcast %240 : vector<1x16xi1> to vector<16x16xi1>
    %242 = vector.broadcast %cst_83 : f32 to vector<16x16xf32>
    %243 = arith.select %241, %239, %242 : vector<16x16xi1>, vector<16x16xf32>
    %244 = arith.truncf %243 : vector<16x16xf32> to vector<16x16xbf16>
    %cst_84 = arith.constant dense<0.000000e+00> : vector<16x32xf32>
    %245 = tpu.matmul %244, %222, %cst_84 {dimension_numbers = #tpu.dot_dimension_numbers<[1], [0], [0], [1], [0, 0, 1, 1], [], []>} : vector<16x16xbf16>, vector<16x32xbf16>, vector<16x32xf32> -> vector<16x32xf32>
    %c16_85 = arith.constant 16 : index
    %c32_86 = arith.constant 32 : index
    %246 = vector.load %arg15[%c16_85, %c32_86] : memref<32x128xf32, #tpu.memory_space<vmem>>, vector<16x32xf32>
    tpu.vector_store %arg15[%c16_85, %c32_86], %245 {strides = array<i32>} : memref<32x128xf32, #tpu.memory_space<vmem>>, vector<16x32xf32>,
    %247 = vector.extract_strided_slice %76 {offsets = [16, 64], sizes = [16, 32], strides = [1, 1]} : vector<32x384xbf16> to vector<16x32xbf16>
    %248 = vector.extract_strided_slice %76 {offsets = [16, 192], sizes = [16, 32], strides = [1, 1]} : vector<32x384xbf16> to vector<16x32xbf16>
    %249 = vector.extract_strided_slice %76 {offsets = [16, 320], sizes = [16, 32], strides = [1, 1]} : vector<32x384xbf16> to vector<16x32xbf16>
    %cst_87 = arith.constant dense<0.000000e+00> : vector<16x16xf32>
    %250 = tpu.matmul %247, %248, %cst_87 {dimension_numbers = #tpu.dot_dimension_numbers<[1], [1], [0], [0], [0, 0, 1, 0], [], []>} : vector<16x32xbf16>, vector<16x32xbf16>, vector<16x16xf32> -> vector<16x16xf32>
    %cst_88 = arith.constant 0.176776692 : f32
    %251 = vector.broadcast %cst_88 : f32 to vector<16x16xf32>
    %252 = arith.mulf %250, %251 : vector<16x16xf32>
    %cst_89 = arith.constant -3.40282347E+38 : f32
    %253 = vector.shape_cast %192 : vector<1x16xi1> to vector<1x16xi1>
    %254 = vector.broadcast %253 : vector<1x16xi1> to vector<16x16xi1>
    %255 = vector.broadcast %cst_89 : f32 to vector<16x16xf32>
    %256 = arith.select %254, %252, %255 : vector<16x16xi1>, vector<16x16xf32>
    %cst_90 = arith.constant dense<0xFF800000> : vector<16xf32>
    %257 = vector.multi_reduction <maximumf>, %256, %cst_90 [1] : vector<16x16xf32> to vector<16xf32>
    %258 = vector.shape_cast %257 : vector<16xf32> to vector<16x1xf32>
    %259 = vector.broadcast %258 : vector<16x1xf32> to vector<16x16xf32>
    %260 = arith.subf %256, %259 : vector<16x16xf32>
    %261 = math.exp %260 : vector<16x16xf32>
    %cst_91 = arith.constant dense<0.000000e+00> : vector<16xf32>
    %262 = vector.multi_reduction <add>, %261, %cst_91 [1] : vector<16x16xf32> to vector<16xf32>
    %263 = vector.shape_cast %262 : vector<16xf32> to vector<16x1xf32>
    %264 = tpu.reciprocal %263 {approx = true} : vector<16x1xf32> -> vector<16x1xf32>
    %265 = vector.broadcast %264 : vector<16x1xf32> to vector<16x16xf32>
    %266 = arith.mulf %261, %265 : vector<16x16xf32>
    %cst_92 = arith.constant 0.000000e+00 : f32
    %267 = vector.shape_cast %192 : vector<1x16xi1> to vector<1x16xi1>
    %268 = vector.broadcast %267 : vector<1x16xi1> to vector<16x16xi1>
    %269 = vector.broadcast %cst_92 : f32 to vector<16x16xf32>
    %270 = arith.select %268, %266, %269 : vector<16x16xi1>, vector<16x16xf32>
    %271 = arith.truncf %270 : vector<16x16xf32> to vector<16x16xbf16>
    %cst_93 = arith.constant dense<0.000000e+00> : vector<16x32xf32>
    %272 = tpu.matmul %271, %249, %cst_93 {dimension_numbers = #tpu.dot_dimension_numbers<[1], [0], [0], [1], [0, 0, 1, 1], [], []>} : vector<16x16xbf16>, vector<16x32xbf16>, vector<16x32xf32> -> vector<16x32xf32>
    %c16_94 = arith.constant 16 : index
    %c64_95 = arith.constant 64 : index
    %273 = vector.load %arg15[%c16_94, %c64_95] : memref<32x128xf32, #tpu.memory_space<vmem>>, vector<16x32xf32>
    tpu.vector_store %arg15[%c16_94, %c64_95], %272 {strides = array<i32>} : memref<32x128xf32, #tpu.memory_space<vmem>>, vector<16x32xf32>,
    %274 = vector.extract_strided_slice %76 {offsets = [16, 96], sizes = [16, 32], strides = [1, 1]} : vector<32x384xbf16> to vector<16x32xbf16>
    %275 = vector.extract_strided_slice %76 {offsets = [16, 224], sizes = [16, 32], strides = [1, 1]} : vector<32x384xbf16> to vector<16x32xbf16>
    %276 = vector.extract_strided_slice %76 {offsets = [16, 352], sizes = [16, 32], strides = [1, 1]} : vector<32x384xbf16> to vector<16x32xbf16>
    %cst_96 = arith.constant dense<0.000000e+00> : vector<16x16xf32>
    %277 = tpu.matmul %274, %275, %cst_96 {dimension_numbers = #tpu.dot_dimension_numbers<[1], [1], [0], [0], [0, 0, 1, 0], [], []>} : vector<16x32xbf16>, vector<16x32xbf16>, vector<16x16xf32> -> vector<16x16xf32>
    %cst_97 = arith.constant 0.176776692 : f32
    %278 = vector.broadcast %cst_97 : f32 to vector<16x16xf32>
    %279 = arith.mulf %277, %278 : vector<16x16xf32>
    %cst_98 = arith.constant -3.40282347E+38 : f32
    %280 = vector.shape_cast %192 : vector<1x16xi1> to vector<1x16xi1>
    %281 = vector.broadcast %280 : vector<1x16xi1> to vector<16x16xi1>
    %282 = vector.broadcast %cst_98 : f32 to vector<16x16xf32>
    %283 = arith.select %281, %279, %282 : vector<16x16xi1>, vector<16x16xf32>
    %cst_99 = arith.constant dense<0xFF800000> : vector<16xf32>
    %284 = vector.multi_reduction <maximumf>, %283, %cst_99 [1] : vector<16x16xf32> to vector<16xf32>
    %285 = vector.shape_cast %284 : vector<16xf32> to vector<16x1xf32>
    %286 = vector.broadcast %285 : vector<16x1xf32> to vector<16x16xf32>
    %287 = arith.subf %283, %286 : vector<16x16xf32>
    %288 = math.exp %287 : vector<16x16xf32>
    %cst_100 = arith.constant dense<0.000000e+00> : vector<16xf32>
    %289 = vector.multi_reduction <add>, %288, %cst_100 [1] : vector<16x16xf32> to vector<16xf32>
    %290 = vector.shape_cast %289 : vector<16xf32> to vector<16x1xf32>
    %291 = tpu.reciprocal %290 {approx = true} : vector<16x1xf32> -> vector<16x1xf32>
    %292 = vector.broadcast %291 : vector<16x1xf32> to vector<16x16xf32>
    %293 = arith.mulf %288, %292 : vector<16x16xf32>
    %cst_101 = arith.constant 0.000000e+00 : f32
    %294 = vector.shape_cast %192 : vector<1x16xi1> to vector<1x16xi1>
    %295 = vector.broadcast %294 : vector<1x16xi1> to vector<16x16xi1>
    %296 = vector.broadcast %cst_101 : f32 to vector<16x16xf32>
    %297 = arith.select %295, %293, %296 : vector<16x16xi1>, vector<16x16xf32>
    %298 = arith.truncf %297 : vector<16x16xf32> to vector<16x16xbf16>
    %cst_102 = arith.constant dense<0.000000e+00> : vector<16x32xf32>
    %299 = tpu.matmul %298, %276, %cst_102 {dimension_numbers = #tpu.dot_dimension_numbers<[1], [0], [0], [1], [0, 0, 1, 1], [], []>} : vector<16x16xbf16>, vector<16x32xbf16>, vector<16x32xf32> -> vector<16x32xf32>
    %c16_103 = arith.constant 16 : index
    %c96_104 = arith.constant 96 : index
    %300 = vector.load %arg15[%c16_103, %c96_104] : memref<32x128xf32, #tpu.memory_space<vmem>>, vector<16x32xf32>
    tpu.vector_store %arg15[%c16_103, %c96_104], %299 {strides = array<i32>} : memref<32x128xf32, #tpu.memory_space<vmem>>, vector<16x32xf32>,
    %c0_105 = arith.constant 0 : index
    %c0_106 = arith.constant 0 : index
    %301 = vector.load %arg15[%c0_105, %c0_106] : memref<32x128xf32, #tpu.memory_space<vmem>>, vector<32x128xf32>
    %302 = arith.truncf %301 : vector<32x128xf32> to vector<32x128xbf16>
    %c0_107 = arith.constant 0 : index
    %c0_108 = arith.constant 0 : index
    %303 = vector.load %arg8[%c0_107, %c0_108] : memref<128x128xbf16, #tpu.memory_space<vmem>>, vector<128x128xbf16>
    %cst_109 = arith.constant dense<0.000000e+00> : vector<32x128xf32>
    %304 = tpu.matmul %302, %303, %cst_109 {dimension_numbers = #tpu.dot_dimension_numbers<[1], [0], [0], [1], [0, 0, 1, 1], [], []>} : vector<32x128xbf16>, vector<128x128xbf16>, vector<32x128xf32> -> vector<32x128xf32>
    %305 = arith.addf %45, %304 : vector<32x128xf32>
    %c7 = arith.constant 7 : index
    %c0_110 = arith.constant 0 : index
    %306 = vector.load %arg4[%c7, %c0_110] : memref<21x384xf32, #tpu.memory_space<vmem>>, vector<1x128xf32>
    %307 = vector.broadcast %306 : vector<1x128xf32> to vector<32x128xf32>
    %308 = arith.addf %305, %307 : vector<32x128xf32>
    %cst_111 = arith.constant dense<0.000000e+00> : vector<32xf32>
    %309 = vector.multi_reduction <add>, %308, %cst_111 [1] : vector<32x128xf32> to vector<32xf32>
    %310 = vector.shape_cast %309 : vector<32xf32> to vector<32x1xf32>
    %cst_112 = arith.constant 1.280000e+02 : f32
    %311 = vector.broadcast %cst_112 : f32 to vector<32x1xf32>
    %312 = arith.divf %310, %311 : vector<32x1xf32>
    %313 = vector.broadcast %312 : vector<32x1xf32> to vector<32x128xf32>
    %314 = arith.subf %308, %313 : vector<32x128xf32>
    %315 = arith.mulf %314, %314 : vector<32x128xf32>
    %cst_113 = arith.constant dense<0.000000e+00> : vector<32xf32>
    %316 = vector.multi_reduction <add>, %315, %cst_113 [1] : vector<32x128xf32> to vector<32xf32>
    %317 = vector.shape_cast %316 : vector<32xf32> to vector<32x1xf32>
    %cst_114 = arith.constant 1.280000e+02 : f32
    %318 = vector.broadcast %cst_114 : f32 to vector<32x1xf32>
    %319 = arith.divf %317, %318 : vector<32x1xf32>
    %320 = vector.broadcast %312 : vector<32x1xf32> to vector<32x128xf32>
    %321 = arith.subf %308, %320 : vector<32x128xf32>
    %cst_115 = arith.constant 9.99999996E-13 : f32
    %322 = vector.broadcast %cst_115 : f32 to vector<32x1xf32>
    %323 = arith.addf %319, %322 : vector<32x1xf32>
    %324 = math.rsqrt %323 : vector<32x1xf32>
    %325 = vector.broadcast %324 : vector<32x1xf32> to vector<32x128xf32>
    %326 = arith.mulf %321, %325 : vector<32x128xf32>
    %c8 = arith.constant 8 : index
    %c0_116 = arith.constant 0 : index
    %327 = vector.load %arg4[%c8, %c0_116] : memref<21x384xf32, #tpu.memory_space<vmem>>, vector<1x128xf32>
    %328 = vector.broadcast %327 : vector<1x128xf32> to vector<32x128xf32>
    %329 = arith.mulf %326, %328 : vector<32x128xf32>
    %c9 = arith.constant 9 : index
    %c0_117 = arith.constant 0 : index
    %330 = vector.load %arg4[%c9, %c0_117] : memref<21x384xf32, #tpu.memory_space<vmem>>, vector<1x128xf32>
    %331 = vector.broadcast %330 : vector<1x128xf32> to vector<32x128xf32>
    %332 = arith.addf %329, %331 : vector<32x128xf32>
    %333 = arith.truncf %332 : vector<32x128xf32> to vector<32x128xbf16>
    %c0_118 = arith.constant 0 : index
    %c0_119 = arith.constant 0 : index
    %334 = vector.load %arg9[%c0_118, %c0_119] : memref<128x256xbf16, #tpu.memory_space<vmem>>, vector<128x256xbf16>
    %cst_120 = arith.constant dense<0.000000e+00> : vector<32x256xf32>
    %335 = tpu.matmul %333, %334, %cst_120 {dimension_numbers = #tpu.dot_dimension_numbers<[1], [0], [0], [1], [0, 0, 1, 1], [], []>} : vector<32x128xbf16>, vector<128x256xbf16>, vector<32x256xf32> -> vector<32x256xf32>
    %c10 = arith.constant 10 : index
    %c0_121 = arith.constant 0 : index
    %336 = vector.load %arg4[%c10, %c0_121] : memref<21x384xf32, #tpu.memory_space<vmem>>, vector<1x256xf32>
    %337 = vector.broadcast %336 : vector<1x256xf32> to vector<32x256xf32>
    %338 = arith.addf %335, %337 : vector<32x256xf32>
    %339 = vector.extract_strided_slice %338 {offsets = [0, 0], sizes = [32, 128], strides = [1, 1]} : vector<32x256xf32> to vector<32x128xf32>
    %340 = vector.extract_strided_slice %338 {offsets = [0, 128], sizes = [32, 128], strides = [1, 1]} : vector<32x256xf32> to vector<32x128xf32>
    %341 = arith.negf %340 : vector<32x128xf32>
    %342 = math.exp %341 : vector<32x128xf32>
    %cst_122 = arith.constant 1.000000e+00 : f32
    %343 = vector.broadcast %cst_122 : f32 to vector<32x128xf32>
    %344 = arith.addf %343, %342 : vector<32x128xf32>
    %345 = arith.divf %343, %344 : vector<32x128xf32>
    %346 = arith.mulf %339, %345 : vector<32x128xf32>
    %c0_123 = arith.constant 0 : index
    %c0_124 = arith.constant 0 : index
    %347 = vector.load %arg3[%c0_123, %c0_124] : memref<32x1xf32, #tpu.memory_space<vmem>>, vector<32x1xf32>
    %c0_125 = arith.constant 0 : index
    %c0_126 = arith.constant 0 : index
    %348 = vector.load %arg11[%c0_125, %c0_126] : memref<7x128xf32, #tpu.memory_space<vmem>>, vector<7x128xf32>
    %cst_127 = arith.constant 0.000000e+00 : f32
    %349 = vector.broadcast %cst_127 : f32 to vector<32x128xf32>
    %c3_i32 = arith.constant 3 : i32
    %350 = tpu.dynamic_rotate %346 by %c3_i32 dim 0 : vector<32x128xf32>, i32 -> vector<32x128xf32>
    %cst_128 = arith.constant 3.000000e+00 : f32
    %351 = vector.broadcast %cst_128 : f32 to vector<32x1xf32>
    %352 = arith.cmpf oge, %347, %351 : vector<32x1xf32>
    %cst_129 = arith.constant 1.900000e+01 : f32
    %353 = vector.broadcast %cst_129 : f32 to vector<32x1xf32>
    %354 = arith.cmpf olt, %347, %353 : vector<32x1xf32>
    %355 = arith.andi %352, %354 : vector<32x1xi1>
    %cst_130 = arith.constant 0.000000e+00 : f32
    %356 = vector.shape_cast %355 : vector<32x1xi1> to vector<32x1xi1>
    %357 = vector.broadcast %356 : vector<32x1xi1> to vector<32x128xi1>
    %358 = vector.broadcast %cst_130 : f32 to vector<32x128xf32>
    %359 = arith.select %357, %350, %358 : vector<32x128xi1>, vector<32x128xf32>
    %360 = vector.extract_strided_slice %348 {offsets = [0, 0], sizes = [1, 128], strides = [1, 1]} : vector<7x128xf32> to vector<1x128xf32>
    %361 = vector.broadcast %360 : vector<1x128xf32> to vector<32x128xf32>
    %362 = arith.mulf %359, %361 : vector<32x128xf32>
    %363 = arith.addf %349, %362 : vector<32x128xf32>
    %c2_i32 = arith.constant 2 : i32
    %364 = tpu.dynamic_rotate %346 by %c2_i32 dim 0 : vector<32x128xf32>, i32 -> vector<32x128xf32>
    %cst_131 = arith.constant 2.000000e+00 : f32
    %365 = vector.broadcast %cst_131 : f32 to vector<32x1xf32>
    %366 = arith.cmpf oge, %347, %365 : vector<32x1xf32>
    %cst_132 = arith.constant 1.800000e+01 : f32
    %367 = vector.broadcast %cst_132 : f32 to vector<32x1xf32>
    %368 = arith.cmpf olt, %347, %367 : vector<32x1xf32>
    %369 = arith.andi %366, %368 : vector<32x1xi1>
    %cst_133 = arith.constant 0.000000e+00 : f32
    %370 = vector.shape_cast %369 : vector<32x1xi1> to vector<32x1xi1>
    %371 = vector.broadcast %370 : vector<32x1xi1> to vector<32x128xi1>
    %372 = vector.broadcast %cst_133 : f32 to vector<32x128xf32>
    %373 = arith.select %371, %364, %372 : vector<32x128xi1>, vector<32x128xf32>
    %374 = vector.extract_strided_slice %348 {offsets = [1, 0], sizes = [1, 128], strides = [1, 1]} : vector<7x128xf32> to vector<1x128xf32>
    %375 = vector.broadcast %374 : vector<1x128xf32> to vector<32x128xf32>
    %376 = arith.mulf %373, %375 : vector<32x128xf32>
    %377 = arith.addf %363, %376 : vector<32x128xf32>
    %c1_i32 = arith.constant 1 : i32
    %378 = tpu.dynamic_rotate %346 by %c1_i32 dim 0 : vector<32x128xf32>, i32 -> vector<32x128xf32>
    %cst_134 = arith.constant 1.000000e+00 : f32
    %379 = vector.broadcast %cst_134 : f32 to vector<32x1xf32>
    %380 = arith.cmpf oge, %347, %379 : vector<32x1xf32>
    %cst_135 = arith.constant 1.700000e+01 : f32
    %381 = vector.broadcast %cst_135 : f32 to vector<32x1xf32>
    %382 = arith.cmpf olt, %347, %381 : vector<32x1xf32>
    %383 = arith.andi %380, %382 : vector<32x1xi1>
    %cst_136 = arith.constant 0.000000e+00 : f32
    %384 = vector.shape_cast %383 : vector<32x1xi1> to vector<32x1xi1>
    %385 = vector.broadcast %384 : vector<32x1xi1> to vector<32x128xi1>
    %386 = vector.broadcast %cst_136 : f32 to vector<32x128xf32>
    %387 = arith.select %385, %378, %386 : vector<32x128xi1>, vector<32x128xf32>
    %388 = vector.extract_strided_slice %348 {offsets = [2, 0], sizes = [1, 128], strides = [1, 1]} : vector<7x128xf32> to vector<1x128xf32>
    %389 = vector.broadcast %388 : vector<1x128xf32> to vector<32x128xf32>
    %390 = arith.mulf %387, %389 : vector<32x128xf32>
    %391 = arith.addf %377, %390 : vector<32x128xf32>
    %392 = vector.extract_strided_slice %348 {offsets = [3, 0], sizes = [1, 128], strides = [1, 1]} : vector<7x128xf32> to vector<1x128xf32>
    %393 = vector.broadcast %392 : vector<1x128xf32> to vector<32x128xf32>
    %394 = arith.mulf %346, %393 : vector<32x128xf32>
    %395 = arith.addf %391, %394 : vector<32x128xf32>
    %c31_i32 = arith.constant 31 : i32
    %396 = tpu.dynamic_rotate %346 by %c31_i32 dim 0 : vector<32x128xf32>, i32 -> vector<32x128xf32>
    %cst_137 = arith.constant -1.000000e+00 : f32
    %397 = vector.broadcast %cst_137 : f32 to vector<32x1xf32>
    %398 = arith.cmpf oge, %347, %397 : vector<32x1xf32>
    %cst_138 = arith.constant 1.500000e+01 : f32
    %399 = vector.broadcast %cst_138 : f32 to vector<32x1xf32>
    %400 = arith.cmpf olt, %347, %399 : vector<32x1xf32>
    %401 = arith.andi %398, %400 : vector<32x1xi1>
    %cst_139 = arith.constant 0.000000e+00 : f32
    %402 = vector.shape_cast %401 : vector<32x1xi1> to vector<32x1xi1>
    %403 = vector.broadcast %402 : vector<32x1xi1> to vector<32x128xi1>
    %404 = vector.broadcast %cst_139 : f32 to vector<32x128xf32>
    %405 = arith.select %403, %396, %404 : vector<32x128xi1>, vector<32x128xf32>
    %406 = vector.extract_strided_slice %348 {offsets = [4, 0], sizes = [1, 128], strides = [1, 1]} : vector<7x128xf32> to vector<1x128xf32>
    %407 = vector.broadcast %406 : vector<1x128xf32> to vector<32x128xf32>
    %408 = arith.mulf %405, %407 : vector<32x128xf32>
    %409 = arith.addf %395, %408 : vector<32x128xf32>
    %c30_i32 = arith.constant 30 : i32
    %410 = tpu.dynamic_rotate %346 by %c30_i32 dim 0 : vector<32x128xf32>, i32 -> vector<32x128xf32>
    %cst_140 = arith.constant -2.000000e+00 : f32
    %411 = vector.broadcast %cst_140 : f32 to vector<32x1xf32>
    %412 = arith.cmpf oge, %347, %411 : vector<32x1xf32>
    %cst_141 = arith.constant 1.400000e+01 : f32
    %413 = vector.broadcast %cst_141 : f32 to vector<32x1xf32>
    %414 = arith.cmpf olt, %347, %413 : vector<32x1xf32>
    %415 = arith.andi %412, %414 : vector<32x1xi1>
    %cst_142 = arith.constant 0.000000e+00 : f32
    %416 = vector.shape_cast %415 : vector<32x1xi1> to vector<32x1xi1>
    %417 = vector.broadcast %416 : vector<32x1xi1> to vector<32x128xi1>
    %418 = vector.broadcast %cst_142 : f32 to vector<32x128xf32>
    %419 = arith.select %417, %410, %418 : vector<32x128xi1>, vector<32x128xf32>
    %420 = vector.extract_strided_slice %348 {offsets = [5, 0], sizes = [1, 128], strides = [1, 1]} : vector<7x128xf32> to vector<1x128xf32>
    %421 = vector.broadcast %420 : vector<1x128xf32> to vector<32x128xf32>
    %422 = arith.mulf %419, %421 : vector<32x128xf32>
    %423 = arith.addf %409, %422 : vector<32x128xf32>
    %c29_i32 = arith.constant 29 : i32
    %424 = tpu.dynamic_rotate %346 by %c29_i32 dim 0 : vector<32x128xf32>, i32 -> vector<32x128xf32>
    %cst_143 = arith.constant -3.000000e+00 : f32
    %425 = vector.broadcast %cst_143 : f32 to vector<32x1xf32>
    %426 = arith.cmpf oge, %347, %425 : vector<32x1xf32>
    %cst_144 = arith.constant 1.300000e+01 : f32
    %427 = vector.broadcast %cst_144 : f32 to vector<32x1xf32>
    %428 = arith.cmpf olt, %347, %427 : vector<32x1xf32>
    %429 = arith.andi %426, %428 : vector<32x1xi1>
    %cst_145 = arith.constant 0.000000e+00 : f32
    %430 = vector.shape_cast %429 : vector<32x1xi1> to vector<32x1xi1>
    %431 = vector.broadcast %430 : vector<32x1xi1> to vector<32x128xi1>
    %432 = vector.broadcast %cst_145 : f32 to vector<32x128xf32>
    %433 = arith.select %431, %424, %432 : vector<32x128xi1>, vector<32x128xf32>
    %434 = vector.extract_strided_slice %348 {offsets = [6, 0], sizes = [1, 128], strides = [1, 1]} : vector<7x128xf32> to vector<1x128xf32>
    %435 = vector.broadcast %434 : vector<1x128xf32> to vector<32x128xf32>
    %436 = arith.mulf %433, %435 : vector<32x128xf32>
    %437 = arith.addf %423, %436 : vector<32x128xf32>
    %c11 = arith.constant 11 : index
    %c0_146 = arith.constant 0 : index
    %438 = vector.load %arg4[%c11, %c0_146] : memref<21x384xf32, #tpu.memory_space<vmem>>, vector<1x128xf32>
    %439 = vector.broadcast %438 : vector<1x128xf32> to vector<32x128xf32>
    %440 = arith.addf %437, %439 : vector<32x128xf32>
    %c12 = arith.constant 12 : index
    %c0_147 = arith.constant 0 : index
    %441 = vector.load %arg4[%c12, %c0_147] : memref<21x384xf32, #tpu.memory_space<vmem>>, vector<1x128xf32>
    %442 = vector.broadcast %441 : vector<1x128xf32> to vector<32x128xf32>
    %443 = arith.mulf %440, %442 : vector<32x128xf32>
    %c13 = arith.constant 13 : index
    %c0_148 = arith.constant 0 : index
    %444 = vector.load %arg4[%c13, %c0_148] : memref<21x384xf32, #tpu.memory_space<vmem>>, vector<1x128xf32>
    %445 = vector.broadcast %444 : vector<1x128xf32> to vector<32x128xf32>
    %446 = arith.addf %443, %445 : vector<32x128xf32>
    %447 = arith.negf %446 : vector<32x128xf32>
    %448 = math.exp %447 : vector<32x128xf32>
    %cst_149 = arith.constant 1.000000e+00 : f32
    %449 = vector.broadcast %cst_149 : f32 to vector<32x128xf32>
    %450 = arith.addf %449, %448 : vector<32x128xf32>
    %451 = arith.divf %449, %450 : vector<32x128xf32>
    %452 = arith.mulf %446, %451 : vector<32x128xf32>
    %453 = arith.truncf %452 : vector<32x128xf32> to vector<32x128xbf16>
    %c0_150 = arith.constant 0 : index
    %c0_151 = arith.constant 0 : index
    %454 = vector.load %arg10[%c0_150, %c0_151] : memref<128x128xbf16, #tpu.memory_space<vmem>>, vector<128x128xbf16>
    %cst_152 = arith.constant dense<0.000000e+00> : vector<32x128xf32>
    %455 = tpu.matmul %453, %454, %cst_152 {dimension_numbers = #tpu.dot_dimension_numbers<[1], [0], [0], [1], [0, 0, 1, 1], [], []>} : vector<32x128xbf16>, vector<128x128xbf16>, vector<32x128xf32> -> vector<32x128xf32>
    %456 = arith.addf %308, %455 : vector<32x128xf32>
    %c14 = arith.constant 14 : index
    %c0_153 = arith.constant 0 : index
    %457 = vector.load %arg4[%c14, %c0_153] : memref<21x384xf32, #tpu.memory_space<vmem>>, vector<1x128xf32>
    %458 = vector.broadcast %457 : vector<1x128xf32> to vector<32x128xf32>
    %459 = arith.addf %456, %458 : vector<32x128xf32>
    %cst_154 = arith.constant dense<0.000000e+00> : vector<32xf32>
    %460 = vector.multi_reduction <add>, %459, %cst_154 [1] : vector<32x128xf32> to vector<32xf32>
    %461 = vector.shape_cast %460 : vector<32xf32> to vector<32x1xf32>
    %cst_155 = arith.constant 1.280000e+02 : f32
    %462 = vector.broadcast %cst_155 : f32 to vector<32x1xf32>
    %463 = arith.divf %461, %462 : vector<32x1xf32>
    %464 = vector.broadcast %463 : vector<32x1xf32> to vector<32x128xf32>
    %465 = arith.subf %459, %464 : vector<32x128xf32>
    %466 = arith.mulf %465, %465 : vector<32x128xf32>
    %cst_156 = arith.constant dense<0.000000e+00> : vector<32xf32>
    %467 = vector.multi_reduction <add>, %466, %cst_156 [1] : vector<32x128xf32> to vector<32xf32>
    %468 = vector.shape_cast %467 : vector<32xf32> to vector<32x1xf32>
    %cst_157 = arith.constant 1.280000e+02 : f32
    %469 = vector.broadcast %cst_157 : f32 to vector<32x1xf32>
    %470 = arith.divf %468, %469 : vector<32x1xf32>
    %471 = vector.broadcast %463 : vector<32x1xf32> to vector<32x128xf32>
    %472 = arith.subf %459, %471 : vector<32x128xf32>
    %cst_158 = arith.constant 9.99999996E-13 : f32
    %473 = vector.broadcast %cst_158 : f32 to vector<32x1xf32>
    %474 = arith.addf %470, %473 : vector<32x1xf32>
    %475 = math.rsqrt %474 : vector<32x1xf32>
    %476 = vector.broadcast %475 : vector<32x1xf32> to vector<32x128xf32>
    %477 = arith.mulf %472, %476 : vector<32x128xf32>
    %c15 = arith.constant 15 : index
    %c0_159 = arith.constant 0 : index
    %478 = vector.load %arg4[%c15, %c0_159] : memref<21x384xf32, #tpu.memory_space<vmem>>, vector<1x128xf32>
    %479 = vector.broadcast %478 : vector<1x128xf32> to vector<32x128xf32>
    %480 = arith.mulf %477, %479 : vector<32x128xf32>
    %c16_160 = arith.constant 16 : index
    %c0_161 = arith.constant 0 : index
    %481 = vector.load %arg4[%c16_160, %c0_161] : memref<21x384xf32, #tpu.memory_space<vmem>>, vector<1x128xf32>
    %482 = vector.broadcast %481 : vector<1x128xf32> to vector<32x128xf32>
    %483 = arith.addf %480, %482 : vector<32x128xf32>
    %484 = arith.truncf %483 : vector<32x128xf32> to vector<32x128xbf16>
    %c0_162 = arith.constant 0 : index
    %c0_163 = arith.constant 0 : index
    %485 = vector.load %arg12[%c0_162, %c0_163] : memref<128x256xbf16, #tpu.memory_space<vmem>>, vector<128x256xbf16>
    %cst_164 = arith.constant dense<0.000000e+00> : vector<32x256xf32>
    %486 = tpu.matmul %484, %485, %cst_164 {dimension_numbers = #tpu.dot_dimension_numbers<[1], [0], [0], [1], [0, 0, 1, 1], [], []>} : vector<32x128xbf16>, vector<128x256xbf16>, vector<32x256xf32> -> vector<32x256xf32>
    %c17 = arith.constant 17 : index
    %c0_165 = arith.constant 0 : index
    %487 = vector.load %arg4[%c17, %c0_165] : memref<21x384xf32, #tpu.memory_space<vmem>>, vector<1x256xf32>
    %488 = vector.broadcast %487 : vector<1x256xf32> to vector<32x256xf32>
    %489 = arith.addf %486, %488 : vector<32x256xf32>
    %490 = arith.negf %489 : vector<32x256xf32>
    %491 = math.exp %490 : vector<32x256xf32>
    %cst_166 = arith.constant 1.000000e+00 : f32
    %492 = vector.broadcast %cst_166 : f32 to vector<32x256xf32>
    %493 = arith.addf %492, %491 : vector<32x256xf32>
    %494 = arith.divf %492, %493 : vector<32x256xf32>
    %495 = arith.mulf %489, %494 : vector<32x256xf32>
    %496 = arith.truncf %495 : vector<32x256xf32> to vector<32x256xbf16>
    %c0_167 = arith.constant 0 : index
    %c0_168 = arith.constant 0 : index
    %497 = vector.load %arg13[%c0_167, %c0_168] : memref<256x128xbf16, #tpu.memory_space<vmem>>, vector<256x128xbf16>
    %cst_169 = arith.constant dense<0.000000e+00> : vector<32x128xf32>
    %498 = tpu.matmul %496, %497, %cst_169 {dimension_numbers = #tpu.dot_dimension_numbers<[1], [0], [0], [1], [0, 0, 1, 1], [], []>} : vector<32x256xbf16>, vector<256x128xbf16>, vector<32x128xf32> -> vector<32x128xf32>
    %c18 = arith.constant 18 : index
    %c0_170 = arith.constant 0 : index
    %499 = vector.load %arg4[%c18, %c0_170] : memref<21x384xf32, #tpu.memory_space<vmem>>, vector<1x128xf32>
    %500 = vector.broadcast %499 : vector<1x128xf32> to vector<32x128xf32>
    %501 = arith.addf %498, %500 : vector<32x128xf32>
    %cst_171 = arith.constant 5.000000e-01 : f32
    %502 = vector.broadcast %cst_171 : f32 to vector<32x128xf32>
    %503 = arith.mulf %502, %501 : vector<32x128xf32>
    %504 = arith.addf %459, %503 : vector<32x128xf32>
    %cst_172 = arith.constant dense<0.000000e+00> : vector<32xf32>
    %505 = vector.multi_reduction <add>, %504, %cst_172 [1] : vector<32x128xf32> to vector<32xf32>
    %506 = vector.shape_cast %505 : vector<32xf32> to vector<32x1xf32>
    %cst_173 = arith.constant 1.280000e+02 : f32
    %507 = vector.broadcast %cst_173 : f32 to vector<32x1xf32>
    %508 = arith.divf %506, %507 : vector<32x1xf32>
    %509 = vector.broadcast %508 : vector<32x1xf32> to vector<32x128xf32>
    %510 = arith.subf %504, %509 : vector<32x128xf32>
    %511 = arith.mulf %510, %510 : vector<32x128xf32>
    %cst_174 = arith.constant dense<0.000000e+00> : vector<32xf32>
    %512 = vector.multi_reduction <add>, %511, %cst_174 [1] : vector<32x128xf32> to vector<32xf32>
    %513 = vector.shape_cast %512 : vector<32xf32> to vector<32x1xf32>
    %cst_175 = arith.constant 1.280000e+02 : f32
    %514 = vector.broadcast %cst_175 : f32 to vector<32x1xf32>
    %515 = arith.divf %513, %514 : vector<32x1xf32>
    %516 = vector.broadcast %508 : vector<32x1xf32> to vector<32x128xf32>
    %517 = arith.subf %504, %516 : vector<32x128xf32>
    %cst_176 = arith.constant 9.99999996E-13 : f32
    %518 = vector.broadcast %cst_176 : f32 to vector<32x1xf32>
    %519 = arith.addf %515, %518 : vector<32x1xf32>
    %520 = math.rsqrt %519 : vector<32x1xf32>
    %521 = vector.broadcast %520 : vector<32x1xf32> to vector<32x128xf32>
    %522 = arith.mulf %517, %521 : vector<32x128xf32>
    %c19 = arith.constant 19 : index
    %c0_177 = arith.constant 0 : index
    %523 = vector.load %arg4[%c19, %c0_177] : memref<21x384xf32, #tpu.memory_space<vmem>>, vector<1x128xf32>
    %524 = vector.broadcast %523 : vector<1x128xf32> to vector<32x128xf32>
    %525 = arith.mulf %522, %524 : vector<32x128xf32>
    %c20 = arith.constant 20 : index
    %c0_178 = arith.constant 0 : index
    %526 = vector.load %arg4[%c20, %c0_178] : memref<21x384xf32, #tpu.memory_space<vmem>>, vector<1x128xf32>
    %527 = vector.broadcast %526 : vector<1x128xf32> to vector<32x128xf32>
    %528 = arith.addf %525, %527 : vector<32x128xf32>
    %c0_179 = arith.constant 0 : index
    %c0_180 = arith.constant 0 : index
    %529 = vector.load %arg14[%c0_179, %c0_180] : memref<32x128xf32, #tpu.memory_space<vmem>>, vector<32x128xf32>
    tpu.vector_store %arg14[%c0_179, %c0_180], %528 {strides = array<i32>} : memref<32x128xf32, #tpu.memory_space<vmem>>, vector<32x128xf32>,
    return
  }
  func.func @transform_0(%arg0: i32) -> (i32, i32) {
    %c0_i32 = arith.constant 0 : i32
    %c0_i32_0 = arith.constant 0 : i32
    return %arg0, %c0_i32 : i32, i32
  }
  func.func @transform_1(%arg0: i32) -> (i32, i32, i32) {
    %c0_i32 = arith.constant 0 : i32
    %c0_i32_0 = arith.constant 0 : i32
    %c0_i32_1 = arith.constant 0 : i32
    return %arg0, %c0_i32, %c0_i32_0 : i32, i32, i32
  }
  func.func @transform_2(%arg0: i32) -> (i32, i32) {
    %c0_i32 = arith.constant 0 : i32
    %c0_i32_0 = arith.constant 0 : i32
    return %arg0, %c0_i32 : i32, i32
  }
  func.func @transform_3(%arg0: i32) -> (i32, i32) {
    %c0_i32 = arith.constant 0 : i32
    %c0_i32_0 = arith.constant 0 : i32
    %c0_i32_1 = arith.constant 0 : i32
    return %c0_i32, %c0_i32_0 : i32, i32
  }
  func.func @transform_4(%arg0: i32) -> (i32, i32) {
    %c0_i32 = arith.constant 0 : i32
    %c0_i32_0 = arith.constant 0 : i32
    %c0_i32_1 = arith.constant 0 : i32
    return %c0_i32, %c0_i32_0 : i32, i32
  }
  func.func @transform_5(%arg0: i32) -> (i32, i32) {
    %c0_i32 = arith.constant 0 : i32
    %c0_i32_0 = arith.constant 0 : i32
    %c0_i32_1 = arith.constant 0 : i32
    return %c0_i32, %c0_i32_0 : i32, i32
  }
  func.func @transform_6(%arg0: i32) -> (i32, i32) {
    %c0_i32 = arith.constant 0 : i32
    %c0_i32_0 = arith.constant 0 : i32
    %c0_i32_1 = arith.constant 0 : i32
    return %c0_i32, %c0_i32_0 : i32, i32
  }
  func.func @transform_7(%arg0: i32) -> (i32, i32) {
    %c0_i32 = arith.constant 0 : i32
    %c0_i32_0 = arith.constant 0 : i32
    %c0_i32_1 = arith.constant 0 : i32
    return %c0_i32, %c0_i32_0 : i32, i32
  }
  func.func @transform_8(%arg0: i32) -> (i32, i32) {
    %c0_i32 = arith.constant 0 : i32
    %c0_i32_0 = arith.constant 0 : i32
    %c0_i32_1 = arith.constant 0 : i32
    return %c0_i32, %c0_i32_0 : i32, i32
  }
  func.func @transform_9(%arg0: i32) -> (i32, i32) {
    %c0_i32 = arith.constant 0 : i32
    %c0_i32_0 = arith.constant 0 : i32
    %c0_i32_1 = arith.constant 0 : i32
    return %c0_i32, %c0_i32_0 : i32, i32
  }
  func.func @transform_10(%arg0: i32) -> (i32, i32) {
    %c0_i32 = arith.constant 0 : i32
    %c0_i32_0 = arith.constant 0 : i32
    %c0_i32_1 = arith.constant 0 : i32
    return %c0_i32, %c0_i32_0 : i32, i32
  }
  func.func @transform_11(%arg0: i32) -> (i32, i32) {
    %c0_i32 = arith.constant 0 : i32
    %c0_i32_0 = arith.constant 0 : i32
    %c0_i32_1 = arith.constant 0 : i32
    return %c0_i32, %c0_i32_0 : i32, i32
  }
  func.func @transform_12(%arg0: i32) -> (i32, i32) {
    %c0_i32 = arith.constant 0 : i32
    %c0_i32_0 = arith.constant 0 : i32
    %c0_i32_1 = arith.constant 0 : i32
    return %c0_i32, %c0_i32_0 : i32, i32
  }
  func.func @transform_13(%arg0: i32) -> (i32, i32) {
    %c0_i32 = arith.constant 0 : i32
    %c0_i32_0 = arith.constant 0 : i32
    return %arg0, %c0_i32 : i32, i32
  }
}

</mosaic_0001>

<llo_original>
// kernel: tpu_custom_call.1
$region0: #{tpu_custom_call.1}
  #allocation0 [shape = 'u32[]', space=smem, size = 0x4, offset = 0x4, fixed_abs, tag = 'smem constant byte address 0x4 - core index']
  #allocation1 [shape = 'u32[72,128]{1,0:T(1,128)}', space=vmem, size = 0x9000, scoped, tag = 'internal scratch']
  #allocation2 [shape = 'f32[32,128]{1,0:T(8,128)}', space=vmem, size = 0x4000, scoped, tag = 'scratch operand']
  %s0 = inlined_call_operand.vmem [shape: f32[32,128], index: 0, kind: input, shape index: {}]
  %s1 = inlined_call_operand.hbm [shape: f32[2,1,16], index: 1, kind: input, shape index: {}]
  %s2 = inlined_call_operand.vmem [shape: f32[32,1], index: 2, kind: input, shape index: {}]
  %s3 = inlined_call_operand.hbm [shape: f32[21,384], index: 3, kind: input, shape index: {}]
  %s4 = inlined_call_operand.hbm [shape: bf16[128,256], index: 4, kind: input, shape index: {}]
  %s5 = inlined_call_operand.hbm [shape: bf16[256,128], index: 5, kind: input, shape index: {}]
  %s6 = inlined_call_operand.hbm [shape: bf16[128,384], index: 6, kind: input, shape index: {}]
  %s7 = inlined_call_operand.hbm [shape: bf16[128,128], index: 7, kind: input, shape index: {}]
  %s8 = inlined_call_operand.hbm [shape: bf16[128,256], index: 8, kind: input, shape index: {}]
  %s9 = inlined_call_operand.hbm [shape: bf16[128,128], index: 9, kind: input, shape index: {}]
  %s10 = inlined_call_operand.vmem [shape: f32[7,128], index: 10, kind: input, shape index: {}]
  %s11 = inlined_call_operand.hbm [shape: bf16[128,256], index: 11, kind: input, shape index: {}]
  %s12 = inlined_call_operand.hbm [shape: bf16[256,128], index: 12, kind: input, shape index: {}]
  %s13 = inlined_call_operand.hbm [shape: f32[32,128], index: 13, kind: output, shape index: {}]
  %s14 = sld [smem:[#allocation0]]
  $region102: #{tpu_custom_call.1} parent=0
    _
  %s16 = ssub.s32 1, %s14
  %s17 = scalar_select 0, %s16, %s14
  $region1: #{tpu_custom_call.1} parent=0
    #allocation3 [shape = 'u8[1024]{0}', space=vmem, size = 0x400, scoped, tag = 'input window, operand 1, single buffered']
    #allocation4 [shape = 's32[1]{0}', space=sflag, size = 0x4, scoped, tag = 'scoped memory for tpu_custom_call.1']
    #allocation5 [shape = 's32[1]{0}', space=sflag, size = 0x4, scoped, tag = 'scoped memory for tpu_custom_call.1']
    #allocation6 [shape = 'u8[36864]{0}', space=vmem, size = 0x9000, scoped, tag = 'input window, operand 3, single buffered']
    #allocation7 [shape = 's32[1]{0}', space=sflag, size = 0x4, scoped, tag = 'scoped memory for tpu_custom_call.1']
    #allocation8 [shape = 'u8[65536]{0}', space=vmem, size = 0x10000, scoped, tag = 'input window, operand 4, single buffered']
    #allocation9 [shape = 'u8[65536]{0}', space=vmem, size = 0x10000, scoped, tag = 'input window, operand 5, single buffered']
    #allocation10 [shape = 's32[1]{0}', space=sflag, size = 0x4, scoped, tag = 'scoped memory for tpu_custom_call.1']
    #allocation11 [shape = 'u8[98304]{0}', space=vmem, size = 0x18000, scoped, tag = 'input window, operand 6, single buffered']
    #allocation12 [shape = 'u8[32768]{0}', space=vmem, size = 0x8000, scoped, tag = 'input window, operand 7, single buffered']
    #allocation13 [shape = 's32[1]{0}', space=sflag, size = 0x4, scoped, tag = 'scoped memory for tpu_custom_call.1']
    #allocation14 [shape = 'u8[65536]{0}', space=vmem, size = 0x10000, scoped, tag = 'input window, operand 8, single buffered']
    #allocation15 [shape = 'u8[32768]{0}', space=vmem, size = 0x8000, scoped, tag = 'input window, operand 9, single buffered']
    #allocation16 [shape = 's32[1]{0}', space=sflag, size = 0x4, scoped, tag = 'scoped memory for tpu_custom_call.1']
    #allocation17 [shape = 'u8[65536]{0}', space=vmem, size = 0x10000, scoped, tag = 'input window, operand 11, single buffered']
    #allocation18 [shape = 'u8[65536]{0}', space=vmem, size = 0x10000, scoped, tag = 'input window, operand 12, single buffered']
    #allocation19 [shape = 's32[1]{0}', space=sflag, size = 0x4, scoped, tag = 'scoped memory for tpu_custom_call.1']
    #allocation20 [shape = 'u8[16384]{0}', space=vmem, size = 0x4000, scoped, tag = 'output window, operand 0, single buffered']
    %18 = vsyncpa [#allocation4], 0
    %19 = vsyncpa [#allocation7], 0
    %20 = vsyncpa [#allocation10], 0
    %21 = vsyncpa [#allocation13], 0
    %22 = vsyncpa [#allocation16], 0
    %23 = vsyncpa [#allocation19], 0
    %24 = vsyncpa [#allocation5], 0
    // Predicated region
    $region2: #{tpu_custom_call.1} parent=1 // pred_check
      _
    $region3: #{tpu_custom_call.1} parent=1 // pred_check_branch
      %26 = sbr.rel (0) target = $region5
    $region4: #{tpu_custom_call.1} parent=1 // pred_region
      _
    $region5: #{tpu_custom_call.1} parent=1 // pred_fallthru
      _
    // Predicated region
    $region6: #{tpu_custom_call.1} parent=1 // pred_check
      _
    $region7: #{tpu_custom_call.1} parent=1 // pred_check_branch
      %28 = sbr.rel (0) target = $region9
    $region8: #{tpu_custom_call.1} parent=1 // pred_region
      %30 = vsyncadd [#allocation4], 0
      %s31 = sshll.u32 %s1, 4
      %s32 = int_to_ptr.hbm [resolvable:$true] %s31
      %s33 = sshll.u32 [#allocation3], 4
      %s34 = int_to_ptr.vmem [resolvable:$true] %s33
      %39 = dma.hbm_to_vmem [thread:$0]  %s32, 32, %s34, [#allocation4], 16, 16, 1
    $region9: #{tpu_custom_call.1} parent=1 // pred_fallthru
      _
    // Predicated region
    $region10: #{tpu_custom_call.1} parent=1 // pred_check
      _
    $region11: #{tpu_custom_call.1} parent=1 // pred_check_branch
      %41 = sbr.rel (0) target = $region13
    $region12: #{tpu_custom_call.1} parent=1 // pred_region
      _
    $region13: #{tpu_custom_call.1} parent=1 // pred_fallthru
      _
    // Predicated region
    $region14: #{tpu_custom_call.1} parent=1 // pred_check
      _
    $region15: #{tpu_custom_call.1} parent=1 // pred_check_branch
      %43 = sbr.rel (0) target = $region17
    $region16: #{tpu_custom_call.1} parent=1 // pred_region
      %45 = vsyncadd [#allocation7], 0
      %s46 = sshll.u32 %s3, 4
      %s47 = int_to_ptr.hbm [resolvable:$true] %s46
      %s48 = sshll.u32 [#allocation6], 4
      %s49 = int_to_ptr.vmem [resolvable:$true] %s48
      %54 = dma.hbm_to_vmem [thread:$0]  %s47, 1152, %s49, [#allocation7], 384, 384, 24
    $region17: #{tpu_custom_call.1} parent=1 // pred_fallthru
      _
    // Predicated region
    $region18: #{tpu_custom_call.1} parent=1 // pred_check
      _
    $region19: #{tpu_custom_call.1} parent=1 // pred_check_branch
      %56 = sbr.rel (0) target = $region21
    $region20: #{tpu_custom_call.1} parent=1 // pred_region
      %58 = vsyncadd [#allocation7], 0
      %s59 = sshll.u32 %s4, 4
      %s60 = int_to_ptr.hbm [resolvable:$true] %s59
      %s61 = sshll.u32 [#allocation8], 4
      %s62 = int_to_ptr.vmem [resolvable:$true] %s61
      %67 = dma.hbm_to_vmem [thread:$0]  %s60, 2048, %s62, [#allocation7], 128, 128, 8
    $region21: #{tpu_custom_call.1} parent=1 // pred_fallthru
      _
    // Predicated region
    $region22: #{tpu_custom_call.1} parent=1 // pred_check
      _
    $region23: #{tpu_custom_call.1} parent=1 // pred_check_branch
      %69 = sbr.rel (0) target = $region25
    $region24: #{tpu_custom_call.1} parent=1 // pred_region
      %71 = vsyncadd [#allocation10], 0
      %s72 = sshll.u32 %s5, 4
      %s73 = int_to_ptr.hbm [resolvable:$true] %s72
      %s74 = sshll.u32 [#allocation9], 4
      %s75 = int_to_ptr.vmem [resolvable:$true] %s74
      %80 = dma.hbm_to_vmem [thread:$0]  %s73, 2048, %s75, [#allocation10], 64, 64, 4
    $region25: #{tpu_custom_call.1} parent=1 // pred_fallthru
      _
    // Predicated region
    $region26: #{tpu_custom_call.1} parent=1 // pred_check
      _
    $region27: #{tpu_custom_call.1} parent=1 // pred_check_branch
      %82 = sbr.rel (0) target = $region29
    $region28: #{tpu_custom_call.1} parent=1 // pred_region
      %84 = vsyncadd [#allocation10], 0
      %s85 = sshll.u32 %s6, 4
      %s86 = int_to_ptr.hbm [resolvable:$true] %s85
      %s87 = sshll.u32 [#allocation11], 4
      %s88 = int_to_ptr.vmem [resolvable:$true] %s87
      %93 = dma.hbm_to_vmem [thread:$0]  %s86, 3072, %s88, [#allocation10], 192, 192, 12
    $region29: #{tpu_custom_call.1} parent=1 // pred_fallthru
      _
    // Predicated region
    $region30: #{tpu_custom_call.1} parent=1 // pred_check
      _
    $region31: #{tpu_custom_call.1} parent=1 // pred_check_branch
      %95 = sbr.rel (0) target = $region33
    $region32: #{tpu_custom_call.1} parent=1 // pred_region
      %97 = vsyncadd [#allocation13], 0
      %s98 = sshll.u32 %s7, 4
      %s99 = int_to_ptr.hbm [resolvable:$true] %s98
      %s100 = sshll.u32 [#allocation12], 4
      %s101 = int_to_ptr.vmem [resolvable:$true] %s100
      %106 = dma.hbm_to_vmem [thread:$0]  %s99, 1024, %s101, [#allocation13], 64, 64, 4
    $region33: #{tpu_custom_call.1} parent=1 // pred_fallthru
      _
    // Predicated region
    $region34: #{tpu_custom_call.1} parent=1 // pred_check
      _
    $region35: #{tpu_custom_call.1} parent=1 // pred_check_branch
      %108 = sbr.rel (0) target = $region37
    $region36: #{tpu_custom_call.1} parent=1 // pred_region
      %110 = vsyncadd [#allocation13], 0
      %s111 = sshll.u32 %s8, 4
      %s112 = int_to_ptr.hbm [resolvable:$true] %s111
      %s113 = sshll.u32 [#allocation14], 4
      %s114 = int_to_ptr.vmem [resolvable:$true] %s113
      %119 = dma.hbm_to_vmem [thread:$0]  %s112, 2048, %s114, [#allocation13], 128, 128, 8
    $region37: #{tpu_custom_call.1} parent=1 // pred_fallthru
      _
    // Predicated region
    $region38: #{tpu_custom_call.1} parent=1 // pred_check
      _
    $region39: #{tpu_custom_call.1} parent=1 // pred_check_branch
      %121 = sbr.rel (0) target = $region41
    $region40: #{tpu_custom_call.1} parent=1 // pred_region
      %123 = vsyncadd [#allocation16], 0
      %s124 = sshll.u32 %s9, 4
      %s125 = int_to_ptr.hbm [resolvable:$true] %s124
      %s126 = sshll.u32 [#allocation15], 4
      %s127 = int_to_ptr.vmem [resolvable:$true] %s126
      %132 = dma.hbm_to_vmem [thread:$0]  %s125, 1024, %s127, [#allocation16], 64, 64, 4
    $region41: #{tpu_custom_call.1} parent=1 // pred_fallthru
      _
    // Predicated region
    $region42: #{tpu_custom_call.1} parent=1 // pred_check
      _
    $region43: #{tpu_custom_call.1} parent=1 // pred_check_branch
      %134 = sbr.rel (0) target = $region45
    $region44: #{tpu_custom_call.1} parent=1 // pred_region
      _
    $region45: #{tpu_custom_call.1} parent=1 // pred_fallthru
      _
    // Predicated region
    $region46: #{tpu_custom_call.1} parent=1 // pred_check
      _
    $region47: #{tpu_custom_call.1} parent=1 // pred_check_branch
      %136 = sbr.rel (0) target = $region49
    $region48: #{tpu_custom_call.1} parent=1 // pred_region
      %138 = vsyncadd [#allocation16], 0
      %s139 = sshll.u32 %s11, 4
      %s140 = int_to_ptr.hbm [resolvable:$true] %s139
      %s141 = sshll.u32 [#allocation17], 4
      %s142 = int_to_ptr.vmem [resolvable:$true] %s141
      %147 = dma.hbm_to_vmem [thread:$0]  %s140, 2048, %s142, [#allocation16], 128, 128, 8
    $region49: #{tpu_custom_call.1} parent=1 // pred_fallthru
      _
    // Predicated region
    $region50: #{tpu_custom_call.1} parent=1 // pred_check
      _
    $region51: #{tpu_custom_call.1} parent=1 // pred_check_branch
      %149 = sbr.rel (0) target = $region53
    $region52: #{tpu_custom_call.1} parent=1 // pred_region
      %151 = vsyncadd [#allocation19], 0
      %s152 = sshll.u32 %s12, 4
      %s153 = int_to_ptr.hbm [resolvable:$true] %s152
      %s154 = sshll.u32 [#allocation18], 4
      %s155 = int_to_ptr.vmem [resolvable:$true] %s154
      %160 = dma.hbm_to_vmem [thread:$0]  %s153, 2048, %s155, [#allocation19], 64, 64, 4
    $region53: #{tpu_custom_call.1} parent=1 // pred_fallthru
      _
    // Predicated region
    $region54: #{tpu_custom_call.1} parent=1 // pred_check
      _
    $region55: #{tpu_custom_call.1} parent=1 // pred_check_branch
      %162 = sbr.rel (0) target = $region57
    $region56: #{tpu_custom_call.1} parent=1 // pred_region
      %164 = dma.done [#allocation4], 32
    $region57: #{tpu_custom_call.1} parent=1 // pred_fallthru
      _
    // Predicated region
    $region58: #{tpu_custom_call.1} parent=1 // pred_check
      _
    $region59: #{tpu_custom_call.1} parent=1 // pred_check_branch
      %166 = sbr.rel (0) target = $region61
    $region60: #{tpu_custom_call.1} parent=1 // pred_region
      %168 = dma.done [#allocation7], 1152
    $region61: #{tpu_custom_call.1} parent=1 // pred_fallthru
      _
    // Predicated region
    $region62: #{tpu_custom_call.1} parent=1 // pred_check
      _
    $region63: #{tpu_custom_call.1} parent=1 // pred_check_branch
      %170 = sbr.rel (0) target = $region65
    $region64: #{tpu_custom_call.1} parent=1 // pred_region
      %172 = dma.done [#allocation7], 2048
    $region65: #{tpu_custom_call.1} parent=1 // pred_fallthru
      _
    // Predicated region
    $region66: #{tpu_custom_call.1} parent=1 // pred_check
      _
    $region67: #{tpu_custom_call.1} parent=1 // pred_check_branch
      %174 = sbr.rel (0) target = $region69
    $region68: #{tpu_custom_call.1} parent=1 // pred_region
      %176 = dma.done [#allocation10], 2048
    $region69: #{tpu_custom_call.1} parent=1 // pred_fallthru
      _
    // Predicated region
    $region70: #{tpu_custom_call.1} parent=1 // pred_check
      _
    $region71: #{tpu_custom_call.1} parent=1 // pred_check_branch
      %178 = sbr.rel (0) target = $region73
    $region72: #{tpu_custom_call.1} parent=1 // pred_region
      %180 = dma.done [#allocation10], 3072
    $region73: #{tpu_custom_call.1} parent=1 // pred_fallthru
      _
    // Predicated region
    $region74: #{tpu_custom_call.1} parent=1 // pred_check
      _
    $region75: #{tpu_custom_call.1} parent=1 // pred_check_branch
      %182 = sbr.rel (0) target = $region77
    $region76: #{tpu_custom_call.1} parent=1 // pred_region
      %184 = dma.done [#allocation13], 1024
    $region77: #{tpu_custom_call.1} parent=1 // pred_fallthru
      _
    // Predicated region
    $region78: #{tpu_custom_call.1} parent=1 // pred_check
      _
    $region79: #{tpu_custom_call.1} parent=1 // pred_check_branch
      %186 = sbr.rel (0) target = $region81
    $region80: #{tpu_custom_call.1} parent=1 // pred_region
      %188 = dma.done [#allocation13], 2048
    $region81: #{tpu_custom_call.1} parent=1 // pred_fallthru
      _
    // Predicated region
    $region82: #{tpu_custom_call.1} parent=1 // pred_check
      _
    $region83: #{tpu_custom_call.1} parent=1 // pred_check_branch
      %190 = sbr.rel (0) target = $region85
    $region84: #{tpu_custom_call.1} parent=1 // pred_region
      %192 = dma.done [#allocation16], 1024
    $region85: #{tpu_custom_call.1} parent=1 // pred_fallthru
      _
    // Predicated region
    $region86: #{tpu_custom_call.1} parent=1 // pred_check
      _
    $region87: #{tpu_custom_call.1} parent=1 // pred_check_branch
      %194 = sbr.rel (0) target = $region89
    $region88: #{tpu_custom_call.1} parent=1 // pred_region
      %196 = dma.done [#allocation16], 2048
    $region89: #{tpu_custom_call.1} parent=1 // pred_fallthru
      _
    // Predicated region
    $region90: #{tpu_custom_call.1} parent=1 // pred_check
      _
    $region91: #{tpu_custom_call.1} parent=1 // pred_check_branch
      %198 = sbr.rel (0) target = $region93
    $region92: #{tpu_custom_call.1} parent=1 // pred_region
      %200 = dma.done [#allocation19], 2048
    $region93: #{tpu_custom_call.1} parent=1 // pred_fallthru
      _
    %v202 = vld [vmem:[%s0] sm:$0xff]
    %v203 = vld [vmem:[%s0 + $0x8] sm:$0xff]
    %v204 = vld [vmem:[%s0 + $0x10] sm:$0xff]
    %v205 = vld [vmem:[%s0 + $0x18] sm:$0xff]
    %206 = vadd.xlane.f32.xlu0 %v202
    %v207 = vpop.xlane.xlu0 %206
    %208 = vadd.xlane.f32.xlu0 %v203
    %v209 = vpop.xlane.xlu0 %208
    %210 = vadd.xlane.f32.xlu0 %v204
    %v211 = vpop.xlane.xlu0 %210
    %212 = vadd.xlane.f32.xlu0 %v205
    %v213 = vpop.xlane.xlu0 %212
    %v214 = vrcp.pop 128.0
    %v215 = vmul.f32 128.0, %v214
    %v216 = vsub.f32 1.0, %v215
    %v217 = vmul.f32 %v214, %v216
    %v218 = vadd.f32 %v214, %v217
    %vm219 = vweird.f32 %v214
    %v220 = vsel %vm219, %v214, %v218
    %v221 = vmul.f32 %v207, %v220
    %v222 = vmul.f32 %v209, %v220
    %v223 = vmul.f32 %v211, %v220
    %v224 = vmul.f32 %v213, %v220
    %v225 = vsub.f32 %v202, %v221
    %v226 = vsub.f32 %v203, %v222
    %v227 = vsub.f32 %v204, %v223
    %v228 = vsub.f32 %v205, %v224
    %v229 = vmul.f32 %v225, %v225
    %v230 = vmul.f32 %v226, %v226
    %v231 = vmul.f32 %v227, %v227
    %v232 = vmul.f32 %v228, %v228
    %233 = vadd.xlane.f32.xlu0 %v229
    %v234 = vpop.xlane.xlu0 %233
    %235 = vadd.xlane.f32.xlu0 %v230
    %v236 = vpop.xlane.xlu0 %235
    %237 = vadd.xlane.f32.xlu0 %v231
    %v238 = vpop.xlane.xlu0 %237
    %239 = vadd.xlane.f32.xlu0 %v232
    %v240 = vpop.xlane.xlu0 %239
    %v241 = vmul.f32 %v234, %v220
    %v242 = vmul.f32 %v236, %v220
    %v243 = vmul.f32 %v238, %v220
    %v244 = vmul.f32 %v240, %v220
    %v245 = vadd.f32 %v241, 1e-12
    %v246 = vadd.f32 %v242, 1e-12
    %v247 = vadd.f32 %v243, 1e-12
    %v248 = vadd.f32 %v244, 1e-12
    %v249 = vrsqrt.pop %v245
    %v250 = vmul.f32 %v249, %v245
    %v251 = vmul.f32 %v250, %v249
    %v252 = vmul.f32 0.5, %v251
    %v253 = vsub.f32 1.5, %v252
    %v254 = vmul.f32 %v249, %v253
    %vm255 = vweird.f32 %v245
    %vm256 = vweird.f32 %v249
    %vm257 = vmor %vm255, %vm256
    %v258 = vsel %vm257, %v249, %v254
    %v259 = vrsqrt.pop %v246
    %v260 = vmul.f32 %v259, %v246
    %v261 = vmul.f32 %v260, %v259
    %v262 = vmul.f32 0.5, %v261
    %v263 = vsub.f32 1.5, %v262
    %v264 = vmul.f32 %v259, %v263
    %vm265 = vweird.f32 %v246
    %vm266 = vweird.f32 %v259
    %vm267 = vmor %vm265, %vm266
    %v268 = vsel %vm267, %v259, %v264
    %v269 = vrsqrt.pop %v247
    %v270 = vmul.f32 %v269, %v247
    %v271 = vmul.f32 %v270, %v269
    %v272 = vmul.f32 0.5, %v271
    %v273 = vsub.f32 1.5, %v272
    %v274 = vmul.f32 %v269, %v273
    %vm275 = vweird.f32 %v247
    %vm276 = vweird.f32 %v269
    %vm277 = vmor %vm275, %vm276
    %v278 = vsel %vm277, %v269, %v274
    %v279 = vrsqrt.pop %v248
    %v280 = vmul.f32 %v279, %v248
    %v281 = vmul.f32 %v280, %v279
    %v282 = vmul.f32 0.5, %v281
    %v283 = vsub.f32 1.5, %v282
    %v284 = vmul.f32 %v279, %v283
    %vm285 = vweird.f32 %v248
    %vm286 = vweird.f32 %v279
    %vm287 = vmor %vm285, %vm286
    %v288 = vsel %vm287, %v279, %v284
    %v289 = vmul.f32 %v225, %v258
    %v290 = vmul.f32 %v226, %v268
    %v291 = vmul.f32 %v227, %v278
    %v292 = vmul.f32 %v228, %v288
    %v293 = vld [vmem:[#allocation6] ss:$0 sm:$0xff]
    %v294 = vmul.f32 %v289, %v293
    %v295 = vmul.f32 %v290, %v293
    %v296 = vmul.f32 %v291, %v293
    %v297 = vmul.f32 %v292, %v293
    %v298 = vld [vmem:[#allocation6 + $0x1] ss:$0 sm:$0xff]
    %v299 = vadd.f32 %v294, %v298
    %v300 = vadd.f32 %v295, %v298
    %v301 = vadd.f32 %v296, %v298
    %v302 = vadd.f32 %v297, %v298
    %v303 = vpack.c.bf16 %v300, %v299
    %v304 = vpack.c.bf16 %v302, %v301
    %v305 = vld [vmem:[#allocation8] sm:$0xff]
    %v306 = vld [vmem:[#allocation8 + $0x8] sm:$0xff]
    %v307 = vld [vmem:[#allocation8 + $0x10] sm:$0xff]
    %v308 = vld [vmem:[#allocation8 + $0x18] sm:$0xff]
    %v309 = vld [vmem:[#allocation8 + $0x20] sm:$0xff]
    %v310 = vld [vmem:[#allocation8 + $0x28] sm:$0xff]
    %v311 = vld [vmem:[#allocation8 + $0x30] sm:$0xff]
    %v312 = vld [vmem:[#allocation8 + $0x38] sm:$0xff]
    %v313 = vld [vmem:[#allocation8 + $0x40] sm:$0xff]
    %v314 = vld [vmem:[#allocation8 + $0x48] sm:$0xff]
    %v315 = vld [vmem:[#allocation8 + $0x50] sm:$0xff]
    %v316 = vld [vmem:[#allocation8 + $0x58] sm:$0xff]
    %v317 = vld [vmem:[#allocation8 + $0x60] sm:$0xff]
    %v318 = vld [vmem:[#allocation8 + $0x68] sm:$0xff]
    %v319 = vld [vmem:[#allocation8 + $0x70] sm:$0xff]
    %v320 = vld [vmem:[#allocation8 + $0x78] sm:$0xff]
    %s321 = scalar_lea.vmem [#allocation6], 2
    %v322 = vld [vmem:[%s321] ss:$8 sm:$0x3]
    %v324 = vperm.slane %v322, 0
    %v325 = vperm.slane %v322, 1
    %v344 = vunpack.c.l.b16 %v305
    %v345 = vunpack.c.h.b16 %v305
    %v346 = vunpack.c.l.b16 %v306
    %v347 = vunpack.c.h.b16 %v306
    %v348 = vunpack.c.l.b16 %v307
    %v349 = vunpack.c.h.b16 %v307
    %v350 = vunpack.c.l.b16 %v308
    %v351 = vunpack.c.h.b16 %v308
    %v352 = vunpack.c.l.b16 %v309
    %v353 = vunpack.c.h.b16 %v309
    %v354 = vunpack.c.l.b16 %v310
    %v355 = vunpack.c.h.b16 %v310
    %v356 = vunpack.c.l.b16 %v311
    %v357 = vunpack.c.h.b16 %v311
    %v358 = vunpack.c.l.b16 %v312
    %v359 = vunpack.c.h.b16 %v312
    %v360 = vunpack.c.l.b16 %v313
    %v361 = vunpack.c.h.b16 %v313
    %v362 = vunpack.c.l.b16 %v314
    %v363 = vunpack.c.h.b16 %v314
    %v364 = vunpack.c.l.b16 %v315
    %v365 = vunpack.c.h.b16 %v315
    %v366 = vunpack.c.l.b16 %v316
    %v367 = vunpack.c.h.b16 %v316
    %v368 = vunpack.c.l.b16 %v317
    %v369 = vunpack.c.h.b16 %v317
    %v370 = vunpack.c.l.b16 %v318
    %v371 = vunpack.c.h.b16 %v318
    %v372 = vunpack.c.l.b16 %v319
    %v373 = vunpack.c.h.b16 %v319
    %v374 = vunpack.c.l.b16 %v320
    %v375 = vunpack.c.h.b16 %v320
    %v376 = vpack.c.b16 %v346, %v344
    %v377 = vpack.c.b16 %v347, %v345
    %v378 = vpack.c.b16 %v350, %v348
    %v379 = vpack.c.b16 %v351, %v349
    %v380 = vpack.c.b16 %v354, %v352
    %v381 = vpack.c.b16 %v355, %v353
    %v382 = vpack.c.b16 %v358, %v356
    %v383 = vpack.c.b16 %v359, %v357
    %v384 = vpack.c.b16 %v362, %v360
    %v385 = vpack.c.b16 %v363, %v361
    %v386 = vpack.c.b16 %v366, %v364
    %v387 = vpack.c.b16 %v367, %v365
    %v388 = vpack.c.b16 %v370, %v368
    %v389 = vpack.c.b16 %v371, %v369
    %v390 = vpack.c.b16 %v374, %v372
    %v391 = vpack.c.b16 %v375, %v373
    %408 = vmatpush.bf16.msra.mxu0 %v390
    %409 = vmatpush.bf16.msra.mxu0 %v388
    %410 = vmatpush.bf16.msra.mxu0 %v386
    %411 = vmatpush.bf16.msra.mxu0 %v384
    %412 = vmatpush.bf16.msra.mxu0 %v382
    %413 = vmatpush.bf16.msra.mxu0 %v380
    %414 = vmatpush.bf16.msra.mxu0 %v378
    %415 = vmatpush.bf16.msra.mxu0 %v376
    %416 = vmatmul.bf16.gmra.mxu0 %v303
    %v417 = vpop.f32.mrf.mxu0
    %v418 = vadd.f32 %v324, %v417
    %v419 = vpop.f32.mrf.mxu0
    %v420 = vadd.f32 %v324, %v419
    %421 = vmatmul.bf16.gmra.mxu0 %v304
    %v422 = vpop.f32.mrf.mxu0
    %v423 = vadd.f32 %v324, %v422
    %v424 = vpop.f32.mrf.mxu0
    %v425 = vadd.f32 %v324, %v424
    %426 = vdwg.mxu0
    %427 = vmatpush.bf16.msra.mxu0 %v391
    %428 = vmatpush.bf16.msra.mxu0 %v389
    %429 = vmatpush.bf16.msra.mxu0 %v387
    %430 = vmatpush.bf16.msra.mxu0 %v385
    %431 = vmatpush.bf16.msra.mxu0 %v383
    %432 = vmatpush.bf16.msra.mxu0 %v381
    %433 = vmatpush.bf16.msra.mxu0 %v379
    %434 = vmatpush.bf16.msra.mxu0 %v377
    %435 = vmatmul.bf16.gmra.mxu0 %v303
    %v436 = vpop.f32.mrf.mxu0
    %v437 = vadd.f32 %v325, %v436
    %v438 = vpop.f32.mrf.mxu0
    %v439 = vadd.f32 %v325, %v438
    %440 = vmatmul.bf16.gmra.mxu0 %v304
    %v441 = vpop.f32.mrf.mxu0
    %v442 = vadd.f32 %v325, %v441
    %v443 = vpop.f32.mrf.mxu0
    %v444 = vadd.f32 %v325, %v443
    %445 = vdwg.mxu0
    %v446 = vxor.u32 %v418, 2147483648
    %v447 = vxor.u32 %v437, 2147483648
    %v448 = vxor.u32 %v420, 2147483648
    %v449 = vxor.u32 %v439, 2147483648
    %v450 = vxor.u32 %v423, 2147483648
    %v451 = vxor.u32 %v442, 2147483648
    %v452 = vxor.u32 %v425, 2147483648
    %v453 = vxor.u32 %v444, 2147483648
    %v454 = vmul.f32 %v446, 1.442695
    %v455 = vpow.pop %v454
    %v456 = vmul.f32 %v447, 1.442695
    %v457 = vpow.pop %v456
    %v458 = vmul.f32 %v448, 1.442695
    %v459 = vpow.pop %v458
    %v460 = vmul.f32 %v449, 1.442695
    %v461 = vpow.pop %v460
    %v462 = vmul.f32 %v450, 1.442695
    %v463 = vpow.pop %v462
    %v464 = vmul.f32 %v451, 1.442695
    %v465 = vpow.pop %v464
    %v466 = vmul.f32 %v452, 1.442695
    %v467 = vpow.pop %v466
    %v468 = vmul.f32 %v453, 1.442695
    %v469 = vpow.pop %v468
    %v470 = vadd.f32 %v455, 1.0
    %v471 = vadd.f32 %v457, 1.0
    %v472 = vadd.f32 %v459, 1.0
    %v473 = vadd.f32 %v461, 1.0
    %v474 = vadd.f32 %v463, 1.0
    %v475 = vadd.f32 %v465, 1.0
    %v476 = vadd.f32 %v467, 1.0
    %v477 = vadd.f32 %v469, 1.0
    %v478 = vrcp.pop %v470
    %v479 = vmul.f32 %v470, %v478
    %v480 = vsub.f32 1.0, %v479
    %v481 = vmul.f32 %v478, %v480
    %v482 = vadd.f32 %v478, %v481
    %vm483 = vweird.f32 %v470
    %vm484 = vweird.f32 %v478
    %vm485 = vmor %vm483, %vm484
    %v486 = vsel %vm485, %v478, %v482
    %v487 = vand.u32 2147483647, %v470
    %vm488 = vcmp.eq.f32.partialorder %v487, 8.507059e+37
    %v489 = vand.u32 %v470, 2147483648
    %v490 = vor.u32 1.1754944e-38, %v489
    %v491 = vsel %vm488, %v490, %v486
    %v492 = vmul.f32 1.0, %v491
    %v493 = vrcp.pop %v471
    %v494 = vmul.f32 %v471, %v493
    %v495 = vsub.f32 1.0, %v494
    %v496 = vmul.f32 %v493, %v495
    %v497 = vadd.f32 %v493, %v496
    %vm498 = vweird.f32 %v471
    %vm499 = vweird.f32 %v493
    %vm500 = vmor %vm498, %vm499
    %v501 = vsel %vm500, %v493, %v497
    %v502 = vand.u32 2147483647, %v471
    %vm503 = vcmp.eq.f32.partialorder %v502, 8.507059e+37
    %v504 = vand.u32 %v471, 2147483648
    %v505 = vor.u32 1.1754944e-38, %v504
    %v506 = vsel %vm503, %v505, %v501
    %v507 = vmul.f32 1.0, %v506
    %v508 = vrcp.pop %v472
    %v509 = vmul.f32 %v472, %v508
    %v510 = vsub.f32 1.0, %v509
    %v511 = vmul.f32 %v508, %v510
    %v512 = vadd.f32 %v508, %v511
    %vm513 = vweird.f32 %v472
    %vm514 = vweird.f32 %v508
    %vm515 = vmor %vm513, %vm514
    %v516 = vsel %vm515, %v508, %v512
    %v517 = vand.u32 2147483647, %v472
    %vm518 = vcmp.eq.f32.partialorder %v517, 8.507059e+37
    %v519 = vand.u32 %v472, 2147483648
    %v520 = vor.u32 1.1754944e-38, %v519
    %v521 = vsel %vm518, %v520, %v516
    %v522 = vmul.f32 1.0, %v521
    %v523 = vrcp.pop %v473
    %v524 = vmul.f32 %v473, %v523
    %v525 = vsub.f32 1.0, %v524
    %v526 = vmul.f32 %v523, %v525
    %v527 = vadd.f32 %v523, %v526
    %vm528 = vweird.f32 %v473
    %vm529 = vweird.f32 %v523
    %vm530 = vmor %vm528, %vm529
    %v531 = vsel %vm530, %v523, %v527
    %v532 = vand.u32 2147483647, %v473
    %vm533 = vcmp.eq.f32.partialorder %v532, 8.507059e+37
    %v534 = vand.u32 %v473, 2147483648
    %v535 = vor.u32 1.1754944e-38, %v534
    %v536 = vsel %vm533, %v535, %v531
    %v537 = vmul.f32 1.0, %v536
    %v538 = vrcp.pop %v474
    %v539 = vmul.f32 %v474, %v538
    %v540 = vsub.f32 1.0, %v539
    %v541 = vmul.f32 %v538, %v540
    %v542 = vadd.f32 %v538, %v541
    %vm543 = vweird.f32 %v474
    %vm544 = vweird.f32 %v538
    %vm545 = vmor %vm543, %vm544
    %v546 = vsel %vm545, %v538, %v542
    %v547 = vand.u32 2147483647, %v474
    %vm548 = vcmp.eq.f32.partialorder %v547, 8.507059e+37
    %v549 = vand.u32 %v474, 2147483648
    %v550 = vor.u32 1.1754944e-38, %v549
    %v551 = vsel %vm548, %v550, %v546
    %v552 = vmul.f32 1.0, %v551
    %v553 = vrcp.pop %v475
    %v554 = vmul.f32 %v475, %v553
    %v555 = vsub.f32 1.0, %v554
    %v556 = vmul.f32 %v553, %v555
    %v557 = vadd.f32 %v553, %v556
    %vm558 = vweird.f32 %v475
    %vm559 = vweird.f32 %v553
    %vm560 = vmor %vm558, %vm559
    %v561 = vsel %vm560, %v553, %v557
    %v562 = vand.u32 2147483647, %v475
    %vm563 = vcmp.eq.f32.partialorder %v562, 8.507059e+37
    %v564 = vand.u32 %v475, 2147483648
    %v565 = vor.u32 1.1754944e-38, %v564
    %v566 = vsel %vm563, %v565, %v561
    %v567 = vmul.f32 1.0, %v566
    %v568 = vrcp.pop %v476
    %v569 = vmul.f32 %v476, %v568
    %v570 = vsub.f32 1.0, %v569
    %v571 = vmul.f32 %v568, %v570
    %v572 = vadd.f32 %v568, %v571
    %vm573 = vweird.f32 %v476
    %vm574 = vweird.f32 %v568
    %vm575 = vmor %vm573, %vm574
    %v576 = vsel %vm575, %v568, %v572
    %v577 = vand.u32 2147483647, %v476
    %vm578 = vcmp.eq.f32.partialorder %v577, 8.507059e+37
    %v579 = vand.u32 %v476, 2147483648
    %v580 = vor.u32 1.1754944e-38, %v579
    %v581 = vsel %vm578, %v580, %v576
    %v582 = vmul.f32 1.0, %v581
    %v583 = vrcp.pop %v477
    %v584 = vmul.f32 %v477, %v583
    %v585 = vsub.f32 1.0, %v584
    %v586 = vmul.f32 %v583, %v585
    %v587 = vadd.f32 %v583, %v586
    %vm588 = vweird.f32 %v477
    %vm589 = vweird.f32 %v583
    %vm590 = vmor %vm588, %vm589
    %v591 = vsel %vm590, %v583, %v587
    %v592 = vand.u32 2147483647, %v477
    %vm593 = vcmp.eq.f32.partialorder %v592, 8.507059e+37
    %v594 = vand.u32 %v477, 2147483648
    %v595 = vor.u32 1.1754944e-38, %v594
    %v596 = vsel %vm593, %v595, %v591
    %v597 = vmul.f32 1.0, %v596
    %v598 = vmul.f32 %v418, %v492
    %v599 = vmul.f32 %v437, %v507
    %v600 = vmul.f32 %v420, %v522
    %v601 = vmul.f32 %v439, %v537
    %v602 = vmul.f32 %v423, %v552
    %v603 = vmul.f32 %v442, %v567
    %v604 = vmul.f32 %v425, %v582
    %v605 = vmul.f32 %v444, %v597
    %v606 = vpack.c.bf16 %v600, %v598
    %v607 = vpack.c.bf16 %v601, %v599
    %v608 = vpack.c.bf16 %v604, %v602
    %v609 = vpack.c.bf16 %v605, %v603
    %v610 = vld [vmem:[#allocation9] sm:$0xf]
    %v611 = vld [vmem:[#allocation9 + $0x4] sm:$0xf]
    %v612 = vld [vmem:[#allocation9 + $0x8] sm:$0xf]
    %v613 = vld [vmem:[#allocation9 + $0xc] sm:$0xf]
    %v614 = vld [vmem:[#allocation9 + $0x10] sm:$0xf]
    %v615 = vld [vmem:[#allocation9 + $0x14] sm:$0xf]
    %v616 = vld [vmem:[#allocation9 + $0x18] sm:$0xf]
    %v617 = vld [vmem:[#allocation9 + $0x1c] sm:$0xf]
    %v618 = vld [vmem:[#allocation9 + $0x20] sm:$0xf]
    %v619 = vld [vmem:[#allocation9 + $0x24] sm:$0xf]
    %v620 = vld [vmem:[#allocation9 + $0x28] sm:$0xf]
    %v621 = vld [vmem:[#allocation9 + $0x2c] sm:$0xf]
    %v622 = vld [vmem:[#allocation9 + $0x30] sm:$0xf]
    %v623 = vld [vmem:[#allocation9 + $0x34] sm:$0xf]
    %v624 = vld [vmem:[#allocation9 + $0x38] sm:$0xf]
    %v625 = vld [vmem:[#allocation9 + $0x3c] sm:$0xf]
    %v626 = vld [vmem:[#allocation9 + $0x40] sm:$0xf]
    %v627 = vld [vmem:[#allocation9 + $0x44] sm:$0xf]
    %v628 = vld [vmem:[#allocation9 + $0x48] sm:$0xf]
    %v629 = vld [vmem:[#allocation9 + $0x4c] sm:$0xf]
    %v630 = vld [vmem:[#allocation9 + $0x50] sm:$0xf]
    %v631 = vld [vmem:[#allocation9 + $0x54] sm:$0xf]
    %v632 = vld [vmem:[#allocation9 + $0x58] sm:$0xf]
    %v633 = vld [vmem:[#allocation9 + $0x5c] sm:$0xf]
    %v634 = vld [vmem:[#allocation9 + $0x60] sm:$0xf]
    %v635 = vld [vmem:[#allocation9 + $0x64] sm:$0xf]
    %v636 = vld [vmem:[#allocation9 + $0x68] sm:$0xf]
    %v637 = vld [vmem:[#allocation9 + $0x6c] sm:$0xf]
    %v638 = vld [vmem:[#allocation9 + $0x70] sm:$0xf]
    %v639 = vld [vmem:[#allocation9 + $0x74] sm:$0xf]
    %v640 = vld [vmem:[#allocation9 + $0x78] sm:$0xf]
    %v641 = vld [vmem:[#allocation9 + $0x7c] sm:$0xf]
    %v642 = vld [vmem:[#allocation6 + $0x3] ss:$0 sm:$0xff]
    %v675 = vunpack.c.l.b16 %v610
    %v676 = vunpack.c.l.b16 %v611
    %v677 = vunpack.c.l.b16 %v612
    %v678 = vunpack.c.l.b16 %v613
    %v679 = vunpack.c.l.b16 %v614
    %v680 = vunpack.c.l.b16 %v615
    %v681 = vunpack.c.l.b16 %v616
    %v682 = vunpack.c.l.b16 %v617
    %v683 = vunpack.c.l.b16 %v618
    %v684 = vunpack.c.l.b16 %v619
    %v685 = vunpack.c.l.b16 %v620
    %v686 = vunpack.c.l.b16 %v621
    %v687 = vunpack.c.l.b16 %v622
    %v688 = vunpack.c.l.b16 %v623
    %v689 = vunpack.c.l.b16 %v624
    %v690 = vunpack.c.l.b16 %v625
    %v691 = vunpack.c.l.b16 %v626
    %v692 = vunpack.c.l.b16 %v627
    %v693 = vunpack.c.l.b16 %v628
    %v694 = vunpack.c.l.b16 %v629
    %v695 = vunpack.c.l.b16 %v630
    %v696 = vunpack.c.l.b16 %v631
    %v697 = vunpack.c.l.b16 %v632
    %v698 = vunpack.c.l.b16 %v633
    %v699 = vunpack.c.l.b16 %v634
    %v700 = vunpack.c.l.b16 %v635
    %v701 = vunpack.c.l.b16 %v636
    %v702 = vunpack.c.l.b16 %v637
    %v703 = vunpack.c.l.b16 %v638
    %v704 = vunpack.c.l.b16 %v639
    %v705 = vunpack.c.l.b16 %v640
    %v706 = vunpack.c.l.b16 %v641
    %v707 = vpack.c.b16 %v676, %v675
    %v708 = vpack.c.b16 %v678, %v677
    %v709 = vpack.c.b16 %v680, %v679
    %v710 = vpack.c.b16 %v682, %v681
    %v711 = vpack.c.b16 %v684, %v683
    %v712 = vpack.c.b16 %v686, %v685
    %v713 = vpack.c.b16 %v688, %v687
    %v714 = vpack.c.b16 %v690, %v689
    %v715 = vpack.c.b16 %v692, %v691
    %v716 = vpack.c.b16 %v694, %v693
    %v717 = vpack.c.b16 %v696, %v695
    %v718 = vpack.c.b16 %v698, %v697
    %v719 = vpack.c.b16 %v700, %v699
    %v720 = vpack.c.b16 %v702, %v701
    %v721 = vpack.c.b16 %v704, %v703
    %v722 = vpack.c.b16 %v706, %v705
    %739 = vmatpush.bf16.msra.mxu0 %v714
    %740 = vmatpush.bf16.msra.mxu0 %v713
    %741 = vmatpush.bf16.msra.mxu0 %v712
    %742 = vmatpush.bf16.msra.mxu0 %v711
    %743 = vmatpush.bf16.msra.mxu0 %v710
    %744 = vmatpush.bf16.msra.mxu0 %v709
    %745 = vmatpush.bf16.msra.mxu0 %v708
    %746 = vmatpush.bf16.msra.mxu0 %v707
    %747 = vmatmul.bf16.gmra.mxu0 %v606
    %v748 = vpop.f32.mrf.mxu0
    %v749 = vadd.f32 %v642, %v748
    %v750 = vpop.f32.mrf.mxu0
    %v751 = vadd.f32 %v642, %v750
    %752 = vmatmul.bf16.gmra.mxu0 %v608
    %v753 = vpop.f32.mrf.mxu0
    %v754 = vadd.f32 %v642, %v753
    %v755 = vpop.f32.mrf.mxu0
    %v756 = vadd.f32 %v642, %v755
    %757 = vdwg.mxu0
    %758 = vmatpush.bf16.msra.mxu0 %v722
    %759 = vmatpush.bf16.msra.mxu0 %v721
    %760 = vmatpush.bf16.msra.mxu0 %v720
    %761 = vmatpush.bf16.msra.mxu0 %v719
    %762 = vmatpush.bf16.msra.mxu0 %v718
    %763 = vmatpush.bf16.msra.mxu0 %v717
    %764 = vmatpush.bf16.msra.mxu0 %v716
    %765 = vmatpush.bf16.msra.mxu0 %v715
    %766 = vmatmul.bf16.gmra.mxu0 %v607
    %v767 = vpop.f32.mrf.mxu0
    %v768 = vadd.f32 %v749, %v767
    %v769 = vpop.f32.mrf.mxu0
    %v770 = vadd.f32 %v751, %v769
    %771 = vmatmul.bf16.gmra.mxu0 %v609
    %v772 = vpop.f32.mrf.mxu0
    %v773 = vadd.f32 %v754, %v772
    %v774 = vpop.f32.mrf.mxu0
    %v775 = vadd.f32 %v756, %v774
    %776 = vdwg.mxu0
    %v777 = vmul.f32 %v768, 0.5
    %v778 = vmul.f32 %v770, 0.5
    %v779 = vmul.f32 %v773, 0.5
    %v780 = vmul.f32 %v775, 0.5
    %v781 = vadd.f32 %v202, %v777
    %v782 = vadd.f32 %v203, %v778
    %v783 = vadd.f32 %v204, %v779
    %v784 = vadd.f32 %v205, %v780
    %785 = vadd.xlane.f32.xlu0 %v781
    %v786 = vpop.xlane.xlu0 %785
    %787 = vadd.xlane.f32.xlu0 %v782
    %v788 = vpop.xlane.xlu0 %787
    %789 = vadd.xlane.f32.xlu0 %v783
    %v790 = vpop.xlane.xlu0 %789
    %791 = vadd.xlane.f32.xlu0 %v784
    %v792 = vpop.xlane.xlu0 %791
    %v793 = vmul.f32 %v786, %v220
    %v794 = vmul.f32 %v788, %v220
    %v795 = vmul.f32 %v790, %v220
    %v796 = vmul.f32 %v792, %v220
    %v797 = vsub.f32 %v781, %v793
    %v798 = vsub.f32 %v782, %v794
    %v799 = vsub.f32 %v783, %v795
    %v800 = vsub.f32 %v784, %v796
    %v801 = vmul.f32 %v797, %v797
    %v802 = vmul.f32 %v798, %v798
    %v803 = vmul.f32 %v799, %v799
    %v804 = vmul.f32 %v800, %v800
    %805 = vadd.xlane.f32.xlu0 %v801
    %v806 = vpop.xlane.xlu0 %805
    %807 = vadd.xlane.f32.xlu0 %v802
    %v808 = vpop.xlane.xlu0 %807
    %809 = vadd.xlane.f32.xlu0 %v803
    %v810 = vpop.xlane.xlu0 %809
    %811 = vadd.xlane.f32.xlu0 %v804
    %v812 = vpop.xlane.xlu0 %811
    %v813 = vmul.f32 %v806, %v220
    %v814 = vmul.f32 %v808, %v220
    %v815 = vmul.f32 %v810, %v220
    %v816 = vmul.f32 %v812, %v220
    %v817 = vadd.f32 %v813, 1e-12
    %v818 = vadd.f32 %v814, 1e-12
    %v819 = vadd.f32 %v815, 1e-12
    %v820 = vadd.f32 %v816, 1e-12
    %v821 = vrsqrt.pop %v817
    %v822 = vmul.f32 %v821, %v817
    %v823 = vmul.f32 %v822, %v821
    %v824 = vmul.f32 0.5, %v823
    %v825 = vsub.f32 1.5, %v824
    %v826 = vmul.f32 %v821, %v825
    %vm827 = vweird.f32 %v817
    %vm828 = vweird.f32 %v821
    %vm829 = vmor %vm827, %vm828
    %v830 = vsel %vm829, %v821, %v826
    %v831 = vrsqrt.pop %v818
    %v832 = vmul.f32 %v831, %v818
    %v833 = vmul.f32 %v832, %v831
    %v834 = vmul.f32 0.5, %v833
    %v835 = vsub.f32 1.5, %v834
    %v836 = vmul.f32 %v831, %v835
    %vm837 = vweird.f32 %v818
    %vm838 = vweird.f32 %v831
    %vm839 = vmor %vm837, %vm838
    %v840 = vsel %vm839, %v831, %v836
    %v841 = vrsqrt.pop %v819
    %v842 = vmul.f32 %v841, %v819
    %v843 = vmul.f32 %v842, %v841
    %v844 = vmul.f32 0.5, %v843
    %v845 = vsub.f32 1.5, %v844
    %v846 = vmul.f32 %v841, %v845
    %vm847 = vweird.f32 %v819
    %vm848 = vweird.f32 %v841
    %vm849 = vmor %vm847, %vm848
    %v850 = vsel %vm849, %v841, %v846
    %v851 = vrsqrt.pop %v820
    %v852 = vmul.f32 %v851, %v820
    %v853 = vmul.f32 %v852, %v851
    %v854 = vmul.f32 0.5, %v853
    %v855 = vsub.f32 1.5, %v854
    %v856 = vmul.f32 %v851, %v855
    %vm857 = vweird.f32 %v820
    %vm858 = vweird.f32 %v851
    %vm859 = vmor %vm857, %vm858
    %v860 = vsel %vm859, %v851, %v856
    %v861 = vmul.f32 %v797, %v830
    %v862 = vmul.f32 %v798, %v840
    %v863 = vmul.f32 %v799, %v850
    %v864 = vmul.f32 %v800, %v860
    %v865 = vld [vmem:[#allocation6 + $0x4] ss:$0 sm:$0xff]
    %v866 = vmul.f32 %v861, %v865
    %v867 = vmul.f32 %v862, %v865
    %v868 = vmul.f32 %v863, %v865
    %v869 = vmul.f32 %v864, %v865
    %v870 = vld [vmem:[#allocation6 + $0x5] ss:$0 sm:$0xff]
    %v871 = vadd.f32 %v866, %v870
    %v872 = vadd.f32 %v867, %v870
    %v873 = vadd.f32 %v868, %v870
    %v874 = vadd.f32 %v869, %v870
    %v875 = vpack.c.bf16 %v872, %v871
    %v876 = vpack.c.bf16 %v874, %v873
    %v877 = vld [vmem:[#allocation11] sm:$0xff]
    %v878 = vld [vmem:[#allocation11 + $0x8] sm:$0xf]
    %v879 = vld [vmem:[#allocation11 + $0xc] sm:$0xff]
    %v880 = vld [vmem:[#allocation11 + $0x14] sm:$0xf]
    %v881 = vld [vmem:[#allocation11 + $0x18] sm:$0xff]
    %v882 = vld [vmem:[#allocation11 + $0x20] sm:$0xf]
    %v883 = vld [vmem:[#allocation11 + $0x24] sm:$0xff]
    %v884 = vld [vmem:[#allocation11 + $0x2c] sm:$0xf]
    %v885 = vld [vmem:[#allocation11 + $0x30] sm:$0xff]
    %v886 = vld [vmem:[#allocation11 + $0x38] sm:$0xf]
    %v887 = vld [vmem:[#allocation11 + $0x3c] sm:$0xff]
    %v888 = vld [vmem:[#allocation11 + $0x44] sm:$0xf]
    %v889 = vld [vmem:[#allocation11 + $0x48] sm:$0xff]
    %v890 = vld [vmem:[#allocation11 + $0x50] sm:$0xf]
    %v891 = vld [vmem:[#allocation11 + $0x54] sm:$0xff]
    %v892 = vld [vmem:[#allocation11 + $0x5c] sm:$0xf]
    %v893 = vld [vmem:[#allocation11 + $0x60] sm:$0xff]
    %v894 = vld [vmem:[#allocation11 + $0x68] sm:$0xf]
    %v895 = vld [vmem:[#allocation11 + $0x6c] sm:$0xff]
    %v896 = vld [vmem:[#allocation11 + $0x74] sm:$0xf]
    %v897 = vld [vmem:[#allocation11 + $0x78] sm:$0xff]
    %v898 = vld [vmem:[#allocation11 + $0x80] sm:$0xf]
    %v899 = vld [vmem:[#allocation11 + $0x84] sm:$0xff]
    %v900 = vld [vmem:[#allocation11 + $0x8c] sm:$0xf]
    %v901 = vld [vmem:[#allocation11 + $0x90] sm:$0xff]
    %v902 = vld [vmem:[#allocation11 + $0x98] sm:$0xf]
    %v903 = vld [vmem:[#allocation11 + $0x9c] sm:$0xff]
    %v904 = vld [vmem:[#allocation11 + $0xa4] sm:$0xf]
    %v905 = vld [vmem:[#allocation11 + $0xa8] sm:$0xff]
    %v906 = vld [vmem:[#allocation11 + $0xb0] sm:$0xf]
    %v907 = vld [vmem:[#allocation11 + $0xb4] sm:$0xff]
    %v908 = vld [vmem:[#allocation11 + $0xbc] sm:$0xf]
    %s909 = scalar_lea.vmem [#allocation6], 6
    %v910 = vld [vmem:[%s909] ss:$8 sm:$0x7]
    %v912 = vperm.slane %v910, 0
    %v913 = vperm.slane %v910, 1
    %v914 = vperm.slane %v910, 2
    %v950 = vunpack.c.l.b16 %v877
    %v951 = vunpack.c.h.b16 %v877
    %v952 = vunpack.c.l.b16 %v878
    %v953 = vunpack.c.l.b16 %v879
    %v954 = vunpack.c.h.b16 %v879
    %v955 = vunpack.c.l.b16 %v880
    %v956 = vunpack.c.l.b16 %v881
    %v957 = vunpack.c.h.b16 %v881
    %v958 = vunpack.c.l.b16 %v882
    %v959 = vunpack.c.l.b16 %v883
    %v960 = vunpack.c.h.b16 %v883
    %v961 = vunpack.c.l.b16 %v884
    %v962 = vunpack.c.l.b16 %v885
    %v963 = vunpack.c.h.b16 %v885
    %v964 = vunpack.c.l.b16 %v886
    %v965 = vunpack.c.l.b16 %v887
    %v966 = vunpack.c.h.b16 %v887
    %v967 = vunpack.c.l.b16 %v888
    %v968 = vunpack.c.l.b16 %v889
    %v969 = vunpack.c.h.b16 %v889
    %v970 = vunpack.c.l.b16 %v890
    %v971 = vunpack.c.l.b16 %v891
    %v972 = vunpack.c.h.b16 %v891
    %v973 = vunpack.c.l.b16 %v892
    %v974 = vunpack.c.l.b16 %v893
    %v975 = vunpack.c.h.b16 %v893
    %v976 = vunpack.c.l.b16 %v894
    %v977 = vunpack.c.l.b16 %v895
    %v978 = vunpack.c.h.b16 %v895
    %v979 = vunpack.c.l.b16 %v896
    %v980 = vunpack.c.l.b16 %v897
    %v981 = vunpack.c.h.b16 %v897
    %v982 = vunpack.c.l.b16 %v898
    %v983 = vunpack.c.l.b16 %v899
    %v984 = vunpack.c.h.b16 %v899
    %v985 = vunpack.c.l.b16 %v900
    %v986 = vunpack.c.l.b16 %v901
    %v987 = vunpack.c.h.b16 %v901
    %v988 = vunpack.c.l.b16 %v902
    %v989 = vunpack.c.l.b16 %v903
    %v990 = vunpack.c.h.b16 %v903
    %v991 = vunpack.c.l.b16 %v904
    %v992 = vunpack.c.l.b16 %v905
    %v993 = vunpack.c.h.b16 %v905
    %v994 = vunpack.c.l.b16 %v906
    %v995 = vunpack.c.l.b16 %v907
    %v996 = vunpack.c.h.b16 %v907
    %v997 = vunpack.c.l.b16 %v908
    %v998 = vpack.c.b16 %v953, %v950
    %v999 = vpack.c.b16 %v954, %v951
    %v1000 = vpack.c.b16 %v955, %v952
    %v1001 = vpack.c.b16 %v959, %v956
    %v1002 = vpack.c.b16 %v960, %v957
    %v1003 = vpack.c.b16 %v961, %v958
    %v1004 = vpack.c.b16 %v965, %v962
    %v1005 = vpack.c.b16 %v966, %v963
    %v1006 = vpack.c.b16 %v967, %v964
    %v1007 = vpack.c.b16 %v971, %v968
    %v1008 = vpack.c.b16 %v972, %v969
    %v1009 = vpack.c.b16 %v973, %v970
    %v1010 = vpack.c.b16 %v977, %v974
    %v1011 = vpack.c.b16 %v978, %v975
    %v1012 = vpack.c.b16 %v979, %v976
    %v1013 = vpack.c.b16 %v983, %v980
    %v1014 = vpack.c.b16 %v984, %v981
    %v1015 = vpack.c.b16 %v985, %v982
    %v1016 = vpack.c.b16 %v989, %v986
    %v1017 = vpack.c.b16 %v990, %v987
    %v1018 = vpack.c.b16 %v991, %v988
    %v1019 = vpack.c.b16 %v995, %v992
    %v1020 = vpack.c.b16 %v996, %v993
    %v1021 = vpack.c.b16 %v997, %v994
    %1046 = vmatpush.bf16.msra.mxu0 %v1019
    %1047 = vmatpush.bf16.msra.mxu0 %v1016
    %1048 = vmatpush.bf16.msra.mxu0 %v1013
    %1049 = vmatpush.bf16.msra.mxu0 %v1010
    %1050 = vmatpush.bf16.msra.mxu0 %v1007
    %1051 = vmatpush.bf16.msra.mxu0 %v1004
    %1052 = vmatpush.bf16.msra.mxu0 %v1001
    %1053 = vmatpush.bf16.msra.mxu0 %v998
    %1054 = vmatmul.bf16.gmra.mxu0 %v875
    %v1055 = vpop.f32.mrf.mxu0
    %v1056 = vadd.f32 %v912, %v1055
    %v1057 = vpop.f32.mrf.mxu0
    %v1058 = vadd.f32 %v912, %v1057
    %1059 = vmatmul.bf16.gmra.mxu0 %v876
    %v1060 = vpop.f32.mrf.mxu0
    %v1061 = vadd.f32 %v912, %v1060
    %v1062 = vpop.f32.mrf.mxu0
    %v1063 = vadd.f32 %v912, %v1062
    %1064 = vdwg.mxu0
    %1065 = vmatpush.bf16.msra.mxu0 %v1020
    %1066 = vmatpush.bf16.msra.mxu0 %v1017
    %1067 = vmatpush.bf16.msra.mxu0 %v1014
    %1068 = vmatpush.bf16.msra.mxu0 %v1011
    %1069 = vmatpush.bf16.msra.mxu0 %v1008
    %1070 = vmatpush.bf16.msra.mxu0 %v1005
    %1071 = vmatpush.bf16.msra.mxu0 %v1002
    %1072 = vmatpush.bf16.msra.mxu0 %v999
    %1073 = vmatmul.bf16.gmra.mxu0 %v875
    %v1074 = vpop.f32.mrf.mxu0
    %v1075 = vadd.f32 %v913, %v1074
    %v1076 = vpop.f32.mrf.mxu0
    %v1077 = vadd.f32 %v913, %v1076
    %1078 = vmatmul.bf16.gmra.mxu0 %v876
    %v1079 = vpop.f32.mrf.mxu0
    %v1080 = vadd.f32 %v913, %v1079
    %v1081 = vpop.f32.mrf.mxu0
    %v1082 = vadd.f32 %v913, %v1081
    %1083 = vdwg.mxu0
    %1084 = vmatpush.bf16.msra.mxu0 %v1021
    %1085 = vmatpush.bf16.msra.mxu0 %v1018
    %1086 = vmatpush.bf16.msra.mxu0 %v1015
    %1087 = vmatpush.bf16.msra.mxu0 %v1012
    %1088 = vmatpush.bf16.msra.mxu0 %v1009
    %1089 = vmatpush.bf16.msra.mxu0 %v1006
    %1090 = vmatpush.bf16.msra.mxu0 %v1003
    %1091 = vmatpush.bf16.msra.mxu0 %v1000
    %1092 = vmatmul.bf16.gmra.mxu0 %v875
    %v1093 = vpop.f32.mrf.mxu0
    %v1094 = vadd.f32 %v914, %v1093
    %v1095 = vpop.f32.mrf.mxu0
    %v1096 = vadd.f32 %v914, %v1095
    %1097 = vmatmul.bf16.gmra.mxu0 %v876
    %v1098 = vpop.f32.mrf.mxu0
    %v1099 = vadd.f32 %v914, %v1098
    %v1100 = vpop.f32.mrf.mxu0
    %v1101 = vadd.f32 %v914, %v1100
    %1102 = vdwg.mxu0
    %v1103 = vpack.c.bf16 %v1075, %v1056
    %v1104 = vpack.c.bf16 %v1094, %v1094
    %v1105 = vpack.c.bf16 %v1077, %v1058
    %v1106 = vpack.c.bf16 %v1096, %v1096
    %v1107 = vpack.c.bf16 %v1080, %v1061
    %v1108 = vpack.c.bf16 %v1099, %v1099
    %v1109 = vpack.c.bf16 %v1082, %v1063
    %v1110 = vpack.c.bf16 %v1101, %v1101
    %v1111 = vld [vmem:[#allocation3] sm:$0x1]
    %vm1112 = vcmp.gt.f32.partialorder %v1111, 0.0
    %v1115 = vunpack.c.l.b16 %v1103
    %v1116 = vunpack.c.l.b16 %v1105
    %v1117 = vpack.c.b16 %v1116, %v1115
    %v1118 = vunpack.c.h.b16 %v1103
    %v1119 = vunpack.c.h.b16 %v1105
    %v1120 = vpack.c.b16 %v1119, %v1118
    %vm1121 = vcmask 261120
    %v1123 = vsel %vm1121, %v1117, 0
    %v1126 = vsel %vm1121, %v1120, 0
    %1128 = vmatpush.bf16.xpose.msra.mxu0 0
    %1129 = vmatpush.bf16.xpose.msra.mxu0 0
    %1130 = vmatpush.bf16.xpose.msra.mxu0 0
    %1131 = vmatpush.bf16.xpose.msra.mxu0 0
    %1132 = vmatpush.bf16.xpose.msra.mxu0 0
    %1133 = vmatpush.bf16.xpose.msra.mxu0 0
    %1134 = vmatpush.bf16.xpose.msra.mxu0 0
    %1135 = vmatpush.bf16.xpose.msra.mxu0 %v1126
    %1136 = vmatmul.bf16.gmra.mxu0 %v1123
    %v1137 = vpop.f32.mrf.mxu0
    %v1138 = vadd.f32 0.0, %v1137
    %v1139 = vpop.f32.mrf.mxu0
    %v1140 = vadd.f32 0.0, %v1139
    %1141 = vdwg.mxu0
    %v1142 = vmul.f32 %v1138, 0.17677669
    %v1143 = vmul.f32 %v1140, 0.17677669
    %v1144 = vsel %vm1112, 1, 0
    %v1145 = vperm.slane %v1144, 0
    %vm1146 = vcmp.eq.s32.totalorder %v1145, 1
    %v1147 = vsel %vm1146, %v1142, -3.4028235e+38
    %v1148 = vsel %vm1146, %v1143, -3.4028235e+38
    %vm1149 = vcmask 130048
    %v1150 = vsel %vm1149, %v1147, -inf
    %1151 = vmax.xlane.f32.xlu0 %v1150
    %v1152 = vpop.xlane.xlu0 %1151
    %v1153 = vsel %vm1149, %v1148, -inf
    %1154 = vmax.xlane.f32.xlu0 %v1153
    %v1155 = vpop.xlane.xlu0 %1154
    %v1156 = vsub.f32 %v1147, %v1152
    %v1157 = vsub.f32 %v1148, %v1155
    %v1158 = vmul.f32 %v1156, 1.442695
    %v1159 = vpow.pop %v1158
    %v1160 = vmul.f32 %v1157, 1.442695
    %v1161 = vpow.pop %v1160
    %v1162 = vsel %vm1149, %v1159, 0.0
    %1163 = vadd.xlane.f32.xlu0 %v1162
    %v1164 = vpop.xlane.xlu0 %1163
    %v1165 = vsel %vm1149, %v1161, 0.0
    %1166 = vadd.xlane.f32.xlu0 %v1165
    %v1167 = vpop.xlane.xlu0 %1166
    %v1168 = vrcp.pop %v1164
    %v1169 = vrcp.pop %v1167
    %v1170 = vmul.f32 %v1159, %v1168
    %v1171 = vmul.f32 %v1161, %v1169
    %v1172 = vsel %vm1146, %v1170, 0.0
    %v1173 = vsel %vm1146, %v1171, 0.0
    %v1174 = vpack.c.bf16 %v1173, %v1172
    %v1177 = vunpack.c.l.b16 %v1104
    %v1178 = vunpack.c.l.b16 %v1106
    %v1179 = vpack.c.b16 %v1178, %v1177
    %v1182 = vsel %vm1149, %v1174, 0
    %1184 = vmatpush.bf16.msra.mxu0 0
    %1185 = vmatpush.bf16.msra.mxu0 0
    %1186 = vmatpush.bf16.msra.mxu0 0
    %1187 = vmatpush.bf16.msra.mxu0 0
    %1188 = vmatpush.bf16.msra.mxu0 0
    %1189 = vmatpush.bf16.msra.mxu0 0
    %1190 = vmatpush.bf16.msra.mxu0 0
    %1191 = vmatpush.bf16.msra.mxu0 %v1179
    %1192 = vmatmul.bf16.gmra.mxu0 %v1182
    %v1193 = vpop.f32.mrf.mxu0
    %v1194 = vadd.f32 0.0, %v1193
    %v1195 = vpop.f32.mrf.mxu0
    %v1196 = vadd.f32 0.0, %v1195
    %1197 = vdwg.mxu0
    %1198 = vst.msk [vmem:[#allocation2] sm:$0xff] %vm1121, %v1194
    %1199 = vst.msk [vmem:[#allocation2 + $0x8] sm:$0xff] %vm1121, %v1196
    %1200 = vrot.lane.b32.xlu0 %v1117, 96
    %v1201 = vpop.permute.xlu0 %1200
    %1202 = vrot.lane.b32.xlu0 %v1120, 96
    %v1203 = vpop.permute.xlu0 %1202
    %v1205 = vsel %vm1121, %v1201, 0
    %v1208 = vsel %vm1121, %v1203, 0
    %1210 = vmatpush.bf16.xpose.msra.mxu0 0
    %1211 = vmatpush.bf16.xpose.msra.mxu0 0
    %1212 = vmatpush.bf16.xpose.msra.mxu0 0
    %1213 = vmatpush.bf16.xpose.msra.mxu0 0
    %1214 = vmatpush.bf16.xpose.msra.mxu0 0
    %1215 = vmatpush.bf16.xpose.msra.mxu0 0
    %1216 = vmatpush.bf16.xpose.msra.mxu0 0
    %1217 = vmatpush.bf16.xpose.msra.mxu0 %v1208
    %1218 = vmatmul.bf16.gmra.mxu0 %v1205
    %v1219 = vpop.f32.mrf.mxu0
    %v1220 = vadd.f32 0.0, %v1219
    %v1221 = vpop.f32.mrf.mxu0
    %v1222 = vadd.f32 0.0, %v1221
    %1223 = vdwg.mxu0
    %v1224 = vmul.f32 %v1220, 0.17677669
    %v1225 = vmul.f32 %v1222, 0.17677669
    %v1226 = vsel %vm1146, %v1224, -3.4028235e+38
    %v1227 = vsel %vm1146, %v1225, -3.4028235e+38
    %v1228 = vsel %vm1149, %v1226, -inf
    %1229 = vmax.xlane.f32.xlu0 %v1228
    %v1230 = vpop.xlane.xlu0 %1229
    %v1231 = vsel %vm1149, %v1227, -inf
    %1232 = vmax.xlane.f32.xlu0 %v1231
    %v1233 = vpop.xlane.xlu0 %1232
    %v1234 = vsub.f32 %v1226, %v1230
    %v1235 = vsub.f32 %v1227, %v1233
    %v1236 = vmul.f32 %v1234, 1.442695
    %v1237 = vpow.pop %v1236
    %v1238 = vmul.f32 %v1235, 1.442695
    %v1239 = vpow.pop %v1238
    %v1240 = vsel %vm1149, %v1237, 0.0
    %1241 = vadd.xlane.f32.xlu0 %v1240
    %v1242 = vpop.xlane.xlu0 %1241
    %v1243 = vsel %vm1149, %v1239, 0.0
    %1244 = vadd.xlane.f32.xlu0 %v1243
    %v1245 = vpop.xlane.xlu0 %1244
    %v1246 = vrcp.pop %v1242
    %v1247 = vrcp.pop %v1245
    %v1248 = vmul.f32 %v1237, %v1246
    %v1249 = vmul.f32 %v1239, %v1247
    %v1250 = vsel %vm1146, %v1248, 0.0
    %v1251 = vsel %vm1146, %v1249, 0.0
    %v1252 = vpack.c.bf16 %v1251, %v1250
    %1253 = vrot.lane.b32.xlu0 %v1179, 96
    %v1254 = vpop.permute.xlu0 %1253
    %v1257 = vsel %vm1149, %v1252, 0
    %1259 = vmatpush.bf16.msra.mxu0 0
    %1260 = vmatpush.bf16.msra.mxu0 0
    %1261 = vmatpush.bf16.msra.mxu0 0
    %1262 = vmatpush.bf16.msra.mxu0 0
    %1263 = vmatpush.bf16.msra.mxu0 0
    %1264 = vmatpush.bf16.msra.mxu0 0
    %1265 = vmatpush.bf16.msra.mxu0 0
    %1266 = vmatpush.bf16.msra.mxu0 %v1254
    %1267 = vmatmul.bf16.gmra.mxu0 %v1257
    %v1268 = vpop.f32.mrf.mxu0
    %v1269 = vadd.f32 0.0, %v1268
    %v1270 = vpop.f32.mrf.mxu0
    %v1271 = vadd.f32 0.0, %v1270
    %1272 = vdwg.mxu0
    %1275 = vrot.lane.b32.xlu0 %v1269, 32
    %v1276 = vpop.permute.xlu0 %1275
    %1277 = vrot.lane.b32.xlu0 %v1271, 32
    %v1278 = vpop.permute.xlu0 %1277
    %vm1281 = vcmask 523520
    %1282 = vst.msk [vmem:[#allocation2] sm:$0xff] %vm1281, %v1276
    %1283 = vst.msk [vmem:[#allocation2 + $0x8] sm:$0xff] %vm1281, %v1278
    %1284 = vrot.lane.b32.xlu0 %v1117, 64
    %v1285 = vpop.permute.xlu0 %1284
    %1286 = vrot.lane.b32.xlu0 %v1120, 64
    %v1287 = vpop.permute.xlu0 %1286
    %v1289 = vsel %vm1121, %v1285, 0
    %v1292 = vsel %vm1121, %v1287, 0
    %1294 = vmatpush.bf16.xpose.msra.mxu0 0
    %1295 = vmatpush.bf16.xpose.msra.mxu0 0
    %1296 = vmatpush.bf16.xpose.msra.mxu0 0
    %1297 = vmatpush.bf16.xpose.msra.mxu0 0
    %1298 = vmatpush.bf16.xpose.msra.mxu0 0
    %1299 = vmatpush.bf16.xpose.msra.mxu0 0
    %1300 = vmatpush.bf16.xpose.msra.mxu0 0
    %1301 = vmatpush.bf16.xpose.msra.mxu0 %v1292
    %1302 = vmatmul.bf16.gmra.mxu0 %v1289
    %v1303 = vpop.f32.mrf.mxu0
    %v1304 = vadd.f32 0.0, %v1303
    %v1305 = vpop.f32.mrf.mxu0
    %v1306 = vadd.f32 0.0, %v1305
    %1307 = vdwg.mxu0
    %v1308 = vmul.f32 %v1304, 0.17677669
    %v1309 = vmul.f32 %v1306, 0.17677669
    %v1310 = vsel %vm1146, %v1308, -3.4028235e+38
    %v1311 = vsel %vm1146, %v1309, -3.4028235e+38
    %v1312 = vsel %vm1149, %v1310, -inf
    %1313 = vmax.xlane.f32.xlu0 %v1312
    %v1314 = vpop.xlane.xlu0 %1313
    %v1315 = vsel %vm1149, %v1311, -inf
    %1316 = vmax.xlane.f32.xlu0 %v1315
    %v1317 = vpop.xlane.xlu0 %1316
    %v1318 = vsub.f32 %v1310, %v1314
    %v1319 = vsub.f32 %v1311, %v1317
    %v1320 = vmul.f32 %v1318, 1.442695
    %v1321 = vpow.pop %v1320
    %v1322 = vmul.f32 %v1319, 1.442695
    %v1323 = vpow.pop %v1322
    %v1324 = vsel %vm1149, %v1321, 0.0
    %1325 = vadd.xlane.f32.xlu0 %v1324
    %v1326 = vpop.xlane.xlu0 %1325
    %v1327 = vsel %vm1149, %v1323, 0.0
    %1328 = vadd.xlane.f32.xlu0 %v1327
    %v1329 = vpop.xlane.xlu0 %1328
    %v1330 = vrcp.pop %v1326
    %v1331 = vrcp.pop %v1329
    %v1332 = vmul.f32 %v1321, %v1330
    %v1333 = vmul.f32 %v1323, %v1331
    %v1334 = vsel %vm1146, %v1332, 0.0
    %v1335 = vsel %vm1146, %v1333, 0.0
    %v1336 = vpack.c.bf16 %v1335, %v1334
    %1337 = vrot.lane.b32.xlu0 %v1179, 64
    %v1338 = vpop.permute.xlu0 %1337
    %v1341 = vsel %vm1149, %v1336, 0
    %1343 = vmatpush.bf16.msra.mxu0 0
    %1344 = vmatpush.bf16.msra.mxu0 0
    %1345 = vmatpush.bf16.msra.mxu0 0
    %1346 = vmatpush.bf16.msra.mxu0 0
    %1347 = vmatpush.bf16.msra.mxu0 0
    %1348 = vmatpush.bf16.msra.mxu0 0
    %1349 = vmatpush.bf16.msra.mxu0 0
    %1350 = vmatpush.bf16.msra.mxu0 %v1338
    %1351 = vmatmul.bf16.gmra.mxu0 %v1341
    %v1352 = vpop.f32.mrf.mxu0
    %v1353 = vadd.f32 0.0, %v1352
    %v1354 = vpop.f32.mrf.mxu0
    %v1355 = vadd.f32 0.0, %v1354
    %1356 = vdwg.mxu0
    %1359 = vrot.lane.b32.xlu0 %v1353, 64
    %v1360 = vpop.permute.xlu0 %1359
    %1361 = vrot.lane.b32.xlu0 %v1355, 64
    %v1362 = vpop.permute.xlu0 %1361
    %vm1365 = vcmask 785920
    %1366 = vst.msk [vmem:[#allocation2] sm:$0xff] %vm1365, %v1360
    %1367 = vst.msk [vmem:[#allocation2 + $0x8] sm:$0xff] %vm1365, %v1362
    %1368 = vrot.lane.b32.xlu0 %v1117, 32
    %v1369 = vpop.permute.xlu0 %1368
    %1370 = vrot.lane.b32.xlu0 %v1120, 32
    %v1371 = vpop.permute.xlu0 %1370
    %v1373 = vsel %vm1121, %v1369, 0
    %v1376 = vsel %vm1121, %v1371, 0
    %1378 = vmatpush.bf16.xpose.msra.mxu0 0
    %1379 = vmatpush.bf16.xpose.msra.mxu0 0
    %1380 = vmatpush.bf16.xpose.msra.mxu0 0
    %1381 = vmatpush.bf16.xpose.msra.mxu0 0
    %1382 = vmatpush.bf16.xpose.msra.mxu0 0
    %1383 = vmatpush.bf16.xpose.msra.mxu0 0
    %1384 = vmatpush.bf16.xpose.msra.mxu0 0
    %1385 = vmatpush.bf16.xpose.msra.mxu0 %v1376
    %1386 = vmatmul.bf16.gmra.mxu0 %v1373
    %v1387 = vpop.f32.mrf.mxu0
    %v1388 = vadd.f32 0.0, %v1387
    %v1389 = vpop.f32.mrf.mxu0
    %v1390 = vadd.f32 0.0, %v1389
    %1391 = vdwg.mxu0
    %v1392 = vmul.f32 %v1388, 0.17677669
    %v1393 = vmul.f32 %v1390, 0.17677669
    %v1394 = vsel %vm1146, %v1392, -3.4028235e+38
    %v1395 = vsel %vm1146, %v1393, -3.4028235e+38
    %v1396 = vsel %vm1149, %v1394, -inf
    %1397 = vmax.xlane.f32.xlu0 %v1396
    %v1398 = vpop.xlane.xlu0 %1397
    %v1399 = vsel %vm1149, %v1395, -inf
    %1400 = vmax.xlane.f32.xlu0 %v1399
    %v1401 = vpop.xlane.xlu0 %1400
    %v1402 = vsub.f32 %v1394, %v1398
    %v1403 = vsub.f32 %v1395, %v1401
    %v1404 = vmul.f32 %v1402, 1.442695
    %v1405 = vpow.pop %v1404
    %v1406 = vmul.f32 %v1403, 1.442695
    %v1407 = vpow.pop %v1406
    %v1408 = vsel %vm1149, %v1405, 0.0
    %1409 = vadd.xlane.f32.xlu0 %v1408
    %v1410 = vpop.xlane.xlu0 %1409
    %v1411 = vsel %vm1149, %v1407, 0.0
    %1412 = vadd.xlane.f32.xlu0 %v1411
    %v1413 = vpop.xlane.xlu0 %1412
    %v1414 = vrcp.pop %v1410
    %v1415 = vrcp.pop %v1413
    %v1416 = vmul.f32 %v1405, %v1414
    %v1417 = vmul.f32 %v1407, %v1415
    %v1418 = vsel %vm1146, %v1416, 0.0
    %v1419 = vsel %vm1146, %v1417, 0.0
    %v1420 = vpack.c.bf16 %v1419, %v1418
    %1421 = vrot.lane.b32.xlu0 %v1179, 32
    %v1422 = vpop.permute.xlu0 %1421
    %v1425 = vsel %vm1149, %v1420, 0
    %1427 = vmatpush.bf16.msra.mxu0 0
    %1428 = vmatpush.bf16.msra.mxu0 0
    %1429 = vmatpush.bf16.msra.mxu0 0
    %1430 = vmatpush.bf16.msra.mxu0 0
    %1431 = vmatpush.bf16.msra.mxu0 0
    %1432 = vmatpush.bf16.msra.mxu0 0
    %1433 = vmatpush.bf16.msra.mxu0 0
    %1434 = vmatpush.bf16.msra.mxu0 %v1422
    %1435 = vmatmul.bf16.gmra.mxu0 %v1425
    %v1436 = vpop.f32.mrf.mxu0
    %v1437 = vadd.f32 0.0, %v1436
    %v1438 = vpop.f32.mrf.mxu0
    %v1439 = vadd.f32 0.0, %v1438
    %1440 = vdwg.mxu0
    %1443 = vrot.lane.b32.xlu0 %v1437, 96
    %v1444 = vpop.permute.xlu0 %1443
    %1445 = vrot.lane.b32.xlu0 %v1439, 96
    %v1446 = vpop.permute.xlu0 %1445
    %vm1449 = vcmask 1048320
    %1450 = vst.msk [vmem:[#allocation2] sm:$0xff] %vm1449, %v1444
    %1451 = vst.msk [vmem:[#allocation2 + $0x8] sm:$0xff] %vm1449, %v1446
    %s1452 = scalar_lea.vmem [#allocation3], 1
    %v1453 = vld [vmem:[%s1452] sm:$0x1]
    %vm1454 = vcmp.gt.f32.partialorder %v1453, 0.0
    %v1457 = vunpack.c.l.b16 %v1107
    %v1458 = vunpack.c.l.b16 %v1109
    %v1459 = vpack.c.b16 %v1458, %v1457
    %v1460 = vunpack.c.h.b16 %v1107
    %v1461 = vunpack.c.h.b16 %v1109
    %v1462 = vpack.c.b16 %v1461, %v1460
    %v1464 = vsel %vm1121, %v1459, 0
    %v1467 = vsel %vm1121, %v1462, 0
    %1469 = vmatpush.bf16.xpose.msra.mxu0 0
    %1470 = vmatpush.bf16.xpose.msra.mxu0 0
    %1471 = vmatpush.bf16.xpose.msra.mxu0 0
    %1472 = vmatpush.bf16.xpose.msra.mxu0 0
    %1473 = vmatpush.bf16.xpose.msra.mxu0 0
    %1474 = vmatpush.bf16.xpose.msra.mxu0 0
    %1475 = vmatpush.bf16.xpose.msra.mxu0 0
    %1476 = vmatpush.bf16.xpose.msra.mxu0 %v1467
    %1477 = vmatmul.bf16.gmra.mxu0 %v1464
    %v1478 = vpop.f32.mrf.mxu0
    %v1479 = vadd.f32 0.0, %v1478
    %v1480 = vpop.f32.mrf.mxu0
    %v1481 = vadd.f32 0.0, %v1480
    %1482 = vdwg.mxu0
    %v1483 = vmul.f32 %v1479, 0.17677669
    %v1484 = vmul.f32 %v1481, 0.17677669
    %v1485 = vsel %vm1454, 1, 0
    %v1486 = vperm.slane %v1485, 0
    %vm1487 = vcmp.eq.s32.totalorder %v1486, 1
    %v1488 = vsel %vm1487, %v1483, -3.4028235e+38
    %v1489 = vsel %vm1487, %v1484, -3.4028235e+38
    %v1490 = vsel %vm1149, %v1488, -inf
    %1491 = vmax.xlane.f32.xlu0 %v1490
    %v1492 = vpop.xlane.xlu0 %1491
    %v1493 = vsel %vm1149, %v1489, -inf
    %1494 = vmax.xlane.f32.xlu0 %v1493
    %v1495 = vpop.xlane.xlu0 %1494
    %v1496 = vsub.f32 %v1488, %v1492
    %v1497 = vsub.f32 %v1489, %v1495
    %v1498 = vmul.f32 %v1496, 1.442695
    %v1499 = vpow.pop %v1498
    %v1500 = vmul.f32 %v1497, 1.442695
    %v1501 = vpow.pop %v1500
    %v1502 = vsel %vm1149, %v1499, 0.0
    %1503 = vadd.xlane.f32.xlu0 %v1502
    %v1504 = vpop.xlane.xlu0 %1503
    %v1505 = vsel %vm1149, %v1501, 0.0
    %1506 = vadd.xlane.f32.xlu0 %v1505
    %v1507 = vpop.xlane.xlu0 %1506
    %v1508 = vrcp.pop %v1504
    %v1509 = vrcp.pop %v1507
    %v1510 = vmul.f32 %v1499, %v1508
    %v1511 = vmul.f32 %v1501, %v1509
    %v1512 = vsel %vm1487, %v1510, 0.0
    %v1513 = vsel %vm1487, %v1511, 0.0
    %v1514 = vpack.c.bf16 %v1513, %v1512
    %v1517 = vunpack.c.l.b16 %v1108
    %v1518 = vunpack.c.l.b16 %v1110
    %v1519 = vpack.c.b16 %v1518, %v1517
    %v1522 = vsel %vm1149, %v1514, 0
    %1524 = vmatpush.bf16.msra.mxu0 0
    %1525 = vmatpush.bf16.msra.mxu0 0
    %1526 = vmatpush.bf16.msra.mxu0 0
    %1527 = vmatpush.bf16.msra.mxu0 0
    %1528 = vmatpush.bf16.msra.mxu0 0
    %1529 = vmatpush.bf16.msra.mxu0 0
    %1530 = vmatpush.bf16.msra.mxu0 0
    %1531 = vmatpush.bf16.msra.mxu0 %v1519
    %1532 = vmatmul.bf16.gmra.mxu0 %v1522
    %v1533 = vpop.f32.mrf.mxu0
    %v1534 = vadd.f32 0.0, %v1533
    %v1535 = vpop.f32.mrf.mxu0
    %v1536 = vadd.f32 0.0, %v1535
    %1537 = vdwg.mxu0
    %1538 = vst.msk [vmem:[#allocation2 + $0x10] sm:$0xff] %vm1121, %v1534
    %1539 = vst.msk [vmem:[#allocation2 + $0x18] sm:$0xff] %vm1121, %v1536
    %1540 = vrot.lane.b32.xlu0 %v1459, 96
    %v1541 = vpop.permute.xlu0 %1540
    %1542 = vrot.lane.b32.xlu0 %v1462, 96
    %v1543 = vpop.permute.xlu0 %1542
    %v1545 = vsel %vm1121, %v1541, 0
    %v1548 = vsel %vm1121, %v1543, 0
    %1550 = vmatpush.bf16.xpose.msra.mxu0 0
    %1551 = vmatpush.bf16.xpose.msra.mxu0 0
    %1552 = vmatpush.bf16.xpose.msra.mxu0 0
    %1553 = vmatpush.bf16.xpose.msra.mxu0 0
    %1554 = vmatpush.bf16.xpose.msra.mxu0 0
    %1555 = vmatpush.bf16.xpose.msra.mxu0 0
    %1556 = vmatpush.bf16.xpose.msra.mxu0 0
    %1557 = vmatpush.bf16.xpose.msra.mxu0 %v1548
    %1558 = vmatmul.bf16.gmra.mxu0 %v1545
    %v1559 = vpop.f32.mrf.mxu0
    %v1560 = vadd.f32 0.0, %v1559
    %v1561 = vpop.f32.mrf.mxu0
    %v1562 = vadd.f32 0.0, %v1561
    %1563 = vdwg.mxu0
    %v1564 = vmul.f32 %v1560, 0.17677669
    %v1565 = vmul.f32 %v1562, 0.17677669
    %v1566 = vsel %vm1487, %v1564, -3.4028235e+38
    %v1567 = vsel %vm1487, %v1565, -3.4028235e+38
    %v1568 = vsel %vm1149, %v1566, -inf
    %1569 = vmax.xlane.f32.xlu0 %v1568
    %v1570 = vpop.xlane.xlu0 %1569
    %v1571 = vsel %vm1149, %v1567, -inf
    %1572 = vmax.xlane.f32.xlu0 %v1571
    %v1573 = vpop.xlane.xlu0 %1572
    %v1574 = vsub.f32 %v1566, %v1570
    %v1575 = vsub.f32 %v1567, %v1573
    %v1576 = vmul.f32 %v1574, 1.442695
    %v1577 = vpow.pop %v1576
    %v1578 = vmul.f32 %v1575, 1.442695
    %v1579 = vpow.pop %v1578
    %v1580 = vsel %vm1149, %v1577, 0.0
    %1581 = vadd.xlane.f32.xlu0 %v1580
    %v1582 = vpop.xlane.xlu0 %1581
    %v1583 = vsel %vm1149, %v1579, 0.0
    %1584 = vadd.xlane.f32.xlu0 %v1583
    %v1585 = vpop.xlane.xlu0 %1584
    %v1586 = vrcp.pop %v1582
    %v1587 = vrcp.pop %v1585
    %v1588 = vmul.f32 %v1577, %v1586
    %v1589 = vmul.f32 %v1579, %v1587
    %v1590 = vsel %vm1487, %v1588, 0.0
    %v1591 = vsel %vm1487, %v1589, 0.0
    %v1592 = vpack.c.bf16 %v1591, %v1590
    %1593 = vrot.lane.b32.xlu0 %v1519, 96
    %v1594 = vpop.permute.xlu0 %1593
    %v1597 = vsel %vm1149, %v1592, 0
    %1599 = vmatpush.bf16.msra.mxu0 0
    %1600 = vmatpush.bf16.msra.mxu0 0
    %1601 = vmatpush.bf16.msra.mxu0 0
    %1602 = vmatpush.bf16.msra.mxu0 0
    %1603 = vmatpush.bf16.msra.mxu0 0
    %1604 = vmatpush.bf16.msra.mxu0 0
    %1605 = vmatpush.bf16.msra.mxu0 0
    %1606 = vmatpush.bf16.msra.mxu0 %v1594
    %1607 = vmatmul.bf16.gmra.mxu0 %v1597
    %v1608 = vpop.f32.mrf.mxu0
    %v1609 = vadd.f32 0.0, %v1608
    %v1610 = vpop.f32.mrf.mxu0
    %v1611 = vadd.f32 0.0, %v1610
    %1612 = vdwg.mxu0
    %1615 = vrot.lane.b32.xlu0 %v1609, 32
    %v1616 = vpop.permute.xlu0 %1615
    %1617 = vrot.lane.b32.xlu0 %v1611, 32
    %v1618 = vpop.permute.xlu0 %1617
    %1621 = vst.msk [vmem:[#allocation2 + $0x10] sm:$0xff] %vm1281, %v1616
    %1622 = vst.msk [vmem:[#allocation2 + $0x18] sm:$0xff] %vm1281, %v1618
    %1623 = vrot.lane.b32.xlu0 %v1459, 64
    %v1624 = vpop.permute.xlu0 %1623
    %1625 = vrot.lane.b32.xlu0 %v1462, 64
    %v1626 = vpop.permute.xlu0 %1625
    %v1628 = vsel %vm1121, %v1624, 0
    %v1631 = vsel %vm1121, %v1626, 0
    %1633 = vmatpush.bf16.xpose.msra.mxu0 0
    %1634 = vmatpush.bf16.xpose.msra.mxu0 0
    %1635 = vmatpush.bf16.xpose.msra.mxu0 0
    %1636 = vmatpush.bf16.xpose.msra.mxu0 0
    %1637 = vmatpush.bf16.xpose.msra.mxu0 0
    %1638 = vmatpush.bf16.xpose.msra.mxu0 0
    %1639 = vmatpush.bf16.xpose.msra.mxu0 0
    %1640 = vmatpush.bf16.xpose.msra.mxu0 %v1631
    %1641 = vmatmul.bf16.gmra.mxu0 %v1628
    %v1642 = vpop.f32.mrf.mxu0
    %v1643 = vadd.f32 0.0, %v1642
    %v1644 = vpop.f32.mrf.mxu0
    %v1645 = vadd.f32 0.0, %v1644
    %1646 = vdwg.mxu0
    %v1647 = vmul.f32 %v1643, 0.17677669
    %v1648 = vmul.f32 %v1645, 0.17677669
    %v1649 = vsel %vm1487, %v1647, -3.4028235e+38
    %v1650 = vsel %vm1487, %v1648, -3.4028235e+38
    %v1651 = vsel %vm1149, %v1649, -inf
    %1652 = vmax.xlane.f32.xlu0 %v1651
    %v1653 = vpop.xlane.xlu0 %1652
    %v1654 = vsel %vm1149, %v1650, -inf
    %1655 = vmax.xlane.f32.xlu0 %v1654
    %v1656 = vpop.xlane.xlu0 %1655
    %v1657 = vsub.f32 %v1649, %v1653
    %v1658 = vsub.f32 %v1650, %v1656
    %v1659 = vmul.f32 %v1657, 1.442695
    %v1660 = vpow.pop %v1659
    %v1661 = vmul.f32 %v1658, 1.442695
    %v1662 = vpow.pop %v1661
    %v1663 = vsel %vm1149, %v1660, 0.0
    %1664 = vadd.xlane.f32.xlu0 %v1663
    %v1665 = vpop.xlane.xlu0 %1664
    %v1666 = vsel %vm1149, %v1662, 0.0
    %1667 = vadd.xlane.f32.xlu0 %v1666
    %v1668 = vpop.xlane.xlu0 %1667
    %v1669 = vrcp.pop %v1665
    %v1670 = vrcp.pop %v1668
    %v1671 = vmul.f32 %v1660, %v1669
    %v1672 = vmul.f32 %v1662, %v1670
    %v1673 = vsel %vm1487, %v1671, 0.0
    %v1674 = vsel %vm1487, %v1672, 0.0
    %v1675 = vpack.c.bf16 %v1674, %v1673
    %1676 = vrot.lane.b32.xlu0 %v1519, 64
    %v1677 = vpop.permute.xlu0 %1676
    %v1680 = vsel %vm1149, %v1675, 0
    %1682 = vmatpush.bf16.msra.mxu0 0
    %1683 = vmatpush.bf16.msra.mxu0 0
    %1684 = vmatpush.bf16.msra.mxu0 0
    %1685 = vmatpush.bf16.msra.mxu0 0
    %1686 = vmatpush.bf16.msra.mxu0 0
    %1687 = vmatpush.bf16.msra.mxu0 0
    %1688 = vmatpush.bf16.msra.mxu0 0
    %1689 = vmatpush.bf16.msra.mxu0 %v1677
    %1690 = vmatmul.bf16.gmra.mxu0 %v1680
    %v1691 = vpop.f32.mrf.mxu0
    %v1692 = vadd.f32 0.0, %v1691
    %v1693 = vpop.f32.mrf.mxu0
    %v1694 = vadd.f32 0.0, %v1693
    %1695 = vdwg.mxu0
    %1698 = vrot.lane.b32.xlu0 %v1692, 64
    %v1699 = vpop.permute.xlu0 %1698
    %1700 = vrot.lane.b32.xlu0 %v1694, 64
    %v1701 = vpop.permute.xlu0 %1700
    %1704 = vst.msk [vmem:[#allocation2 + $0x10] sm:$0xff] %vm1365, %v1699
    %1705 = vst.msk [vmem:[#allocation2 + $0x18] sm:$0xff] %vm1365, %v1701
    %1706 = vrot.lane.b32.xlu0 %v1459, 32
    %v1707 = vpop.permute.xlu0 %1706
    %1708 = vrot.lane.b32.xlu0 %v1462, 32
    %v1709 = vpop.permute.xlu0 %1708
    %v1711 = vsel %vm1121, %v1707, 0
    %v1714 = vsel %vm1121, %v1709, 0
    %1716 = vmatpush.bf16.xpose.msra.mxu0 0
    %1717 = vmatpush.bf16.xpose.msra.mxu0 0
    %1718 = vmatpush.bf16.xpose.msra.mxu0 0
    %1719 = vmatpush.bf16.xpose.msra.mxu0 0
    %1720 = vmatpush.bf16.xpose.msra.mxu0 0
    %1721 = vmatpush.bf16.xpose.msra.mxu0 0
    %1722 = vmatpush.bf16.xpose.msra.mxu0 0
    %1723 = vmatpush.bf16.xpose.msra.mxu0 %v1714
    %1724 = vmatmul.bf16.gmra.mxu0 %v1711
    %v1725 = vpop.f32.mrf.mxu0
    %v1726 = vadd.f32 0.0, %v1725
    %v1727 = vpop.f32.mrf.mxu0
    %v1728 = vadd.f32 0.0, %v1727
    %1729 = vdwg.mxu0
    %v1730 = vmul.f32 %v1726, 0.17677669
    %v1731 = vmul.f32 %v1728, 0.17677669
    %v1732 = vsel %vm1487, %v1730, -3.4028235e+38
    %v1733 = vsel %vm1487, %v1731, -3.4028235e+38
    %v1734 = vsel %vm1149, %v1732, -inf
    %1735 = vmax.xlane.f32.xlu0 %v1734
    %v1736 = vpop.xlane.xlu0 %1735
    %v1737 = vsel %vm1149, %v1733, -inf
    %1738 = vmax.xlane.f32.xlu0 %v1737
    %v1739 = vpop.xlane.xlu0 %1738
    %v1740 = vsub.f32 %v1732, %v1736
    %v1741 = vsub.f32 %v1733, %v1739
    %v1742 = vmul.f32 %v1740, 1.442695
    %v1743 = vpow.pop %v1742
    %v1744 = vmul.f32 %v1741, 1.442695
    %v1745 = vpow.pop %v1744
    %v1746 = vsel %vm1149, %v1743, 0.0
    %1747 = vadd.xlane.f32.xlu0 %v1746
    %v1748 = vpop.xlane.xlu0 %1747
    %v1749 = vsel %vm1149, %v1745, 0.0
    %1750 = vadd.xlane.f32.xlu0 %v1749
    %v1751 = vpop.xlane.xlu0 %1750
    %v1752 = vrcp.pop %v1748
    %v1753 = vrcp.pop %v1751
    %v1754 = vmul.f32 %v1743, %v1752
    %v1755 = vmul.f32 %v1745, %v1753
    %v1756 = vsel %vm1487, %v1754, 0.0
    %v1757 = vsel %vm1487, %v1755, 0.0
    %v1758 = vpack.c.bf16 %v1757, %v1756
    %1759 = vrot.lane.b32.xlu0 %v1519, 32
    %v1760 = vpop.permute.xlu0 %1759
    %v1763 = vsel %vm1149, %v1758, 0
    %1765 = vmatpush.bf16.msra.mxu0 0
    %1766 = vmatpush.bf16.msra.mxu0 0
    %1767 = vmatpush.bf16.msra.mxu0 0
    %1768 = vmatpush.bf16.msra.mxu0 0
    %1769 = vmatpush.bf16.msra.mxu0 0
    %1770 = vmatpush.bf16.msra.mxu0 0
    %1771 = vmatpush.bf16.msra.mxu0 0
    %1772 = vmatpush.bf16.msra.mxu0 %v1760
    %1773 = vmatmul.bf16.gmra.mxu0 %v1763
    %v1774 = vpop.f32.mrf.mxu0
    %v1775 = vadd.f32 0.0, %v1774
    %v1776 = vpop.f32.mrf.mxu0
    %v1777 = vadd.f32 0.0, %v1776
    %1778 = vdwg.mxu0
    %1781 = vrot.lane.b32.xlu0 %v1775, 96
    %v1782 = vpop.permute.xlu0 %1781
    %1783 = vrot.lane.b32.xlu0 %v1777, 96
    %v1784 = vpop.permute.xlu0 %1783
    %1787 = vst.msk [vmem:[#allocation2 + $0x10] sm:$0xff] %vm1449, %v1782
    %1788 = vst.msk [vmem:[#allocation2 + $0x18] sm:$0xff] %vm1449, %v1784
    %v1789 = vld [vmem:[#allocation2] sm:$0xff]
    %v1790 = vld [vmem:[#allocation2 + $0x8] sm:$0xff]
    %v1791 = vld [vmem:[#allocation2 + $0x10] sm:$0xff]
    %v1792 = vld [vmem:[#allocation2 + $0x18] sm:$0xff]
    %v1793 = vpack.c.bf16 %v1790, %v1789
    %v1794 = vpack.c.bf16 %v1792, %v1791
    %v1795 = vld [vmem:[#allocation12] sm:$0xf]
    %v1796 = vld [vmem:[#allocation12 + $0x4] sm:$0xf]
    %v1797 = vld [vmem:[#allocation12 + $0x8] sm:$0xf]
    %v1798 = vld [vmem:[#allocation12 + $0xc] sm:$0xf]
    %v1799 = vld [vmem:[#allocation12 + $0x10] sm:$0xf]
    %v1800 = vld [vmem:[#allocation12 + $0x14] sm:$0xf]
    %v1801 = vld [vmem:[#allocation12 + $0x18] sm:$0xf]
    %v1802 = vld [vmem:[#allocation12 + $0x1c] sm:$0xf]
    %v1803 = vld [vmem:[#allocation12 + $0x20] sm:$0xf]
    %v1804 = vld [vmem:[#allocation12 + $0x24] sm:$0xf]
    %v1805 = vld [vmem:[#allocation12 + $0x28] sm:$0xf]
    %v1806 = vld [vmem:[#allocation12 + $0x2c] sm:$0xf]
    %v1807 = vld [vmem:[#allocation12 + $0x30] sm:$0xf]
    %v1808 = vld [vmem:[#allocation12 + $0x34] sm:$0xf]
    %v1809 = vld [vmem:[#allocation12 + $0x38] sm:$0xf]
    %v1810 = vld [vmem:[#allocation12 + $0x3c] sm:$0xf]
    %v1827 = vunpack.c.l.b16 %v1795
    %v1828 = vunpack.c.l.b16 %v1796
    %v1829 = vunpack.c.l.b16 %v1797
    %v1830 = vunpack.c.l.b16 %v1798
    %v1831 = vunpack.c.l.b16 %v1799
    %v1832 = vunpack.c.l.b16 %v1800
    %v1833 = vunpack.c.l.b16 %v1801
    %v1834 = vunpack.c.l.b16 %v1802
    %v1835 = vunpack.c.l.b16 %v1803
    %v1836 = vunpack.c.l.b16 %v1804
    %v1837 = vunpack.c.l.b16 %v1805
    %v1838 = vunpack.c.l.b16 %v1806
    %v1839 = vunpack.c.l.b16 %v1807
    %v1840 = vunpack.c.l.b16 %v1808
    %v1841 = vunpack.c.l.b16 %v1809
    %v1842 = vunpack.c.l.b16 %v1810
    %v1843 = vpack.c.b16 %v1828, %v1827
    %v1844 = vpack.c.b16 %v1830, %v1829
    %v1845 = vpack.c.b16 %v1832, %v1831
    %v1846 = vpack.c.b16 %v1834, %v1833
    %v1847 = vpack.c.b16 %v1836, %v1835
    %v1848 = vpack.c.b16 %v1838, %v1837
    %v1849 = vpack.c.b16 %v1840, %v1839
    %v1850 = vpack.c.b16 %v1842, %v1841
    %1859 = vmatpush.bf16.msra.mxu0 %v1850
    %1860 = vmatpush.bf16.msra.mxu0 %v1849
    %1861 = vmatpush.bf16.msra.mxu0 %v1848
    %1862 = vmatpush.bf16.msra.mxu0 %v1847
    %1863 = vmatpush.bf16.msra.mxu0 %v1846
    %1864 = vmatpush.bf16.msra.mxu0 %v1845
    %1865 = vmatpush.bf16.msra.mxu0 %v1844
    %1866 = vmatpush.bf16.msra.mxu0 %v1843
    %1867 = vmatmul.bf16.gmra.mxu0 %v1793
    %v1868 = vpop.f32.mrf.mxu0
    %v1869 = vadd.f32 0.0, %v1868
    %v1870 = vpop.f32.mrf.mxu0
    %v1871 = vadd.f32 0.0, %v1870
    %1872 = vmatmul.bf16.gmra.mxu0 %v1794
    %v1873 = vpop.f32.mrf.mxu0
    %v1874 = vadd.f32 0.0, %v1873
    %v1875 = vpop.f32.mrf.mxu0
    %v1876 = vadd.f32 0.0, %v1875
    %1877 = vdwg.mxu0
    %v1878 = vadd.f32 %v781, %v1869
    %v1879 = vadd.f32 %v782, %v1871
    %v1880 = vadd.f32 %v783, %v1874
    %v1881 = vadd.f32 %v784, %v1876
    %v1882 = vld [vmem:[#allocation6 + $0x7] ss:$0 sm:$0xff]
    %v1883 = vadd.f32 %v1878, %v1882
    %v1884 = vadd.f32 %v1879, %v1882
    %v1885 = vadd.f32 %v1880, %v1882
    %v1886 = vadd.f32 %v1881, %v1882
    %1887 = vadd.xlane.f32.xlu0 %v1883
    %v1888 = vpop.xlane.xlu0 %1887
    %1889 = vadd.xlane.f32.xlu0 %v1884
    %v1890 = vpop.xlane.xlu0 %1889
    %1891 = vadd.xlane.f32.xlu0 %v1885
    %v1892 = vpop.xlane.xlu0 %1891
    %1893 = vadd.xlane.f32.xlu0 %v1886
    %v1894 = vpop.xlane.xlu0 %1893
    %v1895 = vmul.f32 %v1888, %v220
    %v1896 = vmul.f32 %v1890, %v220
    %v1897 = vmul.f32 %v1892, %v220
    %v1898 = vmul.f32 %v1894, %v220
    %v1899 = vsub.f32 %v1883, %v1895
    %v1900 = vsub.f32 %v1884, %v1896
    %v1901 = vsub.f32 %v1885, %v1897
    %v1902 = vsub.f32 %v1886, %v1898
    %v1903 = vmul.f32 %v1899, %v1899
    %v1904 = vmul.f32 %v1900, %v1900
    %v1905 = vmul.f32 %v1901, %v1901
    %v1906 = vmul.f32 %v1902, %v1902
    %1907 = vadd.xlane.f32.xlu0 %v1903
    %v1908 = vpop.xlane.xlu0 %1907
    %1909 = vadd.xlane.f32.xlu0 %v1904
    %v1910 = vpop.xlane.xlu0 %1909
    %1911 = vadd.xlane.f32.xlu0 %v1905
    %v1912 = vpop.xlane.xlu0 %1911
    %1913 = vadd.xlane.f32.xlu0 %v1906
    %v1914 = vpop.xlane.xlu0 %1913
    %v1915 = vmul.f32 %v1908, %v220
    %v1916 = vmul.f32 %v1910, %v220
    %v1917 = vmul.f32 %v1912, %v220
    %v1918 = vmul.f32 %v1914, %v220
    %v1919 = vadd.f32 %v1915, 1e-12
    %v1920 = vadd.f32 %v1916, 1e-12
    %v1921 = vadd.f32 %v1917, 1e-12
    %v1922 = vadd.f32 %v1918, 1e-12
    %v1923 = vrsqrt.pop %v1919
    %v1924 = vmul.f32 %v1923, %v1919
    %v1925 = vmul.f32 %v1924, %v1923
    %v1926 = vmul.f32 0.5, %v1925
    %v1927 = vsub.f32 1.5, %v1926
    %v1928 = vmul.f32 %v1923, %v1927
    %vm1929 = vweird.f32 %v1919
    %vm1930 = vweird.f32 %v1923
    %vm1931 = vmor %vm1929, %vm1930
    %v1932 = vsel %vm1931, %v1923, %v1928
    %v1933 = vrsqrt.pop %v1920
    %v1934 = vmul.f32 %v1933, %v1920
    %v1935 = vmul.f32 %v1934, %v1933
    %v1936 = vmul.f32 0.5, %v1935
    %v1937 = vsub.f32 1.5, %v1936
    %v1938 = vmul.f32 %v1933, %v1937
    %vm1939 = vweird.f32 %v1920
    %vm1940 = vweird.f32 %v1933
    %vm1941 = vmor %vm1939, %vm1940
    %v1942 = vsel %vm1941, %v1933, %v1938
    %v1943 = vrsqrt.pop %v1921
    %v1944 = vmul.f32 %v1943, %v1921
    %v1945 = vmul.f32 %v1944, %v1943
    %v1946 = vmul.f32 0.5, %v1945
    %v1947 = vsub.f32 1.5, %v1946
    %v1948 = vmul.f32 %v1943, %v1947
    %vm1949 = vweird.f32 %v1921
    %vm1950 = vweird.f32 %v1943
    %vm1951 = vmor %vm1949, %vm1950
    %v1952 = vsel %vm1951, %v1943, %v1948
    %v1953 = vrsqrt.pop %v1922
    %v1954 = vmul.f32 %v1953, %v1922
    %v1955 = vmul.f32 %v1954, %v1953
    %v1956 = vmul.f32 0.5, %v1955
    %v1957 = vsub.f32 1.5, %v1956
    %v1958 = vmul.f32 %v1953, %v1957
    %vm1959 = vweird.f32 %v1922
    %vm1960 = vweird.f32 %v1953
    %vm1961 = vmor %vm1959, %vm1960
    %v1962 = vsel %vm1961, %v1953, %v1958
    %v1963 = vmul.f32 %v1899, %v1932
    %v1964 = vmul.f32 %v1900, %v1942
    %v1965 = vmul.f32 %v1901, %v1952
    %v1966 = vmul.f32 %v1902, %v1962
    %v1967 = vld [vmem:[#allocation6 + $0x18] ss:$0 sm:$0xff]
    %v1968 = vmul.f32 %v1963, %v1967
    %v1969 = vmul.f32 %v1964, %v1967
    %v1970 = vmul.f32 %v1965, %v1967
    %v1971 = vmul.f32 %v1966, %v1967
    %v1972 = vld [vmem:[#allocation6 + $0x19] ss:$0 sm:$0xff]
    %v1973 = vadd.f32 %v1968, %v1972
    %v1974 = vadd.f32 %v1969, %v1972
    %v1975 = vadd.f32 %v1970, %v1972
    %v1976 = vadd.f32 %v1971, %v1972
    %v1977 = vpack.c.bf16 %v1974, %v1973
    %v1978 = vpack.c.bf16 %v1976, %v1975
    %v1979 = vld [vmem:[#allocation14] sm:$0xff]
    %v1980 = vld [vmem:[#allocation14 + $0x8] sm:$0xff]
    %v1981 = vld [vmem:[#allocation14 + $0x10] sm:$0xff]
    %v1982 = vld [vmem:[#allocation14 + $0x18] sm:$0xff]
    %v1983 = vld [vmem:[#allocation14 + $0x20] sm:$0xff]
    %v1984 = vld [vmem:[#allocation14 + $0x28] sm:$0xff]
    %v1985 = vld [vmem:[#allocation14 + $0x30] sm:$0xff]
    %v1986 = vld [vmem:[#allocation14 + $0x38] sm:$0xff]
    %v1987 = vld [vmem:[#allocation14 + $0x40] sm:$0xff]
    %v1988 = vld [vmem:[#allocation14 + $0x48] sm:$0xff]
    %v1989 = vld [vmem:[#allocation14 + $0x50] sm:$0xff]
    %v1990 = vld [vmem:[#allocation14 + $0x58] sm:$0xff]
    %v1991 = vld [vmem:[#allocation14 + $0x60] sm:$0xff]
    %v1992 = vld [vmem:[#allocation14 + $0x68] sm:$0xff]
    %v1993 = vld [vmem:[#allocation14 + $0x70] sm:$0xff]
    %v1994 = vld [vmem:[#allocation14 + $0x78] sm:$0xff]
    %s1995 = scalar_lea.vmem [#allocation6], 26
    %v1996 = vld [vmem:[%s1995] ss:$8 sm:$0x3]
    %v1998 = vperm.slane %v1996, 0
    %v1999 = vperm.slane %v1996, 1
    %v2018 = vunpack.c.l.b16 %v1979
    %v2019 = vunpack.c.h.b16 %v1979
    %v2020 = vunpack.c.l.b16 %v1980
    %v2021 = vunpack.c.h.b16 %v1980
    %v2022 = vunpack.c.l.b16 %v1981
    %v2023 = vunpack.c.h.b16 %v1981
    %v2024 = vunpack.c.l.b16 %v1982
    %v2025 = vunpack.c.h.b16 %v1982
    %v2026 = vunpack.c.l.b16 %v1983
    %v2027 = vunpack.c.h.b16 %v1983
    %v2028 = vunpack.c.l.b16 %v1984
    %v2029 = vunpack.c.h.b16 %v1984
    %v2030 = vunpack.c.l.b16 %v1985
    %v2031 = vunpack.c.h.b16 %v1985
    %v2032 = vunpack.c.l.b16 %v1986
    %v2033 = vunpack.c.h.b16 %v1986
    %v2034 = vunpack.c.l.b16 %v1987
    %v2035 = vunpack.c.h.b16 %v1987
    %v2036 = vunpack.c.l.b16 %v1988
    %v2037 = vunpack.c.h.b16 %v1988
    %v2038 = vunpack.c.l.b16 %v1989
    %v2039 = vunpack.c.h.b16 %v1989
    %v2040 = vunpack.c.l.b16 %v1990
    %v2041 = vunpack.c.h.b16 %v1990
    %v2042 = vunpack.c.l.b16 %v1991
    %v2043 = vunpack.c.h.b16 %v1991
    %v2044 = vunpack.c.l.b16 %v1992
    %v2045 = vunpack.c.h.b16 %v1992
    %v2046 = vunpack.c.l.b16 %v1993
    %v2047 = vunpack.c.h.b16 %v1993
    %v2048 = vunpack.c.l.b16 %v1994
    %v2049 = vunpack.c.h.b16 %v1994
    %v2050 = vpack.c.b16 %v2020, %v2018
    %v2051 = vpack.c.b16 %v2021, %v2019
    %v2052 = vpack.c.b16 %v2024, %v2022
    %v2053 = vpack.c.b16 %v2025, %v2023
    %v2054 = vpack.c.b16 %v2028, %v2026
    %v2055 = vpack.c.b16 %v2029, %v2027
    %v2056 = vpack.c.b16 %v2032, %v2030
    %v2057 = vpack.c.b16 %v2033, %v2031
    %v2058 = vpack.c.b16 %v2036, %v2034
    %v2059 = vpack.c.b16 %v2037, %v2035
    %v2060 = vpack.c.b16 %v2040, %v2038
    %v2061 = vpack.c.b16 %v2041, %v2039
    %v2062 = vpack.c.b16 %v2044, %v2042
    %v2063 = vpack.c.b16 %v2045, %v2043
    %v2064 = vpack.c.b16 %v2048, %v2046
    %v2065 = vpack.c.b16 %v2049, %v2047
    %2082 = vmatpush.bf16.msra.mxu0 %v2064
    %2083 = vmatpush.bf16.msra.mxu0 %v2062
    %2084 = vmatpush.bf16.msra.mxu0 %v2060
    %2085 = vmatpush.bf16.msra.mxu0 %v2058
    %2086 = vmatpush.bf16.msra.mxu0 %v2056
    %2087 = vmatpush.bf16.msra.mxu0 %v2054
    %2088 = vmatpush.bf16.msra.mxu0 %v2052
    %2089 = vmatpush.bf16.msra.mxu0 %v2050
    %2090 = vmatmul.bf16.gmra.mxu0 %v1977
    %v2091 = vpop.f32.mrf.mxu0
    %v2092 = vadd.f32 %v1998, %v2091
    %v2093 = vpop.f32.mrf.mxu0
    %v2094 = vadd.f32 %v1998, %v2093
    %2095 = vmatmul.bf16.gmra.mxu0 %v1978
    %v2096 = vpop.f32.mrf.mxu0
    %v2097 = vadd.f32 %v1998, %v2096
    %v2098 = vpop.f32.mrf.mxu0
    %v2099 = vadd.f32 %v1998, %v2098
    %2100 = vdwg.mxu0
    %2101 = vmatpush.bf16.msra.mxu0 %v2065
    %2102 = vmatpush.bf16.msra.mxu0 %v2063
    %2103 = vmatpush.bf16.msra.mxu0 %v2061
    %2104 = vmatpush.bf16.msra.mxu0 %v2059
    %2105 = vmatpush.bf16.msra.mxu0 %v2057
    %2106 = vmatpush.bf16.msra.mxu0 %v2055
    %2107 = vmatpush.bf16.msra.mxu0 %v2053
    %2108 = vmatpush.bf16.msra.mxu0 %v2051
    %2109 = vmatmul.bf16.gmra.mxu0 %v1977
    %v2110 = vpop.f32.mrf.mxu0
    %v2111 = vadd.f32 %v1999, %v2110
    %v2112 = vpop.f32.mrf.mxu0
    %v2113 = vadd.f32 %v1999, %v2112
    %2114 = vmatmul.bf16.gmra.mxu0 %v1978
    %v2115 = vpop.f32.mrf.mxu0
    %v2116 = vadd.f32 %v1999, %v2115
    %v2117 = vpop.f32.mrf.mxu0
    %v2118 = vadd.f32 %v1999, %v2117
    %2119 = vdwg.mxu0
    %v2120 = vxor.u32 %v2111, 2147483648
    %v2121 = vxor.u32 %v2113, 2147483648
    %v2122 = vxor.u32 %v2116, 2147483648
    %v2123 = vxor.u32 %v2118, 2147483648
    %v2124 = vmul.f32 %v2120, 1.442695
    %v2125 = vpow.pop %v2124
    %v2126 = vmul.f32 %v2121, 1.442695
    %v2127 = vpow.pop %v2126
    %v2128 = vmul.f32 %v2122, 1.442695
    %v2129 = vpow.pop %v2128
    %v2130 = vmul.f32 %v2123, 1.442695
    %v2131 = vpow.pop %v2130
    %v2132 = vadd.f32 %v2125, 1.0
    %v2133 = vadd.f32 %v2127, 1.0
    %v2134 = vadd.f32 %v2129, 1.0
    %v2135 = vadd.f32 %v2131, 1.0
    %v2136 = vrcp.pop %v2132
    %v2137 = vmul.f32 %v2132, %v2136
    %v2138 = vsub.f32 1.0, %v2137
    %v2139 = vmul.f32 %v2136, %v2138
    %v2140 = vadd.f32 %v2136, %v2139
    %vm2141 = vweird.f32 %v2132
    %vm2142 = vweird.f32 %v2136
    %vm2143 = vmor %vm2141, %vm2142
    %v2144 = vsel %vm2143, %v2136, %v2140
    %v2145 = vand.u32 2147483647, %v2132
    %vm2146 = vcmp.eq.f32.partialorder %v2145, 8.507059e+37
    %v2147 = vand.u32 %v2132, 2147483648
    %v2148 = vor.u32 1.1754944e-38, %v2147
    %v2149 = vsel %vm2146, %v2148, %v2144
    %v2150 = vmul.f32 1.0, %v2149
    %v2151 = vrcp.pop %v2133
    %v2152 = vmul.f32 %v2133, %v2151
    %v2153 = vsub.f32 1.0, %v2152
    %v2154 = vmul.f32 %v2151, %v2153
    %v2155 = vadd.f32 %v2151, %v2154
    %vm2156 = vweird.f32 %v2133
    %vm2157 = vweird.f32 %v2151
    %vm2158 = vmor %vm2156, %vm2157
    %v2159 = vsel %vm2158, %v2151, %v2155
    %v2160 = vand.u32 2147483647, %v2133
    %vm2161 = vcmp.eq.f32.partialorder %v2160, 8.507059e+37
    %v2162 = vand.u32 %v2133, 2147483648
    %v2163 = vor.u32 1.1754944e-38, %v2162
    %v2164 = vsel %vm2161, %v2163, %v2159
    %v2165 = vmul.f32 1.0, %v2164
    %v2166 = vrcp.pop %v2134
    %v2167 = vmul.f32 %v2134, %v2166
    %v2168 = vsub.f32 1.0, %v2167
    %v2169 = vmul.f32 %v2166, %v2168
    %v2170 = vadd.f32 %v2166, %v2169
    %vm2171 = vweird.f32 %v2134
    %vm2172 = vweird.f32 %v2166
    %vm2173 = vmor %vm2171, %vm2172
    %v2174 = vsel %vm2173, %v2166, %v2170
    %v2175 = vand.u32 2147483647, %v2134
    %vm2176 = vcmp.eq.f32.partialorder %v2175, 8.507059e+37
    %v2177 = vand.u32 %v2134, 2147483648
    %v2178 = vor.u32 1.1754944e-38, %v2177
    %v2179 = vsel %vm2176, %v2178, %v2174
    %v2180 = vmul.f32 1.0, %v2179
    %v2181 = vrcp.pop %v2135
    %v2182 = vmul.f32 %v2135, %v2181
    %v2183 = vsub.f32 1.0, %v2182
    %v2184 = vmul.f32 %v2181, %v2183
    %v2185 = vadd.f32 %v2181, %v2184
    %vm2186 = vweird.f32 %v2135
    %vm2187 = vweird.f32 %v2181
    %vm2188 = vmor %vm2186, %vm2187
    %v2189 = vsel %vm2188, %v2181, %v2185
    %v2190 = vand.u32 2147483647, %v2135
    %vm2191 = vcmp.eq.f32.partialorder %v2190, 8.507059e+37
    %v2192 = vand.u32 %v2135, 2147483648
    %v2193 = vor.u32 1.1754944e-38, %v2192
    %v2194 = vsel %vm2191, %v2193, %v2189
    %v2195 = vmul.f32 1.0, %v2194
    %v2196 = vmul.f32 %v2092, %v2150
    %v2197 = vmul.f32 %v2094, %v2165
    %v2198 = vmul.f32 %v2097, %v2180
    %v2199 = vmul.f32 %v2099, %v2195
    %v2200 = vld [vmem:[%s2] sm:$0xff]
    %v2201 = vld [vmem:[%s2 + $0x8] sm:$0xff]
    %v2202 = vld [vmem:[%s2 + $0x10] sm:$0xff]
    %v2203 = vld [vmem:[%s2 + $0x18] sm:$0xff]
    %v2204 = vld [vmem:[%s10] sm:$0x7f]
    %v2205 = vrot.slane %v2196, 5
    %v2206 = vrot.slane %v2197, 5
    %v2207 = vrot.slane %v2198, 5
    %v2208 = vrot.slane %v2199, 5
    %v2209 = vlaneseq
    %v2210 = vshrl.u32 %v2209, 7
    %vm2211 = vcmp.lt.s32.totalorder %v2210, 3
    %v2212 = vsel %vm2211, %v2207, %v2208
    %v2213 = vsel %vm2211, %v2206, %v2207
    %v2214 = vsel %vm2211, %v2205, %v2206
    %v2215 = vsel %vm2211, %v2208, %v2205
    %vm2216 = vcmp.ge.f32.partialorder %v2200, 3.0
    %vm2217 = vcmp.ge.f32.partialorder %v2201, 3.0
    %vm2218 = vcmp.ge.f32.partialorder %v2202, 3.0
    %vm2219 = vcmp.ge.f32.partialorder %v2203, 3.0
    %vm2220 = vcmp.lt.f32.partialorder %v2200, 19.0
    %vm2221 = vcmp.lt.f32.partialorder %v2201, 19.0
    %vm2222 = vcmp.lt.f32.partialorder %v2202, 19.0
    %vm2223 = vcmp.lt.f32.partialorder %v2203, 19.0
    %vm2224 = vmand %vm2216, %vm2220
    %vm2225 = vmand %vm2217, %vm2221
    %vm2226 = vmand %vm2218, %vm2222
    %vm2227 = vmand %vm2219, %vm2223
    %v2228 = vsel %vm2224, 1, 0
    %v2229 = vsel %vm2225, 1, 0
    %v2230 = vsel %vm2226, 1, 0
    %v2231 = vsel %vm2227, 1, 0
    %2232 = vset.pattern.permute.xlu0 0
    %2233 = vperm.xlu0 %2232, %v2228
    %v2234 = vpop.permute.xlu0 %2233
    %2235 = vset.pattern.permute.xlu0 0
    %2236 = vperm.xlu0 %2235, %v2229
    %v2237 = vpop.permute.xlu0 %2236
    %2238 = vset.pattern.permute.xlu0 0
    %2239 = vperm.xlu0 %2238, %v2230
    %v2240 = vpop.permute.xlu0 %2239
    %2241 = vset.pattern.permute.xlu0 0
    %2242 = vperm.xlu0 %2241, %v2231
    %v2243 = vpop.permute.xlu0 %2242
    %vm2244 = vcmp.eq.s32.totalorder %v2234, 1
    %vm2245 = vcmp.eq.s32.totalorder %v2237, 1
    %vm2246 = vcmp.eq.s32.totalorder %v2240, 1
    %vm2247 = vcmp.eq.s32.totalorder %v2243, 1
    %v2248 = vsel %vm2244, %v2215, 0.0
    %v2249 = vsel %vm2245, %v2214, 0.0
    %v2250 = vsel %vm2246, %v2213, 0.0
    %v2251 = vsel %vm2247, %v2212, 0.0
    %v2252 = vperm.slane %v2204, 0
    %v2253 = vmul.f32 %v2248, %v2252
    %v2254 = vmul.f32 %v2249, %v2252
    %v2255 = vmul.f32 %v2250, %v2252
    %v2256 = vmul.f32 %v2251, %v2252
    %v2257 = vadd.f32 %v2253, 0.0
    %v2258 = vadd.f32 %v2254, 0.0
    %v2259 = vadd.f32 %v2255, 0.0
    %v2260 = vadd.f32 %v2256, 0.0
    %v2261 = vrot.slane %v2196, 6
    %v2262 = vrot.slane %v2197, 6
    %v2263 = vrot.slane %v2198, 6
    %v2264 = vrot.slane %v2199, 6
    %vm2265 = vcmp.lt.s32.totalorder %v2210, 2
    %v2266 = vsel %vm2265, %v2263, %v2264
    %v2267 = vsel %vm2265, %v2262, %v2263
    %v2268 = vsel %vm2265, %v2261, %v2262
    %v2269 = vsel %vm2265, %v2264, %v2261
    %vm2270 = vcmp.ge.f32.partialorder %v2200, 2.0
    %vm2271 = vcmp.ge.f32.partialorder %v2201, 2.0
    %vm2272 = vcmp.ge.f32.partialorder %v2202, 2.0
    %vm2273 = vcmp.ge.f32.partialorder %v2203, 2.0
    %vm2274 = vcmp.lt.f32.partialorder %v2200, 18.0
    %vm2275 = vcmp.lt.f32.partialorder %v2201, 18.0
    %vm2276 = vcmp.lt.f32.partialorder %v2202, 18.0
    %vm2277 = vcmp.lt.f32.partialorder %v2203, 18.0
    %vm2278 = vmand %vm2270, %vm2274
    %vm2279 = vmand %vm2271, %vm2275
    %vm2280 = vmand %vm2272, %vm2276
    %vm2281 = vmand %vm2273, %vm2277
    %v2282 = vsel %vm2278, 1, 0
    %v2283 = vsel %vm2279, 1, 0
    %v2284 = vsel %vm2280, 1, 0
    %v2285 = vsel %vm2281, 1, 0
    %2286 = vset.pattern.permute.xlu0 0
    %2287 = vperm.xlu0 %2286, %v2282
    %v2288 = vpop.permute.xlu0 %2287
    %2289 = vset.pattern.permute.xlu0 0
    %2290 = vperm.xlu0 %2289, %v2283
    %v2291 = vpop.permute.xlu0 %2290
    %2292 = vset.pattern.permute.xlu0 0
    %2293 = vperm.xlu0 %2292, %v2284
    %v2294 = vpop.permute.xlu0 %2293
    %2295 = vset.pattern.permute.xlu0 0
    %2296 = vperm.xlu0 %2295, %v2285
    %v2297 = vpop.permute.xlu0 %2296
    %vm2298 = vcmp.eq.s32.totalorder %v2288, 1
    %vm2299 = vcmp.eq.s32.totalorder %v2291, 1
    %vm2300 = vcmp.eq.s32.totalorder %v2294, 1
    %vm2301 = vcmp.eq.s32.totalorder %v2297, 1
    %v2302 = vsel %vm2298, %v2269, 0.0
    %v2303 = vsel %vm2299, %v2268, 0.0
    %v2304 = vsel %vm2300, %v2267, 0.0
    %v2305 = vsel %vm2301, %v2266, 0.0
    %v2306 = vperm.slane %v2204, 1
    %v2307 = vmul.f32 %v2302, %v2306
    %v2308 = vmul.f32 %v2303, %v2306
    %v2309 = vmul.f32 %v2304, %v2306
    %v2310 = vmul.f32 %v2305, %v2306
    %v2311 = vadd.f32 %v2257, %v2307
    %v2312 = vadd.f32 %v2258, %v2308
    %v2313 = vadd.f32 %v2259, %v2309
    %v2314 = vadd.f32 %v2260, %v2310
    %v2315 = vrot.slane %v2196, 7
    %v2316 = vrot.slane %v2197, 7
    %v2317 = vrot.slane %v2198, 7
    %v2318 = vrot.slane %v2199, 7
    %vm2319 = vcmp.lt.s32.totalorder %v2210, 1
    %v2320 = vsel %vm2319, %v2317, %v2318
    %v2321 = vsel %vm2319, %v2316, %v2317
    %v2322 = vsel %vm2319, %v2315, %v2316
    %v2323 = vsel %vm2319, %v2318, %v2315
    %vm2324 = vcmp.ge.f32.partialorder %v2200, 1.0
    %vm2325 = vcmp.ge.f32.partialorder %v2201, 1.0
    %vm2326 = vcmp.ge.f32.partialorder %v2202, 1.0
    %vm2327 = vcmp.ge.f32.partialorder %v2203, 1.0
    %vm2328 = vcmp.lt.f32.partialorder %v2200, 17.0
    %vm2329 = vcmp.lt.f32.partialorder %v2201, 17.0
    %vm2330 = vcmp.lt.f32.partialorder %v2202, 17.0
    %vm2331 = vcmp.lt.f32.partialorder %v2203, 17.0
    %vm2332 = vmand %vm2324, %vm2328
    %vm2333 = vmand %vm2325, %vm2329
    %vm2334 = vmand %vm2326, %vm2330
    %vm2335 = vmand %vm2327, %vm2331
    %v2336 = vsel %vm2332, 1, 0
    %v2337 = vsel %vm2333, 1, 0
    %v2338 = vsel %vm2334, 1, 0
    %v2339 = vsel %vm2335, 1, 0
    %2340 = vset.pattern.permute.xlu0 0
    %2341 = vperm.xlu0 %2340, %v2336
    %v2342 = vpop.permute.xlu0 %2341
    %2343 = vset.pattern.permute.xlu0 0
    %2344 = vperm.xlu0 %2343, %v2337
    %v2345 = vpop.permute.xlu0 %2344
    %2346 = vset.pattern.permute.xlu0 0
    %2347 = vperm.xlu0 %2346, %v2338
    %v2348 = vpop.permute.xlu0 %2347
    %2349 = vset.pattern.permute.xlu0 0
    %2350 = vperm.xlu0 %2349, %v2339
    %v2351 = vpop.permute.xlu0 %2350
    %vm2352 = vcmp.eq.s32.totalorder %v2342, 1
    %vm2353 = vcmp.eq.s32.totalorder %v2345, 1
    %vm2354 = vcmp.eq.s32.totalorder %v2348, 1
    %vm2355 = vcmp.eq.s32.totalorder %v2351, 1
    %v2356 = vsel %vm2352, %v2323, 0.0
    %v2357 = vsel %vm2353, %v2322, 0.0
    %v2358 = vsel %vm2354, %v2321, 0.0
    %v2359 = vsel %vm2355, %v2320, 0.0
    %v2360 = vperm.slane %v2204, 2
    %v2361 = vmul.f32 %v2356, %v2360
    %v2362 = vmul.f32 %v2357, %v2360
    %v2363 = vmul.f32 %v2358, %v2360
    %v2364 = vmul.f32 %v2359, %v2360
    %v2365 = vadd.f32 %v2311, %v2361
    %v2366 = vadd.f32 %v2312, %v2362
    %v2367 = vadd.f32 %v2313, %v2363
    %v2368 = vadd.f32 %v2314, %v2364
    %v2369 = vperm.slane %v2204, 3
    %v2370 = vmul.f32 %v2196, %v2369
    %v2371 = vmul.f32 %v2197, %v2369
    %v2372 = vmul.f32 %v2198, %v2369
    %v2373 = vmul.f32 %v2199, %v2369
    %v2374 = vadd.f32 %v2365, %v2370
    %v2375 = vadd.f32 %v2366, %v2371
    %v2376 = vadd.f32 %v2367, %v2372
    %v2377 = vadd.f32 %v2368, %v2373
    %v2378 = vrot.slane %v2196, 1
    %v2379 = vrot.slane %v2197, 1
    %v2380 = vrot.slane %v2198, 1
    %v2381 = vrot.slane %v2199, 1
    %vm2382 = vcmp.lt.s32.totalorder %v2210, 7
    %v2383 = vsel %vm2382, %v2380, %v2381
    %v2384 = vsel %vm2382, %v2379, %v2380
    %v2385 = vsel %vm2382, %v2378, %v2379
    %v2386 = vsel %vm2382, %v2381, %v2378
    %vm2387 = vcmp.ge.f32.partialorder %v2200, -1.0
    %vm2388 = vcmp.ge.f32.partialorder %v2201, -1.0
    %vm2389 = vcmp.ge.f32.partialorder %v2202, -1.0
    %vm2390 = vcmp.ge.f32.partialorder %v2203, -1.0
    %vm2391 = vcmp.lt.f32.partialorder %v2200, 15.0
    %vm2392 = vcmp.lt.f32.partialorder %v2201, 15.0
    %vm2393 = vcmp.lt.f32.partialorder %v2202, 15.0
    %vm2394 = vcmp.lt.f32.partialorder %v2203, 15.0
    %vm2395 = vmand %vm2387, %vm2391
    %vm2396 = vmand %vm2388, %vm2392
    %vm2397 = vmand %vm2389, %vm2393
    %vm2398 = vmand %vm2390, %vm2394
    %v2399 = vsel %vm2395, 1, 0
    %v2400 = vsel %vm2396, 1, 0
    %v2401 = vsel %vm2397, 1, 0
    %v2402 = vsel %vm2398, 1, 0
    %2403 = vset.pattern.permute.xlu0 0
    %2404 = vperm.xlu0 %2403, %v2399
    %v2405 = vpop.permute.xlu0 %2404
    %2406 = vset.pattern.permute.xlu0 0
    %2407 = vperm.xlu0 %2406, %v2400
    %v2408 = vpop.permute.xlu0 %2407
    %2409 = vset.pattern.permute.xlu0 0
    %2410 = vperm.xlu0 %2409, %v2401
    %v2411 = vpop.permute.xlu0 %2410
    %2412 = vset.pattern.permute.xlu0 0
    %2413 = vperm.xlu0 %2412, %v2402
    %v2414 = vpop.permute.xlu0 %2413
    %vm2415 = vcmp.eq.s32.totalorder %v2405, 1
    %vm2416 = vcmp.eq.s32.totalorder %v2408, 1
    %vm2417 = vcmp.eq.s32.totalorder %v2411, 1
    %vm2418 = vcmp.eq.s32.totalorder %v2414, 1
    %v2419 = vsel %vm2415, %v2385, 0.0
    %v2420 = vsel %vm2416, %v2384, 0.0
    %v2421 = vsel %vm2417, %v2383, 0.0
    %v2422 = vsel %vm2418, %v2386, 0.0
    %v2423 = vperm.slane %v2204, 4
    %v2424 = vmul.f32 %v2419, %v2423
    %v2425 = vmul.f32 %v2420, %v2423
    %v2426 = vmul.f32 %v2421, %v2423
    %v2427 = vmul.f32 %v2422, %v2423
    %v2428 = vadd.f32 %v2374, %v2424
    %v2429 = vadd.f32 %v2375, %v2425
    %v2430 = vadd.f32 %v2376, %v2426
    %v2431 = vadd.f32 %v2377, %v2427
    %v2432 = vrot.slane %v2196, 2
    %v2433 = vrot.slane %v2197, 2
    %v2434 = vrot.slane %v2198, 2
    %v2435 = vrot.slane %v2199, 2
    %vm2436 = vcmp.lt.s32.totalorder %v2210, 6
    %v2437 = vsel %vm2436, %v2434, %v2435
    %v2438 = vsel %vm2436, %v2433, %v2434
    %v2439 = vsel %vm2436, %v2432, %v2433
    %v2440 = vsel %vm2436, %v2435, %v2432
    %vm2441 = vcmp.ge.f32.partialorder %v2200, -2.0
    %vm2442 = vcmp.ge.f32.partialorder %v2201, -2.0
    %vm2443 = vcmp.ge.f32.partialorder %v2202, -2.0
    %vm2444 = vcmp.ge.f32.partialorder %v2203, -2.0
    %vm2445 = vcmp.lt.f32.partialorder %v2200, 14.0
    %vm2446 = vcmp.lt.f32.partialorder %v2201, 14.0
    %vm2447 = vcmp.lt.f32.partialorder %v2202, 14.0
    %vm2448 = vcmp.lt.f32.partialorder %v2203, 14.0
    %vm2449 = vmand %vm2441, %vm2445
    %vm2450 = vmand %vm2442, %vm2446
    %vm2451 = vmand %vm2443, %vm2447
    %vm2452 = vmand %vm2444, %vm2448
    %v2453 = vsel %vm2449, 1, 0
    %v2454 = vsel %vm2450, 1, 0
    %v2455 = vsel %vm2451, 1, 0
    %v2456 = vsel %vm2452, 1, 0
    %2457 = vset.pattern.permute.xlu0 0
    %2458 = vperm.xlu0 %2457, %v2453
    %v2459 = vpop.permute.xlu0 %2458
    %2460 = vset.pattern.permute.xlu0 0
    %2461 = vperm.xlu0 %2460, %v2454
    %v2462 = vpop.permute.xlu0 %2461
    %2463 = vset.pattern.permute.xlu0 0
    %2464 = vperm.xlu0 %2463, %v2455
    %v2465 = vpop.permute.xlu0 %2464
    %2466 = vset.pattern.permute.xlu0 0
    %2467 = vperm.xlu0 %2466, %v2456
    %v2468 = vpop.permute.xlu0 %2467
    %vm2469 = vcmp.eq.s32.totalorder %v2459, 1
    %vm2470 = vcmp.eq.s32.totalorder %v2462, 1
    %vm2471 = vcmp.eq.s32.totalorder %v2465, 1
    %vm2472 = vcmp.eq.s32.totalorder %v2468, 1
    %v2473 = vsel %vm2469, %v2439, 0.0
    %v2474 = vsel %vm2470, %v2438, 0.0
    %v2475 = vsel %vm2471, %v2437, 0.0
    %v2476 = vsel %vm2472, %v2440, 0.0
    %v2477 = vperm.slane %v2204, 5
    %v2478 = vmul.f32 %v2473, %v2477
    %v2479 = vmul.f32 %v2474, %v2477
    %v2480 = vmul.f32 %v2475, %v2477
    %v2481 = vmul.f32 %v2476, %v2477
    %v2482 = vadd.f32 %v2428, %v2478
    %v2483 = vadd.f32 %v2429, %v2479
    %v2484 = vadd.f32 %v2430, %v2480
    %v2485 = vadd.f32 %v2431, %v2481
    %v2486 = vrot.slane %v2196, 3
    %v2487 = vrot.slane %v2197, 3
    %v2488 = vrot.slane %v2198, 3
    %v2489 = vrot.slane %v2199, 3
    %vm2490 = vcmp.lt.s32.totalorder %v2210, 5
    %v2491 = vsel %vm2490, %v2488, %v2489
    %v2492 = vsel %vm2490, %v2487, %v2488
    %v2493 = vsel %vm2490, %v2486, %v2487
    %v2494 = vsel %vm2490, %v2489, %v2486
    %vm2495 = vcmp.ge.f32.partialorder %v2200, -3.0
    %vm2496 = vcmp.ge.f32.partialorder %v2201, -3.0
    %vm2497 = vcmp.ge.f32.partialorder %v2202, -3.0
    %vm2498 = vcmp.ge.f32.partialorder %v2203, -3.0
    %vm2499 = vcmp.lt.f32.partialorder %v2200, 13.0
    %vm2500 = vcmp.lt.f32.partialorder %v2201, 13.0
    %vm2501 = vcmp.lt.f32.partialorder %v2202, 13.0
    %vm2502 = vcmp.lt.f32.partialorder %v2203, 13.0
    %vm2503 = vmand %vm2495, %vm2499
    %vm2504 = vmand %vm2496, %vm2500
    %vm2505 = vmand %vm2497, %vm2501
    %vm2506 = vmand %vm2498, %vm2502
    %v2507 = vsel %vm2503, 1, 0
    %v2508 = vsel %vm2504, 1, 0
    %v2509 = vsel %vm2505, 1, 0
    %v2510 = vsel %vm2506, 1, 0
    %2511 = vset.pattern.permute.xlu0 0
    %2512 = vperm.xlu0 %2511, %v2507
    %v2513 = vpop.permute.xlu0 %2512
    %2514 = vset.pattern.permute.xlu0 0
    %2515 = vperm.xlu0 %2514, %v2508
    %v2516 = vpop.permute.xlu0 %2515
    %2517 = vset.pattern.permute.xlu0 0
    %2518 = vperm.xlu0 %2517, %v2509
    %v2519 = vpop.permute.xlu0 %2518
    %2520 = vset.pattern.permute.xlu0 0
    %2521 = vperm.xlu0 %2520, %v2510
    %v2522 = vpop.permute.xlu0 %2521
    %vm2523 = vcmp.eq.s32.totalorder %v2513, 1
    %vm2524 = vcmp.eq.s32.totalorder %v2516, 1
    %vm2525 = vcmp.eq.s32.totalorder %v2519, 1
    %vm2526 = vcmp.eq.s32.totalorder %v2522, 1
    %v2527 = vsel %vm2523, %v2493, 0.0
    %v2528 = vsel %vm2524, %v2492, 0.0
    %v2529 = vsel %vm2525, %v2491, 0.0
    %v2530 = vsel %vm2526, %v2494, 0.0
    %v2531 = vperm.slane %v2204, 6
    %v2532 = vmul.f32 %v2527, %v2531
    %v2533 = vmul.f32 %v2528, %v2531
    %v2534 = vmul.f32 %v2529, %v2531
    %v2535 = vmul.f32 %v2530, %v2531
    %v2536 = vadd.f32 %v2482, %v2532
    %v2537 = vadd.f32 %v2483, %v2533
    %v2538 = vadd.f32 %v2484, %v2534
    %v2539 = vadd.f32 %v2485, %v2535
    %v2540 = vld [vmem:[#allocation6 + $0x1b] ss:$0 sm:$0xff]
    %v2541 = vadd.f32 %v2536, %v2540
    %v2542 = vadd.f32 %v2537, %v2540
    %v2543 = vadd.f32 %v2538, %v2540
    %v2544 = vadd.f32 %v2539, %v2540
    %v2545 = vld [vmem:[#allocation6 + $0x1c] ss:$0 sm:$0xff]
    %v2546 = vmul.f32 %v2541, %v2545
    %v2547 = vmul.f32 %v2542, %v2545
    %v2548 = vmul.f32 %v2543, %v2545
    %v2549 = vmul.f32 %v2544, %v2545
    %v2550 = vld [vmem:[#allocation6 + $0x1d] ss:$0 sm:$0xff]
    %v2551 = vadd.f32 %v2546, %v2550
    %v2552 = vadd.f32 %v2547, %v2550
    %v2553 = vadd.f32 %v2548, %v2550
    %v2554 = vadd.f32 %v2549, %v2550
    %v2555 = vxor.u32 %v2551, 2147483648
    %v2556 = vxor.u32 %v2552, 2147483648
    %v2557 = vxor.u32 %v2553, 2147483648
    %v2558 = vxor.u32 %v2554, 2147483648
    %v2559 = vmul.f32 %v2555, 1.442695
    %v2560 = vpow.pop %v2559
    %v2561 = vmul.f32 %v2556, 1.442695
    %v2562 = vpow.pop %v2561
    %v2563 = vmul.f32 %v2557, 1.442695
    %v2564 = vpow.pop %v2563
    %v2565 = vmul.f32 %v2558, 1.442695
    %v2566 = vpow.pop %v2565
    %v2567 = vadd.f32 %v2560, 1.0
    %v2568 = vadd.f32 %v2562, 1.0
    %v2569 = vadd.f32 %v2564, 1.0
    %v2570 = vadd.f32 %v2566, 1.0
    %v2571 = vrcp.pop %v2567
    %v2572 = vmul.f32 %v2567, %v2571
    %v2573 = vsub.f32 1.0, %v2572
    %v2574 = vmul.f32 %v2571, %v2573
    %v2575 = vadd.f32 %v2571, %v2574
    %vm2576 = vweird.f32 %v2567
    %vm2577 = vweird.f32 %v2571
    %vm2578 = vmor %vm2576, %vm2577
    %v2579 = vsel %vm2578, %v2571, %v2575
    %v2580 = vand.u32 2147483647, %v2567
    %vm2581 = vcmp.eq.f32.partialorder %v2580, 8.507059e+37
    %v2582 = vand.u32 %v2567, 2147483648
    %v2583 = vor.u32 1.1754944e-38, %v2582
    %v2584 = vsel %vm2581, %v2583, %v2579
    %v2585 = vmul.f32 1.0, %v2584
    %v2586 = vrcp.pop %v2568
    %v2587 = vmul.f32 %v2568, %v2586
    %v2588 = vsub.f32 1.0, %v2587
    %v2589 = vmul.f32 %v2586, %v2588
    %v2590 = vadd.f32 %v2586, %v2589
    %vm2591 = vweird.f32 %v2568
    %vm2592 = vweird.f32 %v2586
    %vm2593 = vmor %vm2591, %vm2592
    %v2594 = vsel %vm2593, %v2586, %v2590
    %v2595 = vand.u32 2147483647, %v2568
    %vm2596 = vcmp.eq.f32.partialorder %v2595, 8.507059e+37
    %v2597 = vand.u32 %v2568, 2147483648
    %v2598 = vor.u32 1.1754944e-38, %v2597
    %v2599 = vsel %vm2596, %v2598, %v2594
    %v2600 = vmul.f32 1.0, %v2599
    %v2601 = vrcp.pop %v2569
    %v2602 = vmul.f32 %v2569, %v2601
    %v2603 = vsub.f32 1.0, %v2602
    %v2604 = vmul.f32 %v2601, %v2603
    %v2605 = vadd.f32 %v2601, %v2604
    %vm2606 = vweird.f32 %v2569
    %vm2607 = vweird.f32 %v2601
    %vm2608 = vmor %vm2606, %vm2607
    %v2609 = vsel %vm2608, %v2601, %v2605
    %v2610 = vand.u32 2147483647, %v2569
    %vm2611 = vcmp.eq.f32.partialorder %v2610, 8.507059e+37
    %v2612 = vand.u32 %v2569, 2147483648
    %v2613 = vor.u32 1.1754944e-38, %v2612
    %v2614 = vsel %vm2611, %v2613, %v2609
    %v2615 = vmul.f32 1.0, %v2614
    %v2616 = vrcp.pop %v2570
    %v2617 = vmul.f32 %v2570, %v2616
    %v2618 = vsub.f32 1.0, %v2617
    %v2619 = vmul.f32 %v2616, %v2618
    %v2620 = vadd.f32 %v2616, %v2619
    %vm2621 = vweird.f32 %v2570
    %vm2622 = vweird.f32 %v2616
    %vm2623 = vmor %vm2621, %vm2622
    %v2624 = vsel %vm2623, %v2616, %v2620
    %v2625 = vand.u32 2147483647, %v2570
    %vm2626 = vcmp.eq.f32.partialorder %v2625, 8.507059e+37
    %v2627 = vand.u32 %v2570, 2147483648
    %v2628 = vor.u32 1.1754944e-38, %v2627
    %v2629 = vsel %vm2626, %v2628, %v2624
    %v2630 = vmul.f32 1.0, %v2629
    %v2631 = vmul.f32 %v2551, %v2585
    %v2632 = vmul.f32 %v2552, %v2600
    %v2633 = vmul.f32 %v2553, %v2615
    %v2634 = vmul.f32 %v2554, %v2630
    %v2635 = vpack.c.bf16 %v2632, %v2631
    %v2636 = vpack.c.bf16 %v2634, %v2633
    %v2637 = vld [vmem:[#allocation15] sm:$0xf]
    %v2638 = vld [vmem:[#allocation15 + $0x4] sm:$0xf]
    %v2639 = vld [vmem:[#allocation15 + $0x8] sm:$0xf]
    %v2640 = vld [vmem:[#allocation15 + $0xc] sm:$0xf]
    %v2641 = vld [vmem:[#allocation15 + $0x10] sm:$0xf]
    %v2642 = vld [vmem:[#allocation15 + $0x14] sm:$0xf]
    %v2643 = vld [vmem:[#allocation15 + $0x18] sm:$0xf]
    %v2644 = vld [vmem:[#allocation15 + $0x1c] sm:$0xf]
    %v2645 = vld [vmem:[#allocation15 + $0x20] sm:$0xf]
    %v2646 = vld [vmem:[#allocation15 + $0x24] sm:$0xf]
    %v2647 = vld [vmem:[#allocation15 + $0x28] sm:$0xf]
    %v2648 = vld [vmem:[#allocation15 + $0x2c] sm:$0xf]
    %v2649 = vld [vmem:[#allocation15 + $0x30] sm:$0xf]
    %v2650 = vld [vmem:[#allocation15 + $0x34] sm:$0xf]
    %v2651 = vld [vmem:[#allocation15 + $0x38] sm:$0xf]
    %v2652 = vld [vmem:[#allocation15 + $0x3c] sm:$0xf]
    %v2669 = vunpack.c.l.b16 %v2637
    %v2670 = vunpack.c.l.b16 %v2638
    %v2671 = vunpack.c.l.b16 %v2639
    %v2672 = vunpack.c.l.b16 %v2640
    %v2673 = vunpack.c.l.b16 %v2641
    %v2674 = vunpack.c.l.b16 %v2642
    %v2675 = vunpack.c.l.b16 %v2643
    %v2676 = vunpack.c.l.b16 %v2644
    %v2677 = vunpack.c.l.b16 %v2645
    %v2678 = vunpack.c.l.b16 %v2646
    %v2679 = vunpack.c.l.b16 %v2647
    %v2680 = vunpack.c.l.b16 %v2648
    %v2681 = vunpack.c.l.b16 %v2649
    %v2682 = vunpack.c.l.b16 %v2650
    %v2683 = vunpack.c.l.b16 %v2651
    %v2684 = vunpack.c.l.b16 %v2652
    %v2685 = vpack.c.b16 %v2670, %v2669
    %v2686 = vpack.c.b16 %v2672, %v2671
    %v2687 = vpack.c.b16 %v2674, %v2673
    %v2688 = vpack.c.b16 %v2676, %v2675
    %v2689 = vpack.c.b16 %v2678, %v2677
    %v2690 = vpack.c.b16 %v2680, %v2679
    %v2691 = vpack.c.b16 %v2682, %v2681
    %v2692 = vpack.c.b16 %v2684, %v2683
    %2701 = vmatpush.bf16.msra.mxu0 %v2692
    %2702 = vmatpush.bf16.msra.mxu0 %v2691
    %2703 = vmatpush.bf16.msra.mxu0 %v2690
    %2704 = vmatpush.bf16.msra.mxu0 %v2689
    %2705 = vmatpush.bf16.msra.mxu0 %v2688
    %2706 = vmatpush.bf16.msra.mxu0 %v2687
    %2707 = vmatpush.bf16.msra.mxu0 %v2686
    %2708 = vmatpush.bf16.msra.mxu0 %v2685
    %2709 = vmatmul.bf16.gmra.mxu0 %v2635
    %v2710 = vpop.f32.mrf.mxu0
    %v2711 = vadd.f32 0.0, %v2710
    %v2712 = vpop.f32.mrf.mxu0
    %v2713 = vadd.f32 0.0, %v2712
    %2714 = vmatmul.bf16.gmra.mxu0 %v2636
    %v2715 = vpop.f32.mrf.mxu0
    %v2716 = vadd.f32 0.0, %v2715
    %v2717 = vpop.f32.mrf.mxu0
    %v2718 = vadd.f32 0.0, %v2717
    %2719 = vdwg.mxu0
    %v2720 = vadd.f32 %v1883, %v2711
    %v2721 = vadd.f32 %v1884, %v2713
    %v2722 = vadd.f32 %v1885, %v2716
    %v2723 = vadd.f32 %v1886, %v2718
    %v2724 = vld [vmem:[#allocation6 + $0x1e] ss:$0 sm:$0xff]
    %v2725 = vadd.f32 %v2720, %v2724
    %v2726 = vadd.f32 %v2721, %v2724
    %v2727 = vadd.f32 %v2722, %v2724
    %v2728 = vadd.f32 %v2723, %v2724
    %2729 = vadd.xlane.f32.xlu0 %v2725
    %v2730 = vpop.xlane.xlu0 %2729
    %2731 = vadd.xlane.f32.xlu0 %v2726
    %v2732 = vpop.xlane.xlu0 %2731
    %2733 = vadd.xlane.f32.xlu0 %v2727
    %v2734 = vpop.xlane.xlu0 %2733
    %2735 = vadd.xlane.f32.xlu0 %v2728
    %v2736 = vpop.xlane.xlu0 %2735
    %v2737 = vmul.f32 %v2730, %v220
    %v2738 = vmul.f32 %v2732, %v220
    %v2739 = vmul.f32 %v2734, %v220
    %v2740 = vmul.f32 %v2736, %v220
    %v2741 = vsub.f32 %v2725, %v2737
    %v2742 = vsub.f32 %v2726, %v2738
    %v2743 = vsub.f32 %v2727, %v2739
    %v2744 = vsub.f32 %v2728, %v2740
    %v2745 = vmul.f32 %v2741, %v2741
    %v2746 = vmul.f32 %v2742, %v2742
    %v2747 = vmul.f32 %v2743, %v2743
    %v2748 = vmul.f32 %v2744, %v2744
    %2749 = vadd.xlane.f32.xlu0 %v2745
    %v2750 = vpop.xlane.xlu0 %2749
    %2751 = vadd.xlane.f32.xlu0 %v2746
    %v2752 = vpop.xlane.xlu0 %2751
    %2753 = vadd.xlane.f32.xlu0 %v2747
    %v2754 = vpop.xlane.xlu0 %2753
    %2755 = vadd.xlane.f32.xlu0 %v2748
    %v2756 = vpop.xlane.xlu0 %2755
    %v2757 = vmul.f32 %v2750, %v220
    %v2758 = vmul.f32 %v2752, %v220
    %v2759 = vmul.f32 %v2754, %v220
    %v2760 = vmul.f32 %v2756, %v220
    %v2761 = vadd.f32 %v2757, 1e-12
    %v2762 = vadd.f32 %v2758, 1e-12
    %v2763 = vadd.f32 %v2759, 1e-12
    %v2764 = vadd.f32 %v2760, 1e-12
    %v2765 = vrsqrt.pop %v2761
    %v2766 = vmul.f32 %v2765, %v2761
    %v2767 = vmul.f32 %v2766, %v2765
    %v2768 = vmul.f32 0.5, %v2767
    %v2769 = vsub.f32 1.5, %v2768
    %v2770 = vmul.f32 %v2765, %v2769
    %vm2771 = vweird.f32 %v2761
    %vm2772 = vweird.f32 %v2765
    %vm2773 = vmor %vm2771, %vm2772
    %v2774 = vsel %vm2773, %v2765, %v2770
    %v2775 = vrsqrt.pop %v2762
    %v2776 = vmul.f32 %v2775, %v2762
    %v2777 = vmul.f32 %v2776, %v2775
    %v2778 = vmul.f32 0.5, %v2777
    %v2779 = vsub.f32 1.5, %v2778
    %v2780 = vmul.f32 %v2775, %v2779
    %vm2781 = vweird.f32 %v2762
    %vm2782 = vweird.f32 %v2775
    %vm2783 = vmor %vm2781, %vm2782
    %v2784 = vsel %vm2783, %v2775, %v2780
    %v2785 = vrsqrt.pop %v2763
    %v2786 = vmul.f32 %v2785, %v2763
    %v2787 = vmul.f32 %v2786, %v2785
    %v2788 = vmul.f32 0.5, %v2787
    %v2789 = vsub.f32 1.5, %v2788
    %v2790 = vmul.f32 %v2785, %v2789
    %vm2791 = vweird.f32 %v2763
    %vm2792 = vweird.f32 %v2785
    %vm2793 = vmor %vm2791, %vm2792
    %v2794 = vsel %vm2793, %v2785, %v2790
    %v2795 = vrsqrt.pop %v2764
    %v2796 = vmul.f32 %v2795, %v2764
    %v2797 = vmul.f32 %v2796, %v2795
    %v2798 = vmul.f32 0.5, %v2797
    %v2799 = vsub.f32 1.5, %v2798
    %v2800 = vmul.f32 %v2795, %v2799
    %vm2801 = vweird.f32 %v2764
    %vm2802 = vweird.f32 %v2795
    %vm2803 = vmor %vm2801, %vm2802
    %v2804 = vsel %vm2803, %v2795, %v2800
    %v2805 = vmul.f32 %v2741, %v2774
    %v2806 = vmul.f32 %v2742, %v2784
    %v2807 = vmul.f32 %v2743, %v2794
    %v2808 = vmul.f32 %v2744, %v2804
    %v2809 = vld [vmem:[#allocation6 + $0x1f] ss:$0 sm:$0xff]
    %v2810 = vmul.f32 %v2805, %v2809
    %v2811 = vmul.f32 %v2806, %v2809
    %v2812 = vmul.f32 %v2807, %v2809
    %v2813 = vmul.f32 %v2808, %v2809
    %v2814 = vld [vmem:[#allocation6 + $0x30] ss:$0 sm:$0xff]
    %v2815 = vadd.f32 %v2810, %v2814
    %v2816 = vadd.f32 %v2811, %v2814
    %v2817 = vadd.f32 %v2812, %v2814
    %v2818 = vadd.f32 %v2813, %v2814
    %v2819 = vpack.c.bf16 %v2816, %v2815
    %v2820 = vpack.c.bf16 %v2818, %v2817
    %v2821 = vld [vmem:[#allocation17] sm:$0xff]
    %v2822 = vld [vmem:[#allocation17 + $0x8] sm:$0xff]
    %v2823 = vld [vmem:[#allocation17 + $0x10] sm:$0xff]
    %v2824 = vld [vmem:[#allocation17 + $0x18] sm:$0xff]
    %v2825 = vld [vmem:[#allocation17 + $0x20] sm:$0xff]
    %v2826 = vld [vmem:[#allocation17 + $0x28] sm:$0xff]
    %v2827 = vld [vmem:[#allocation17 + $0x30] sm:$0xff]
    %v2828 = vld [vmem:[#allocation17 + $0x38] sm:$0xff]
    %v2829 = vld [vmem:[#allocation17 + $0x40] sm:$0xff]
    %v2830 = vld [vmem:[#allocation17 + $0x48] sm:$0xff]
    %v2831 = vld [vmem:[#allocation17 + $0x50] sm:$0xff]
    %v2832 = vld [vmem:[#allocation17 + $0x58] sm:$0xff]
    %v2833 = vld [vmem:[#allocation17 + $0x60] sm:$0xff]
    %v2834 = vld [vmem:[#allocation17 + $0x68] sm:$0xff]
    %v2835 = vld [vmem:[#allocation17 + $0x70] sm:$0xff]
    %v2836 = vld [vmem:[#allocation17 + $0x78] sm:$0xff]
    %s2837 = scalar_lea.vmem [#allocation6], 49
    %v2838 = vld [vmem:[%s2837] ss:$8 sm:$0x3]
    %v2840 = vperm.slane %v2838, 0
    %v2841 = vperm.slane %v2838, 1
    %v2860 = vunpack.c.l.b16 %v2821
    %v2861 = vunpack.c.h.b16 %v2821
    %v2862 = vunpack.c.l.b16 %v2822
    %v2863 = vunpack.c.h.b16 %v2822
    %v2864 = vunpack.c.l.b16 %v2823
    %v2865 = vunpack.c.h.b16 %v2823
    %v2866 = vunpack.c.l.b16 %v2824
    %v2867 = vunpack.c.h.b16 %v2824
    %v2868 = vunpack.c.l.b16 %v2825
    %v2869 = vunpack.c.h.b16 %v2825
    %v2870 = vunpack.c.l.b16 %v2826
    %v2871 = vunpack.c.h.b16 %v2826
    %v2872 = vunpack.c.l.b16 %v2827
    %v2873 = vunpack.c.h.b16 %v2827
    %v2874 = vunpack.c.l.b16 %v2828
    %v2875 = vunpack.c.h.b16 %v2828
    %v2876 = vunpack.c.l.b16 %v2829
    %v2877 = vunpack.c.h.b16 %v2829
    %v2878 = vunpack.c.l.b16 %v2830
    %v2879 = vunpack.c.h.b16 %v2830
    %v2880 = vunpack.c.l.b16 %v2831
    %v2881 = vunpack.c.h.b16 %v2831
    %v2882 = vunpack.c.l.b16 %v2832
    %v2883 = vunpack.c.h.b16 %v2832
    %v2884 = vunpack.c.l.b16 %v2833
    %v2885 = vunpack.c.h.b16 %v2833
    %v2886 = vunpack.c.l.b16 %v2834
    %v2887 = vunpack.c.h.b16 %v2834
    %v2888 = vunpack.c.l.b16 %v2835
    %v2889 = vunpack.c.h.b16 %v2835
    %v2890 = vunpack.c.l.b16 %v2836
    %v2891 = vunpack.c.h.b16 %v2836
    %v2892 = vpack.c.b16 %v2862, %v2860
    %v2893 = vpack.c.b16 %v2863, %v2861
    %v2894 = vpack.c.b16 %v2866, %v2864
    %v2895 = vpack.c.b16 %v2867, %v2865
    %v2896 = vpack.c.b16 %v2870, %v2868
    %v2897 = vpack.c.b16 %v2871, %v2869
    %v2898 = vpack.c.b16 %v2874, %v2872
    %v2899 = vpack.c.b16 %v2875, %v2873
    %v2900 = vpack.c.b16 %v2878, %v2876
    %v2901 = vpack.c.b16 %v2879, %v2877
    %v2902 = vpack.c.b16 %v2882, %v2880
    %v2903 = vpack.c.b16 %v2883, %v2881
    %v2904 = vpack.c.b16 %v2886, %v2884
    %v2905 = vpack.c.b16 %v2887, %v2885
    %v2906 = vpack.c.b16 %v2890, %v2888
    %v2907 = vpack.c.b16 %v2891, %v2889
    %2924 = vmatpush.bf16.msra.mxu0 %v2906
    %2925 = vmatpush.bf16.msra.mxu0 %v2904
    %2926 = vmatpush.bf16.msra.mxu0 %v2902
    %2927 = vmatpush.bf16.msra.mxu0 %v2900
    %2928 = vmatpush.bf16.msra.mxu0 %v2898
    %2929 = vmatpush.bf16.msra.mxu0 %v2896
    %2930 = vmatpush.bf16.msra.mxu0 %v2894
    %2931 = vmatpush.bf16.msra.mxu0 %v2892
    %2932 = vmatmul.bf16.gmra.mxu0 %v2819
    %v2933 = vpop.f32.mrf.mxu0
    %v2934 = vadd.f32 %v2840, %v2933
    %v2935 = vpop.f32.mrf.mxu0
    %v2936 = vadd.f32 %v2840, %v2935
    %2937 = vmatmul.bf16.gmra.mxu0 %v2820
    %v2938 = vpop.f32.mrf.mxu0
    %v2939 = vadd.f32 %v2840, %v2938
    %v2940 = vpop.f32.mrf.mxu0
    %v2941 = vadd.f32 %v2840, %v2940
    %2942 = vdwg.mxu0
    %2943 = vmatpush.bf16.msra.mxu0 %v2907
    %2944 = vmatpush.bf16.msra.mxu0 %v2905
    %2945 = vmatpush.bf16.msra.mxu0 %v2903
    %2946 = vmatpush.bf16.msra.mxu0 %v2901
    %2947 = vmatpush.bf16.msra.mxu0 %v2899
    %2948 = vmatpush.bf16.msra.mxu0 %v2897
    %2949 = vmatpush.bf16.msra.mxu0 %v2895
    %2950 = vmatpush.bf16.msra.mxu0 %v2893
    %2951 = vmatmul.bf16.gmra.mxu0 %v2819
    %v2952 = vpop.f32.mrf.mxu0
    %v2953 = vadd.f32 %v2841, %v2952
    %v2954 = vpop.f32.mrf.mxu0
    %v2955 = vadd.f32 %v2841, %v2954
    %2956 = vmatmul.bf16.gmra.mxu0 %v2820
    %v2957 = vpop.f32.mrf.mxu0
    %v2958 = vadd.f32 %v2841, %v2957
    %v2959 = vpop.f32.mrf.mxu0
    %v2960 = vadd.f32 %v2841, %v2959
    %2961 = vdwg.mxu0
    %v2962 = vxor.u32 %v2934, 2147483648
    %v2963 = vxor.u32 %v2953, 2147483648
    %v2964 = vxor.u32 %v2936, 2147483648
    %v2965 = vxor.u32 %v2955, 2147483648
    %v2966 = vxor.u32 %v2939, 2147483648
    %v2967 = vxor.u32 %v2958, 2147483648
    %v2968 = vxor.u32 %v2941, 2147483648
    %v2969 = vxor.u32 %v2960, 2147483648
    %v2970 = vmul.f32 %v2962, 1.442695
    %v2971 = vpow.pop %v2970
    %v2972 = vmul.f32 %v2963, 1.442695
    %v2973 = vpow.pop %v2972
    %v2974 = vmul.f32 %v2964, 1.442695
    %v2975 = vpow.pop %v2974
    %v2976 = vmul.f32 %v2965, 1.442695
    %v2977 = vpow.pop %v2976
    %v2978 = vmul.f32 %v2966, 1.442695
    %v2979 = vpow.pop %v2978
    %v2980 = vmul.f32 %v2967, 1.442695
    %v2981 = vpow.pop %v2980
    %v2982 = vmul.f32 %v2968, 1.442695
    %v2983 = vpow.pop %v2982
    %v2984 = vmul.f32 %v2969, 1.442695
    %v2985 = vpow.pop %v2984
    %v2986 = vadd.f32 %v2971, 1.0
    %v2987 = vadd.f32 %v2973, 1.0
    %v2988 = vadd.f32 %v2975, 1.0
    %v2989 = vadd.f32 %v2977, 1.0
    %v2990 = vadd.f32 %v2979, 1.0
    %v2991 = vadd.f32 %v2981, 1.0
    %v2992 = vadd.f32 %v2983, 1.0
    %v2993 = vadd.f32 %v2985, 1.0
    %v2994 = vrcp.pop %v2986
    %v2995 = vmul.f32 %v2986, %v2994
    %v2996 = vsub.f32 1.0, %v2995
    %v2997 = vmul.f32 %v2994, %v2996
    %v2998 = vadd.f32 %v2994, %v2997
    %vm2999 = vweird.f32 %v2986
    %vm3000 = vweird.f32 %v2994
    %vm3001 = vmor %vm2999, %vm3000
    %v3002 = vsel %vm3001, %v2994, %v2998
    %v3003 = vand.u32 2147483647, %v2986
    %vm3004 = vcmp.eq.f32.partialorder %v3003, 8.507059e+37
    %v3005 = vand.u32 %v2986, 2147483648
    %v3006 = vor.u32 1.1754944e-38, %v3005
    %v3007 = vsel %vm3004, %v3006, %v3002
    %v3008 = vmul.f32 1.0, %v3007
    %v3009 = vrcp.pop %v2987
    %v3010 = vmul.f32 %v2987, %v3009
    %v3011 = vsub.f32 1.0, %v3010
    %v3012 = vmul.f32 %v3009, %v3011
    %v3013 = vadd.f32 %v3009, %v3012
    %vm3014 = vweird.f32 %v2987
    %vm3015 = vweird.f32 %v3009
    %vm3016 = vmor %vm3014, %vm3015
    %v3017 = vsel %vm3016, %v3009, %v3013
    %v3018 = vand.u32 2147483647, %v2987
    %vm3019 = vcmp.eq.f32.partialorder %v3018, 8.507059e+37
    %v3020 = vand.u32 %v2987, 2147483648
    %v3021 = vor.u32 1.1754944e-38, %v3020
    %v3022 = vsel %vm3019, %v3021, %v3017
    %v3023 = vmul.f32 1.0, %v3022
    %v3024 = vrcp.pop %v2988
    %v3025 = vmul.f32 %v2988, %v3024
    %v3026 = vsub.f32 1.0, %v3025
    %v3027 = vmul.f32 %v3024, %v3026
    %v3028 = vadd.f32 %v3024, %v3027
    %vm3029 = vweird.f32 %v2988
    %vm3030 = vweird.f32 %v3024
    %vm3031 = vmor %vm3029, %vm3030
    %v3032 = vsel %vm3031, %v3024, %v3028
    %v3033 = vand.u32 2147483647, %v2988
    %vm3034 = vcmp.eq.f32.partialorder %v3033, 8.507059e+37
    %v3035 = vand.u32 %v2988, 2147483648
    %v3036 = vor.u32 1.1754944e-38, %v3035
    %v3037 = vsel %vm3034, %v3036, %v3032
    %v3038 = vmul.f32 1.0, %v3037
    %v3039 = vrcp.pop %v2989
    %v3040 = vmul.f32 %v2989, %v3039
    %v3041 = vsub.f32 1.0, %v3040
    %v3042 = vmul.f32 %v3039, %v3041
    %v3043 = vadd.f32 %v3039, %v3042
    %vm3044 = vweird.f32 %v2989
    %vm3045 = vweird.f32 %v3039
    %vm3046 = vmor %vm3044, %vm3045
    %v3047 = vsel %vm3046, %v3039, %v3043
    %v3048 = vand.u32 2147483647, %v2989
    %vm3049 = vcmp.eq.f32.partialorder %v3048, 8.507059e+37
    %v3050 = vand.u32 %v2989, 2147483648
    %v3051 = vor.u32 1.1754944e-38, %v3050
    %v3052 = vsel %vm3049, %v3051, %v3047
    %v3053 = vmul.f32 1.0, %v3052
    %v3054 = vrcp.pop %v2990
    %v3055 = vmul.f32 %v2990, %v3054
    %v3056 = vsub.f32 1.0, %v3055
    %v3057 = vmul.f32 %v3054, %v3056
    %v3058 = vadd.f32 %v3054, %v3057
    %vm3059 = vweird.f32 %v2990
    %vm3060 = vweird.f32 %v3054
    %vm3061 = vmor %vm3059, %vm3060
    %v3062 = vsel %vm3061, %v3054, %v3058
    %v3063 = vand.u32 2147483647, %v2990
    %vm3064 = vcmp.eq.f32.partialorder %v3063, 8.507059e+37
    %v3065 = vand.u32 %v2990, 2147483648
    %v3066 = vor.u32 1.1754944e-38, %v3065
    %v3067 = vsel %vm3064, %v3066, %v3062
    %v3068 = vmul.f32 1.0, %v3067
    %v3069 = vrcp.pop %v2991
    %v3070 = vmul.f32 %v2991, %v3069
    %v3071 = vsub.f32 1.0, %v3070
    %v3072 = vmul.f32 %v3069, %v3071
    %v3073 = vadd.f32 %v3069, %v3072
    %vm3074 = vweird.f32 %v2991
    %vm3075 = vweird.f32 %v3069
    %vm3076 = vmor %vm3074, %vm3075
    %v3077 = vsel %vm3076, %v3069, %v3073
    %v3078 = vand.u32 2147483647, %v2991
    %vm3079 = vcmp.eq.f32.partialorder %v3078, 8.507059e+37
    %v3080 = vand.u32 %v2991, 2147483648
    %v3081 = vor.u32 1.1754944e-38, %v3080
    %v3082 = vsel %vm3079, %v3081, %v3077
    %v3083 = vmul.f32 1.0, %v3082
    %v3084 = vrcp.pop %v2992
    %v3085 = vmul.f32 %v2992, %v3084
    %v3086 = vsub.f32 1.0, %v3085
    %v3087 = vmul.f32 %v3084, %v3086
    %v3088 = vadd.f32 %v3084, %v3087
    %vm3089 = vweird.f32 %v2992
    %vm3090 = vweird.f32 %v3084
    %vm3091 = vmor %vm3089, %vm3090
    %v3092 = vsel %vm3091, %v3084, %v3088
    %v3093 = vand.u32 2147483647, %v2992
    %vm3094 = vcmp.eq.f32.partialorder %v3093, 8.507059e+37
    %v3095 = vand.u32 %v2992, 2147483648
    %v3096 = vor.u32 1.1754944e-38, %v3095
    %v3097 = vsel %vm3094, %v3096, %v3092
    %v3098 = vmul.f32 1.0, %v3097
    %v3099 = vrcp.pop %v2993
    %v3100 = vmul.f32 %v2993, %v3099
    %v3101 = vsub.f32 1.0, %v3100
    %v3102 = vmul.f32 %v3099, %v3101
    %v3103 = vadd.f32 %v3099, %v3102
    %vm3104 = vweird.f32 %v2993
    %vm3105 = vweird.f32 %v3099
    %vm3106 = vmor %vm3104, %vm3105
    %v3107 = vsel %vm3106, %v3099, %v3103
    %v3108 = vand.u32 2147483647, %v2993
    %vm3109 = vcmp.eq.f32.partialorder %v3108, 8.507059e+37
    %v3110 = vand.u32 %v2993, 2147483648
    %v3111 = vor.u32 1.1754944e-38, %v3110
    %v3112 = vsel %vm3109, %v3111, %v3107
    %v3113 = vmul.f32 1.0, %v3112
    %v3114 = vmul.f32 %v2934, %v3008
    %v3115 = vmul.f32 %v2953, %v3023
    %v3116 = vmul.f32 %v2936, %v3038
    %v3117 = vmul.f32 %v2955, %v3053
    %v3118 = vmul.f32 %v2939, %v3068
    %v3119 = vmul.f32 %v2958, %v3083
    %v3120 = vmul.f32 %v2941, %v3098
    %v3121 = vmul.f32 %v2960, %v3113
    %v3122 = vpack.c.bf16 %v3116, %v3114
    %v3123 = vpack.c.bf16 %v3117, %v3115
    %v3124 = vpack.c.bf16 %v3120, %v3118
    %v3125 = vpack.c.bf16 %v3121, %v3119
    %v3126 = vld [vmem:[#allocation18] sm:$0xf]
    %v3127 = vld [vmem:[#allocation18 + $0x4] sm:$0xf]
    %v3128 = vld [vmem:[#allocation18 + $0x8] sm:$0xf]
    %v3129 = vld [vmem:[#allocation18 + $0xc] sm:$0xf]
    %v3130 = vld [vmem:[#allocation18 + $0x10] sm:$0xf]
    %v3131 = vld [vmem:[#allocation18 + $0x14] sm:$0xf]
    %v3132 = vld [vmem:[#allocation18 + $0x18] sm:$0xf]
    %v3133 = vld [vmem:[#allocation18 + $0x1c] sm:$0xf]
    %v3134 = vld [vmem:[#allocation18 + $0x20] sm:$0xf]
    %v3135 = vld [vmem:[#allocation18 + $0x24] sm:$0xf]
    %v3136 = vld [vmem:[#allocation18 + $0x28] sm:$0xf]
    %v3137 = vld [vmem:[#allocation18 + $0x2c] sm:$0xf]
    %v3138 = vld [vmem:[#allocation18 + $0x30] sm:$0xf]
    %v3139 = vld [vmem:[#allocation18 + $0x34] sm:$0xf]
    %v3140 = vld [vmem:[#allocation18 + $0x38] sm:$0xf]
    %v3141 = vld [vmem:[#allocation18 + $0x3c] sm:$0xf]
    %v3142 = vld [vmem:[#allocation18 + $0x40] sm:$0xf]
    %v3143 = vld [vmem:[#allocation18 + $0x44] sm:$0xf]
    %v3144 = vld [vmem:[#allocation18 + $0x48] sm:$0xf]
    %v3145 = vld [vmem:[#allocation18 + $0x4c] sm:$0xf]
    %v3146 = vld [vmem:[#allocation18 + $0x50] sm:$0xf]
    %v3147 = vld [vmem:[#allocation18 + $0x54] sm:$0xf]
    %v3148 = vld [vmem:[#allocation18 + $0x58] sm:$0xf]
    %v3149 = vld [vmem:[#allocation18 + $0x5c] sm:$0xf]
    %v3150 = vld [vmem:[#allocation18 + $0x60] sm:$0xf]
    %v3151 = vld [vmem:[#allocation18 + $0x64] sm:$0xf]
    %v3152 = vld [vmem:[#allocation18 + $0x68] sm:$0xf]
    %v3153 = vld [vmem:[#allocation18 + $0x6c] sm:$0xf]
    %v3154 = vld [vmem:[#allocation18 + $0x70] sm:$0xf]
    %v3155 = vld [vmem:[#allocation18 + $0x74] sm:$0xf]
    %v3156 = vld [vmem:[#allocation18 + $0x78] sm:$0xf]
    %v3157 = vld [vmem:[#allocation18 + $0x7c] sm:$0xf]
    %v3158 = vld [vmem:[#allocation6 + $0x32] ss:$0 sm:$0xff]
    %v3191 = vunpack.c.l.b16 %v3126
    %v3192 = vunpack.c.l.b16 %v3127
    %v3193 = vunpack.c.l.b16 %v3128
    %v3194 = vunpack.c.l.b16 %v3129
    %v3195 = vunpack.c.l.b16 %v3130
    %v3196 = vunpack.c.l.b16 %v3131
    %v3197 = vunpack.c.l.b16 %v3132
    %v3198 = vunpack.c.l.b16 %v3133
    %v3199 = vunpack.c.l.b16 %v3134
    %v3200 = vunpack.c.l.b16 %v3135
    %v3201 = vunpack.c.l.b16 %v3136
    %v3202 = vunpack.c.l.b16 %v3137
    %v3203 = vunpack.c.l.b16 %v3138
    %v3204 = vunpack.c.l.b16 %v3139
    %v3205 = vunpack.c.l.b16 %v3140
    %v3206 = vunpack.c.l.b16 %v3141
    %v3207 = vunpack.c.l.b16 %v3142
    %v3208 = vunpack.c.l.b16 %v3143
    %v3209 = vunpack.c.l.b16 %v3144
    %v3210 = vunpack.c.l.b16 %v3145
    %v3211 = vunpack.c.l.b16 %v3146
    %v3212 = vunpack.c.l.b16 %v3147
    %v3213 = vunpack.c.l.b16 %v3148
    %v3214 = vunpack.c.l.b16 %v3149
    %v3215 = vunpack.c.l.b16 %v3150
    %v3216 = vunpack.c.l.b16 %v3151
    %v3217 = vunpack.c.l.b16 %v3152
    %v3218 = vunpack.c.l.b16 %v3153
    %v3219 = vunpack.c.l.b16 %v3154
    %v3220 = vunpack.c.l.b16 %v3155
    %v3221 = vunpack.c.l.b16 %v3156
    %v3222 = vunpack.c.l.b16 %v3157
    %v3223 = vpack.c.b16 %v3192, %v3191
    %v3224 = vpack.c.b16 %v3194, %v3193
    %v3225 = vpack.c.b16 %v3196, %v3195
    %v3226 = vpack.c.b16 %v3198, %v3197
    %v3227 = vpack.c.b16 %v3200, %v3199
    %v3228 = vpack.c.b16 %v3202, %v3201
    %v3229 = vpack.c.b16 %v3204, %v3203
    %v3230 = vpack.c.b16 %v3206, %v3205
    %v3231 = vpack.c.b16 %v3208, %v3207
    %v3232 = vpack.c.b16 %v3210, %v3209
    %v3233 = vpack.c.b16 %v3212, %v3211
    %v3234 = vpack.c.b16 %v3214, %v3213
    %v3235 = vpack.c.b16 %v3216, %v3215
    %v3236 = vpack.c.b16 %v3218, %v3217
    %v3237 = vpack.c.b16 %v3220, %v3219
    %v3238 = vpack.c.b16 %v3222, %v3221
    %3255 = vmatpush.bf16.msra.mxu0 %v3230
    %3256 = vmatpush.bf16.msra.mxu0 %v3229
    %3257 = vmatpush.bf16.msra.mxu0 %v3228
    %3258 = vmatpush.bf16.msra.mxu0 %v3227
    %3259 = vmatpush.bf16.msra.mxu0 %v3226
    %3260 = vmatpush.bf16.msra.mxu0 %v3225
    %3261 = vmatpush.bf16.msra.mxu0 %v3224
    %3262 = vmatpush.bf16.msra.mxu0 %v3223
    %3263 = vmatmul.bf16.gmra.mxu0 %v3122
    %v3264 = vpop.f32.mrf.mxu0
    %v3265 = vadd.f32 %v3158, %v3264
    %v3266 = vpop.f32.mrf.mxu0
    %v3267 = vadd.f32 %v3158, %v3266
    %3268 = vmatmul.bf16.gmra.mxu0 %v3124
    %v3269 = vpop.f32.mrf.mxu0
    %v3270 = vadd.f32 %v3158, %v3269
    %v3271 = vpop.f32.mrf.mxu0
    %v3272 = vadd.f32 %v3158, %v3271
    %3273 = vdwg.mxu0
    %3274 = vmatpush.bf16.msra.mxu0 %v3238
    %3275 = vmatpush.bf16.msra.mxu0 %v3237
    %3276 = vmatpush.bf16.msra.mxu0 %v3236
    %3277 = vmatpush.bf16.msra.mxu0 %v3235
    %3278 = vmatpush.bf16.msra.mxu0 %v3234
    %3279 = vmatpush.bf16.msra.mxu0 %v3233
    %3280 = vmatpush.bf16.msra.mxu0 %v3232
    %3281 = vmatpush.bf16.msra.mxu0 %v3231
    %3282 = vmatmul.bf16.gmra.mxu0 %v3123
    %v3283 = vpop.f32.mrf.mxu0
    %v3284 = vadd.f32 %v3265, %v3283
    %v3285 = vpop.f32.mrf.mxu0
    %v3286 = vadd.f32 %v3267, %v3285
    %3287 = vmatmul.bf16.gmra.mxu0 %v3125
    %v3288 = vpop.f32.mrf.mxu0
    %v3289 = vadd.f32 %v3270, %v3288
    %v3290 = vpop.f32.mrf.mxu0
    %v3291 = vadd.f32 %v3272, %v3290
    %3292 = vdwg.mxu0
    %v3293 = vmul.f32 %v3284, 0.5
    %v3294 = vmul.f32 %v3286, 0.5
    %v3295 = vmul.f32 %v3289, 0.5
    %v3296 = vmul.f32 %v3291, 0.5
    %v3297 = vadd.f32 %v2725, %v3293
    %v3298 = vadd.f32 %v2726, %v3294
    %v3299 = vadd.f32 %v2727, %v3295
    %v3300 = vadd.f32 %v2728, %v3296
    %3301 = vadd.xlane.f32.xlu0 %v3297
    %v3302 = vpop.xlane.xlu0 %3301
    %3303 = vadd.xlane.f32.xlu0 %v3298
    %v3304 = vpop.xlane.xlu0 %3303
    %3305 = vadd.xlane.f32.xlu0 %v3299
    %v3306 = vpop.xlane.xlu0 %3305
    %3307 = vadd.xlane.f32.xlu0 %v3300
    %v3308 = vpop.xlane.xlu0 %3307
    %v3309 = vmul.f32 %v3302, %v220
    %v3310 = vmul.f32 %v3304, %v220
    %v3311 = vmul.f32 %v3306, %v220
    %v3312 = vmul.f32 %v3308, %v220
    %v3313 = vsub.f32 %v3297, %v3309
    %v3314 = vsub.f32 %v3298, %v3310
    %v3315 = vsub.f32 %v3299, %v3311
    %v3316 = vsub.f32 %v3300, %v3312
    %v3317 = vmul.f32 %v3313, %v3313
    %v3318 = vmul.f32 %v3314, %v3314
    %v3319 = vmul.f32 %v3315, %v3315
    %v3320 = vmul.f32 %v3316, %v3316
    %3321 = vadd.xlane.f32.xlu0 %v3317
    %v3322 = vpop.xlane.xlu0 %3321
    %3323 = vadd.xlane.f32.xlu0 %v3318
    %v3324 = vpop.xlane.xlu0 %3323
    %3325 = vadd.xlane.f32.xlu0 %v3319
    %v3326 = vpop.xlane.xlu0 %3325
    %3327 = vadd.xlane.f32.xlu0 %v3320
    %v3328 = vpop.xlane.xlu0 %3327
    %v3329 = vmul.f32 %v3322, %v220
    %v3330 = vmul.f32 %v3324, %v220
    %v3331 = vmul.f32 %v3326, %v220
    %v3332 = vmul.f32 %v3328, %v220
    %v3333 = vadd.f32 %v3329, 1e-12
    %v3334 = vadd.f32 %v3330, 1e-12
    %v3335 = vadd.f32 %v3331, 1e-12
    %v3336 = vadd.f32 %v3332, 1e-12
    %v3337 = vrsqrt.pop %v3333
    %v3338 = vmul.f32 %v3337, %v3333
    %v3339 = vmul.f32 %v3338, %v3337
    %v3340 = vmul.f32 0.5, %v3339
    %v3341 = vsub.f32 1.5, %v3340
    %v3342 = vmul.f32 %v3337, %v3341
    %vm3343 = vweird.f32 %v3333
    %vm3344 = vweird.f32 %v3337
    %vm3345 = vmor %vm3343, %vm3344
    %v3346 = vsel %vm3345, %v3337, %v3342
    %v3347 = vrsqrt.pop %v3334
    %v3348 = vmul.f32 %v3347, %v3334
    %v3349 = vmul.f32 %v3348, %v3347
    %v3350 = vmul.f32 0.5, %v3349
    %v3351 = vsub.f32 1.5, %v3350
    %v3352 = vmul.f32 %v3347, %v3351
    %vm3353 = vweird.f32 %v3334
    %vm3354 = vweird.f32 %v3347
    %vm3355 = vmor %vm3353, %vm3354
    %v3356 = vsel %vm3355, %v3347, %v3352
    %v3357 = vrsqrt.pop %v3335
    %v3358 = vmul.f32 %v3357, %v3335
    %v3359 = vmul.f32 %v3358, %v3357
    %v3360 = vmul.f32 0.5, %v3359
    %v3361 = vsub.f32 1.5, %v3360
    %v3362 = vmul.f32 %v3357, %v3361
    %vm3363 = vweird.f32 %v3335
    %vm3364 = vweird.f32 %v3357
    %vm3365 = vmor %vm3363, %vm3364
    %v3366 = vsel %vm3365, %v3357, %v3362
    %v3367 = vrsqrt.pop %v3336
    %v3368 = vmul.f32 %v3367, %v3336
    %v3369 = vmul.f32 %v3368, %v3367
    %v3370 = vmul.f32 0.5, %v3369
    %v3371 = vsub.f32 1.5, %v3370
    %v3372 = vmul.f32 %v3367, %v3371
    %vm3373 = vweird.f32 %v3336
    %vm3374 = vweird.f32 %v3367
    %vm3375 = vmor %vm3373, %vm3374
    %v3376 = vsel %vm3375, %v3367, %v3372
    %v3377 = vmul.f32 %v3313, %v3346
    %v3378 = vmul.f32 %v3314, %v3356
    %v3379 = vmul.f32 %v3315, %v3366
    %v3380 = vmul.f32 %v3316, %v3376
    %v3381 = vld [vmem:[#allocation6 + $0x33] ss:$0 sm:$0xff]
    %v3382 = vmul.f32 %v3377, %v3381
    %v3383 = vmul.f32 %v3378, %v3381
    %v3384 = vmul.f32 %v3379, %v3381
    %v3385 = vmul.f32 %v3380, %v3381
    %v3386 = vld [vmem:[#allocation6 + $0x34] ss:$0 sm:$0xff]
    %v3387 = vadd.f32 %v3382, %v3386
    %v3388 = vadd.f32 %v3383, %v3386
    %v3389 = vadd.f32 %v3384, %v3386
    %v3390 = vadd.f32 %v3385, %v3386
    %3391 = vst [vmem:[#allocation20] sm:$0xff] %v3387
    %3392 = vst [vmem:[#allocation20 + $0x8] sm:$0xff] %v3388
    %3393 = vst [vmem:[#allocation20 + $0x10] sm:$0xff] %v3389
    %3394 = vst [vmem:[#allocation20 + $0x18] sm:$0xff] %v3390
    // Predicated region
    $region94: #{tpu_custom_call.1} parent=1 // pred_check
      _
    $region95: #{tpu_custom_call.1} parent=1 // pred_check_branch
      %3396 = sbr.rel (0) target = $region97
    $region96: #{tpu_custom_call.1} parent=1 // pred_region
      %3398 = vsyncadd [#allocation5], 0
      %s3399 = sshll.u32 [#allocation20], 4
      %s3400 = int_to_ptr.vmem [resolvable:$true] %s3399
      %s3401 = sshll.u32 %s13, 4
      %s3402 = int_to_ptr.hbm [resolvable:$true] %s3401
      %3407 = dma.vmem_to_hbm [thread:$0]  %s3400, 512, %s3402, [#allocation5], 128, 128, 8
    $region97: #{tpu_custom_call.1} parent=1 // pred_fallthru
      _
    // Predicated region
    $region98: #{tpu_custom_call.1} parent=1 // pred_check
      _
    $region99: #{tpu_custom_call.1} parent=1 // pred_check_branch
      %3409 = sbr.rel (0) target = $region101
    $region100: #{tpu_custom_call.1} parent=1 // pred_region
      %3411 = dma.done [#allocation5], 512
    $region101: #{tpu_custom_call.1} parent=1 // pred_fallthru
      _
    %3412 = vsyncpa [#allocation4], 1
    %3413 = vsyncpa [#allocation7], 1
    %3414 = vsyncpa [#allocation10], 1
    %3415 = vsyncpa [#allocation13], 1
    %3416 = vsyncpa [#allocation16], 1
    %3417 = vsyncpa [#allocation19], 1
    %3418 = vsyncpa [#allocation5], 1

</llo_original>
